<compile_context>
chip_gen: v7x
topology: tpu7x:2x2x1
jax: 0.10.0
libtpu: 0.0.40
codegen_flags: <defaults>
</compile_context>

<pallas_src>
import functools

import jax
import jax.numpy as jnp
from jax import lax
from jax.experimental import pallas as pl
from jax.experimental.pallas import tpu as pltpu

NEG_SLOPE = 0.01  # torch.nn.LeakyReLU default


def _resblock_kernel(xl_ref, xm_ref, xr_ref, w1_ref, b1_ref, w2_ref, b2_ref,
                     o_ref, xwin, h, *, K, dilation, pad, halo, Ltile, L,
                     compute_dtype):
    """One (length-tile, batch) block per grid step.

    xl_ref : (1, C, halo)   left-neighbour columns of x (clamped at l == 0)
    xm_ref : (1, C, Ltile)  this tile of x (also the residual source)
    xr_ref : (1, C, halo)   right-neighbour columns of x (clamped at the end)
    w1_ref : (K, C, C)      conv1 weights, one (Cout, Cin) matrix per tap
    b1_ref : (C, 1) f32
    w2_ref : (K, C, C)
    b2_ref : (C, 1) f32
    o_ref  : (1, C, Ltile)
    xwin   : (C, Ltile + 2*halo)  VMEM scratch, zero-padded input window (compute dtype)
    h      : (C, LH)              VMEM scratch, intermediate activation (compute dtype)
    """
    C = o_ref.shape[1]
    LH = h.shape[1]                       # ceil(Ltile + 2*pad, 128)
    Wwin = Ltile + 2 * halo
    l = pl.program_id(0)
    cdt = compute_dtype

    # ---- window assembly: [left halo | main | right halo], zero outside [0, L) ----
    lsrc = l * Ltile - halo + lax.broadcasted_iota(jnp.int32, (1, halo), 1)
    xwin[:, :halo] = jnp.where(lsrc >= 0, xl_ref[0], 0.0).astype(cdt)
    xwin[:, halo:halo + Ltile] = xm_ref[0].astype(cdt)
    rsrc = (l + 1) * Ltile + lax.broadcasted_iota(jnp.int32, (1, halo), 1)
    xwin[:, halo + Ltile:halo + Ltile + halo] = (
        jnp.where(rsrc < L, xr_ref[0], 0.0).astype(cdt))

    # Partial last tile only: zero main-block columns past L.
    @pl.when((l + 1) * Ltile > L)
    def _():
        msrc = l * Ltile + lax.broadcasted_iota(jnp.int32, (1, Ltile), 1)
        xwin[:, halo:halo + Ltile] = jnp.where(
            msrc < L, xwin[:, halo:halo + Ltile], 0)

    # ---- conv1: K accumulating per-tap MXU matmuls over rolled windows ----
    xw = xwin[...]                        # (C, Wwin), compute dtype
    acc = None
    for k in range(K):
        off = halo - 2 * pad + k * dilation        # 0 <= off <= halo
        src = xw if off == 0 else pltpu.roll(xw, shift=Wwin - off, axis=1)
        src = src[:, :LH]
        p = jnp.dot(w1_ref[k], src, preferred_element_type=jnp.float32)
        acc = p if acc is None else acc + p

    y1 = acc + b1_ref[...]                # (C, LH), f32
    y1 = jnp.where(y1 >= 0, y1, NEG_SLOPE * y1)
    h[...] = y1.astype(cdt)

    # Intermediate columns outside [0, L) are conv2's zero padding in PyTorch;
    # only the first / last tiles can have such columns.
    @pl.when(jnp.logical_or(l == 0, (l + 1) * Ltile + pad > L))
    def _():
        hidx = l * Ltile - pad + lax.broadcasted_iota(jnp.int32, (1, LH), 1)
        h[...] = jnp.where((hidx >= 0) & (hidx < L), h[...], 0)

    # ---- conv2 + bias + residual (residual from the aligned main block) ----
    hv = h[...]                           # (C, LH), compute dtype
    acc2 = None
    for k in range(K):
        off = k * dilation                # 0 <= off <= 2*pad <= LH - Ltile
        src = hv if off == 0 else pltpu.roll(hv, shift=LH - off, axis=1)
        src = src[:, :Ltile]
        p = jnp.dot(w2_ref[k], src, preferred_element_type=jnp.float32)
        acc2 = p if acc2 is None else acc2 + p

    o_ref[0] = (xm_ref[0] + acc2 + b2_ref[...]).astype(o_ref.dtype)


def _ceil_to(a, b):
    return -(-a // b) * b


def _vmem_capacity_bytes():
    try:
        info = pltpu.get_tpu_info()
        cap = int(getattr(info, "vmem_capacity_bytes", 0))
        if cap > 0:
            return cap
    except Exception:
        pass
    return 64 * 1024 * 1024  # conservative default (v7x per-TC)


def _vmem_estimate_bytes(C, K, tile_l, pad, halo, comp_bytes):
    """Generous per-step VMEM estimate (everything padded to (8,128) tiles)."""
    def tb(r, c, it):
        return _ceil_to(max(r, 1), 8) * _ceil_to(max(c, 1), 128) * it
    LH = _ceil_to(tile_l + 2 * pad, 128)
    est = 0
    est += 2 * 2 * tb(C, tile_l, 4)            # main input + output, double buffered
    est += 2 * 2 * tb(C, halo, 4)              # two halo inputs, double buffered
    est += 2 * 2 * K * tb(C, C, comp_bytes)    # w1 + w2 (assume double buffered)
    est += 2 * 2 * tb(C, 1, 4)                 # biases
    est += tb(C, tile_l + 2 * halo, comp_bytes) + tb(C, LH, comp_bytes)   # scratch
    est += tb(C, LH, 4) + tb(C, LH, comp_bytes)                           # acc + rolled operand
    est += tb(C, tile_l + 2 * halo, comp_bytes)                           # window value
    return est


def resblock1d(x, w1, b1, w2, b2, *, kernel_size, dilation, tile_l=None,
               compute_dtype=jnp.bfloat16):
    """x: (N, C, L) f32.  w: (C, C, K) (PyTorch Conv1d layout).  b: (C,).

    compute_dtype: MXU operand dtype (bf16 default on all TPU generations;
    accumulation, bias, LeakyReLU and the residual are always f32).  Note the
    bf16 path quantizes activations as well as weights - fine for inference,
    expect looser tolerances than weight-only quantization.
    """
    N, C, L = x.shape
    K = kernel_size
    assert K % 2 == 1, "even kernel_size would shift the output (PyTorch 'same' pad)"
    assert w1.shape == (C, C, K) and w2.shape == (C, C, K)
    pad = (K // 2) * dilation
    halo = max(128, _ceil_to(2 * pad, 128))    # per-side halo, lane-dense

    if compute_dtype == jnp.bfloat16:
        assert C % 16 == 0, "bf16 sublane packing needs C % 16 == 0"
    else:
        assert C % 8 == 0, "sublane alignment needs C % 8 == 0"

    comp_bytes = jnp.dtype(compute_dtype).itemsize
    cap = _vmem_capacity_bytes()

    if tile_l is None:
        budget = int(0.40 * cap)
        t = max(halo, min(2048, _ceil_to(L, halo)))
        while t > halo and _vmem_estimate_bytes(C, K, t, pad, halo, comp_bytes) > budget:
            t -= halo
        tile_l = t

    assert tile_l % halo == 0 and tile_l >= halo, "tile_l must be a multiple of the halo"
    est = _vmem_estimate_bytes(C, K, tile_l, pad, halo, comp_bytes)
    assert est <= int(0.75 * cap), "per-step VMEM too large for this TPU; reduce tile_l"
    vmem_limit = int(min(max(2 * est, 32 << 20), int(0.85 * cap)))

    nL = -(-L // tile_l)
    nH = -(-L // halo)
    mult = tile_l // halo
    LH = _ceil_to(tile_l + 2 * pad, 128)

    # (Cout, Cin, K) -> (K, Cout, Cin): one (C, C) MXU matrix per tap.
    w1t = jnp.transpose(w1, (2, 0, 1)).astype(compute_dtype)
    w2t = jnp.transpose(w2, (2, 0, 1)).astype(compute_dtype)
    b1c = b1.reshape(C, 1).astype(jnp.float32)
    b2c = b2.reshape(C, 1).astype(jnp.float32)

    kernel = functools.partial(
        _resblock_kernel, K=K, dilation=dilation, pad=pad, halo=halo,
        Ltile=tile_l, L=L, compute_dtype=compute_dtype)

    def xl_map(l, n):   # last `halo` columns of the previous tile (clamped at l == 0)
        return (n, 0, jnp.maximum(l * mult - 1, 0))

    def xm_map(l, n):
        return (n, 0, l)

    def xr_map(l, n):   # first `halo` columns of the next tile (clamped at the end)
        return (n, 0, jnp.minimum((l + 1) * mult, nH - 1))

    def w_map(l, n):
        return (0, 0, 0)

    def b_map(l, n):
        return (0, 0)

    def build(weight_mode):
        wkw = {} if weight_mode is None else {"pipeline_mode": weight_mode}
        return pl.pallas_call(
            kernel,
            out_shape=jax.ShapeDtypeStruct((N, C, L), x.dtype),
            grid_spec=pltpu.PrefetchScalarGridSpec(
                num_scalar_prefetch=0,
                grid=(nL, N),
                in_specs=[
                    pl.BlockSpec((1, C, halo), xl_map),     # left halo
                    pl.BlockSpec((1, C, tile_l), xm_map),   # main tile (+ residual)
                    pl.BlockSpec((1, C, halo), xr_map),     # right halo
                    pl.BlockSpec((K, C, C), w_map, **wkw),  # w1 (constant index)
                    pl.BlockSpec((C, 1), b_map, **wkw),     # b1
                    pl.BlockSpec((K, C, C), w_map, **wkw),  # w2
                    pl.BlockSpec((C, 1), b_map, **wkw),     # b2
                ],
                out_specs=pl.BlockSpec((1, C, tile_l), xm_map),
                scratch_shapes=[
                    pltpu.VMEM((C, tile_l + 2 * halo), compute_dtype),  # xwin
                    pltpu.VMEM((C, LH), compute_dtype),                 # h
                ],
            ),
            compiler_params=pltpu.CompilerParams(
                dimension_semantics=("parallel", "parallel"),
                vmem_limit_bytes=vmem_limit,
            ),
        )

    args = (x, x, x, w1t, b1c, w2t, b2c)
    buffered = getattr(pl, "Buffered", None)
    if buffered is not None:
        try:
            # Constant-index weights/biases don't need double buffers.
            return build(buffered(1))(*args)
        except Exception:
            pass  # fall back to the default pipeline mode
    return build(None)(*args)


def _reference(x, w1, b1, w2, b2, *, kernel_size, dilation):
    pad = (kernel_size // 2) * dilation
    dn = ("NCH", "OIH", "NCH")

    def conv(inp, w, b):
        y = lax.conv_general_dilated(inp, w, (1,), [(pad, pad)],
                                     rhs_dilation=(dilation,),
                                     dimension_numbers=dn,
                                     precision=lax.Precision.HIGHEST)
        return y + b.reshape(1, -1, 1)

    h = conv(x, w1, b1)
    h = jnp.where(h >= 0, h, NEG_SLOPE * h)
    return x + conv(h, w2, b2)


if __name__ == "__main__":
    # Small TPU-friendly shapes: C multiple of 16 (bf16 sublane packing),
    # L = 2 length tiles so the halo / multi-tile path is exercised.
    N, C, L = 2, 16, 256
    kernel_size, dilation = 3, 2

    key = jax.random.PRNGKey(0)
    kx, kw1, kb1, kw2, kb2 = jax.random.split(key, 5)

    x = jax.random.normal(kx, (N, C, L), dtype=jnp.float32)
    bound = (C * kernel_size) ** -0.5  # Conv1d-style init: U(+/- 1/sqrt(fan_in))
    w1 = jax.random.uniform(kw1, (C, C, kernel_size), jnp.float32, -bound, bound)
    b1 = jax.random.uniform(kb1, (C,), jnp.float32, -bound, bound)
    w2 = jax.random.uniform(kw2, (C, C, kernel_size), jnp.float32, -bound, bound)
    b2 = jax.random.uniform(kb2, (C,), jnp.float32, -bound, bound)

    ref = _reference(x, w1, b1, w2, b2, kernel_size=kernel_size, dilation=dilation)

    # f32 matmul path (tight tolerance).
    out = resblock1d(x, w1, b1, w2, b2, kernel_size=kernel_size, dilation=dilation,
                     tile_l=128, compute_dtype=jnp.float32)
    out = jax.block_until_ready(out)
    assert out.shape == (N, C, L)
    assert jnp.allclose(out, ref, atol=1e-3, rtol=1e-3), "f32 mismatch vs. reference"

    # Default bf16 matmul-operand path, f32 accumulation -> looser tolerance.
    out_bf16 = resblock1d(x, w1, b1, w2, b2, kernel_size=kernel_size,
                          dilation=dilation, tile_l=128)
    out_bf16 = jax.block_until_ready(out_bf16)
    assert out_bf16.shape == (N, C, L)
    assert float(jnp.max(jnp.abs(out_bf16 - ref))) < 0.1, "bf16 mismatch vs. reference"

    print("KERNEL_OK")
</pallas_src>

<mosaic_0001>
module attributes {stable_mosaic.version = 11 : i64} {
  func.func @_resblock_kernel(%arg0: i32, %arg1: i32, %arg2: memref<1x16x128xf32, #tpu.memory_space<vmem>>, %arg3: memref<1x16x128xf32, #tpu.memory_space<vmem>>, %arg4: memref<1x16x128xf32, #tpu.memory_space<vmem>>, %arg5: memref<3x16x16xf32, #tpu.memory_space<vmem>>, %arg6: memref<16x1xf32, #tpu.memory_space<vmem>>, %arg7: memref<3x16x16xf32, #tpu.memory_space<vmem>>, %arg8: memref<16x1xf32, #tpu.memory_space<vmem>>, %arg9: memref<1x16x128xf32, #tpu.memory_space<vmem>>, %arg10: memref<16x384xf32, #tpu.memory_space<vmem>>, %arg11: memref<16x256xf32, #tpu.memory_space<vmem>>) attributes {dimension_semantics = [#tpu.dimension_semantics<parallel>, #tpu.dimension_semantics<parallel>], iteration_bounds = array<i64: 2, 2>, scalar_prefetch = 0 : i64, scratch_operands = 2 : i64, tpu.core_type = #tpu.core_type<tc>, window_params = [{transform_indices = @transform_0, window_bounds = array<i64: 1, 16, 128>}, {transform_indices = @transform_1, window_bounds = array<i64: 1, 16, 128>}, {transform_indices = @transform_2, window_bounds = array<i64: 1, 16, 128>}, {pipeline_mode = #tpu.pipeline_mode<synchronous>, transform_indices = @transform_3, window_bounds = array<i64: 3, 16, 16>}, {pipeline_mode = #tpu.pipeline_mode<synchronous>, transform_indices = @transform_4, window_bounds = array<i64: 16, 1>}, {pipeline_mode = #tpu.pipeline_mode<synchronous>, transform_indices = @transform_5, window_bounds = array<i64: 3, 16, 16>}, {pipeline_mode = #tpu.pipeline_mode<synchronous>, transform_indices = @transform_6, window_bounds = array<i64: 16, 1>}, {transform_indices = @transform_7, window_bounds = array<i64: 1, 16, 128>}]} {
    %c128_i32 = arith.constant 128 : i32
    %0 = arith.muli %arg0, %c128_i32 : i32
    %c128_i32_0 = arith.constant 128 : i32
    %1 = arith.subi %0, %c128_i32_0 : i32
    %2 = tpu.iota {dimensions = array<i32: 1>} : vector<1x128xi32>
    %3 = vector.broadcast %1 : i32 to vector<1x128xi32>
    %4 = arith.addi %3, %2 : vector<1x128xi32>
    %c0_i32 = arith.constant 0 : i32
    %5 = vector.broadcast %c0_i32 : i32 to vector<1x128xi32>
    %6 = arith.cmpi sge, %4, %5 : vector<1x128xi32>
    %c0 = arith.constant 0 : index
    %c0_1 = arith.constant 0 : index
    %c0_2 = arith.constant 0 : index
    %7 = vector.load %arg2[%c0, %c0_1, %c0_2] : memref<1x16x128xf32, #tpu.memory_space<vmem>>, vector<1x16x128xf32>
    %8 = vector.shape_cast %7 : vector<1x16x128xf32> to vector<16x128xf32>
    %cst = arith.constant 0.000000e+00 : f32
    %9 = vector.shape_cast %6 : vector<1x128xi1> to vector<1x128xi1>
    %10 = vector.broadcast %9 : vector<1x128xi1> to vector<16x128xi1>
    %11 = vector.broadcast %cst : f32 to vector<16x128xf32>
    %12 = arith.select %10, %8, %11 : vector<16x128xi1>, vector<16x128xf32>
    %c0_3 = arith.constant 0 : index
    %c0_4 = arith.constant 0 : index
    %13 = vector.load %arg10[%c0_3, %c0_4] : memref<16x384xf32, #tpu.memory_space<vmem>>, vector<16x128xf32>
    tpu.vector_store %arg10[%c0_3, %c0_4], %12 {strides = array<i32>} : memref<16x384xf32, #tpu.memory_space<vmem>>, vector<16x128xf32>,
    %c0_5 = arith.constant 0 : index
    %c0_6 = arith.constant 0 : index
    %c0_7 = arith.constant 0 : index
    %14 = vector.load %arg3[%c0_5, %c0_6, %c0_7] : memref<1x16x128xf32, #tpu.memory_space<vmem>>, vector<1x16x128xf32>
    %15 = vector.shape_cast %14 : vector<1x16x128xf32> to vector<16x128xf32>
    %c0_8 = arith.constant 0 : index
    %c128 = arith.constant 128 : index
    %16 = vector.load %arg10[%c0_8, %c128] : memref<16x384xf32, #tpu.memory_space<vmem>>, vector<16x128xf32>
    tpu.vector_store %arg10[%c0_8, %c128], %15 {strides = array<i32>} : memref<16x384xf32, #tpu.memory_space<vmem>>, vector<16x128xf32>,
    %c1_i32 = arith.constant 1 : i32
    %17 = arith.addi %arg0, %c1_i32 : i32
    %c128_i32_9 = arith.constant 128 : i32
    %18 = arith.muli %17, %c128_i32_9 : i32
    %19 = tpu.iota {dimensions = array<i32: 1>} : vector<1x128xi32>
    %20 = vector.broadcast %18 : i32 to vector<1x128xi32>
    %21 = arith.addi %20, %19 : vector<1x128xi32>
    %c256_i32 = arith.constant 256 : i32
    %22 = vector.broadcast %c256_i32 : i32 to vector<1x128xi32>
    %23 = arith.cmpi slt, %21, %22 : vector<1x128xi32>
    %c0_10 = arith.constant 0 : index
    %c0_11 = arith.constant 0 : index
    %c0_12 = arith.constant 0 : index
    %24 = vector.load %arg4[%c0_10, %c0_11, %c0_12] : memref<1x16x128xf32, #tpu.memory_space<vmem>>, vector<1x16x128xf32>
    %25 = vector.shape_cast %24 : vector<1x16x128xf32> to vector<16x128xf32>
    %cst_13 = arith.constant 0.000000e+00 : f32
    %26 = vector.shape_cast %23 : vector<1x128xi1> to vector<1x128xi1>
    %27 = vector.broadcast %26 : vector<1x128xi1> to vector<16x128xi1>
    %28 = vector.broadcast %cst_13 : f32 to vector<16x128xf32>
    %29 = arith.select %27, %25, %28 : vector<16x128xi1>, vector<16x128xf32>
    %c0_14 = arith.constant 0 : index
    %c256 = arith.constant 256 : index
    %30 = vector.load %arg10[%c0_14, %c256] : memref<16x384xf32, #tpu.memory_space<vmem>>, vector<16x128xf32>
    tpu.vector_store %arg10[%c0_14, %c256], %29 {strides = array<i32>} : memref<16x384xf32, #tpu.memory_space<vmem>>, vector<16x128xf32>,
    %c1_i32_15 = arith.constant 1 : i32
    %31 = arith.addi %arg0, %c1_i32_15 : i32
    %c128_i32_16 = arith.constant 128 : i32
    %32 = arith.muli %31, %c128_i32_16 : i32
    %c256_i32_17 = arith.constant 256 : i32
    %33 = arith.cmpi sgt, %32, %c256_i32_17 : i32
    %34 = arith.extui %33 : i1 to i32
    %c0_i32_18 = arith.constant 0 : i32
    %35 = arith.cmpi ne, %34, %c0_i32_18 : i32
    scf.if %35 {
      %c128_i32_65 = arith.constant 128 : i32
      %97 = arith.muli %arg0, %c128_i32_65 : i32
      %98 = tpu.iota {dimensions = array<i32: 1>} : vector<1x128xi32>
      %99 = vector.broadcast %97 : i32 to vector<1x128xi32>
      %100 = arith.addi %99, %98 : vector<1x128xi32>
      %c256_i32_66 = arith.constant 256 : i32
      %101 = vector.broadcast %c256_i32_66 : i32 to vector<1x128xi32>
      %102 = arith.cmpi slt, %100, %101 : vector<1x128xi32>
      %c0_67 = arith.constant 0 : index
      %c128_68 = arith.constant 128 : index
      %103 = vector.load %arg10[%c0_67, %c128_68] : memref<16x384xf32, #tpu.memory_space<vmem>>, vector<16x128xf32>
      %c0_i32_69 = arith.constant 0 : i32
      %104 = arith.sitofp %c0_i32_69 : i32 to f32
      %105 = vector.shape_cast %102 : vector<1x128xi1> to vector<1x128xi1>
      %106 = vector.broadcast %105 : vector<1x128xi1> to vector<16x128xi1>
      %107 = vector.broadcast %104 : f32 to vector<16x128xf32>
      %108 = arith.select %106, %103, %107 : vector<16x128xi1>, vector<16x128xf32>
      %c0_70 = arith.constant 0 : index
      %c128_71 = arith.constant 128 : index
      %109 = vector.load %arg10[%c0_70, %c128_71] : memref<16x384xf32, #tpu.memory_space<vmem>>, vector<16x128xf32>
      tpu.vector_store %arg10[%c0_70, %c128_71], %108 {strides = array<i32>} : memref<16x384xf32, #tpu.memory_space<vmem>>, vector<16x128xf32>,
    } else {
    }
    %c0_19 = arith.constant 0 : index
    %c0_20 = arith.constant 0 : index
    %36 = vector.load %arg10[%c0_19, %c0_20] : memref<16x384xf32, #tpu.memory_space<vmem>>, vector<16x384xf32>
    %c260_i32 = arith.constant 260 : i32
    %37 = tpu.dynamic_rotate %36 by %c260_i32 dim 1 : vector<16x384xf32>, i32 -> vector<16x384xf32>
    %38 = vector.extract_strided_slice %37 {offsets = [0, 0], sizes = [16, 256], strides = [1, 1]} : vector<16x384xf32> to vector<16x256xf32>
    %c0_21 = arith.constant 0 : index
    %c0_22 = arith.constant 0 : index
    %c0_23 = arith.constant 0 : index
    %39 = vector.load %arg5[%c0_21, %c0_22, %c0_23] : memref<3x16x16xf32, #tpu.memory_space<vmem>>, vector<1x16x16xf32>
    %40 = vector.shape_cast %39 : vector<1x16x16xf32> to vector<16x16xf32>
    %cst_24 = arith.constant dense<0.000000e+00> : vector<16x256xf32>
    %41 = tpu.matmul %40, %38, %cst_24 {dimension_numbers = #tpu.dot_dimension_numbers<[1], [0], [0], [1], [0, 0, 1, 1], [], []>} : vector<16x16xf32>, vector<16x256xf32>, vector<16x256xf32> -> vector<16x256xf32>
    %c258_i32 = arith.constant 258 : i32
    %42 = tpu.dynamic_rotate %36 by %c258_i32 dim 1 : vector<16x384xf32>, i32 -> vector<16x384xf32>
    %43 = vector.extract_strided_slice %42 {offsets = [0, 0], sizes = [16, 256], strides = [1, 1]} : vector<16x384xf32> to vector<16x256xf32>
    %c1 = arith.constant 1 : index
    %c0_25 = arith.constant 0 : index
    %c0_26 = arith.constant 0 : index
    %44 = vector.load %arg5[%c1, %c0_25, %c0_26] : memref<3x16x16xf32, #tpu.memory_space<vmem>>, vector<1x16x16xf32>
    %45 = vector.shape_cast %44 : vector<1x16x16xf32> to vector<16x16xf32>
    %cst_27 = arith.constant dense<0.000000e+00> : vector<16x256xf32>
    %46 = tpu.matmul %45, %43, %cst_27 {dimension_numbers = #tpu.dot_dimension_numbers<[1], [0], [0], [1], [0, 0, 1, 1], [], []>} : vector<16x16xf32>, vector<16x256xf32>, vector<16x256xf32> -> vector<16x256xf32>
    %47 = arith.addf %41, %46 : vector<16x256xf32>
    %c256_i32_28 = arith.constant 256 : i32
    %48 = tpu.dynamic_rotate %36 by %c256_i32_28 dim 1 : vector<16x384xf32>, i32 -> vector<16x384xf32>
    %49 = vector.extract_strided_slice %48 {offsets = [0, 0], sizes = [16, 256], strides = [1, 1]} : vector<16x384xf32> to vector<16x256xf32>
    %c2 = arith.constant 2 : index
    %c0_29 = arith.constant 0 : index
    %c0_30 = arith.constant 0 : index
    %50 = vector.load %arg5[%c2, %c0_29, %c0_30] : memref<3x16x16xf32, #tpu.memory_space<vmem>>, vector<1x16x16xf32>
    %51 = vector.shape_cast %50 : vector<1x16x16xf32> to vector<16x16xf32>
    %cst_31 = arith.constant dense<0.000000e+00> : vector<16x256xf32>
    %52 = tpu.matmul %51, %49, %cst_31 {dimension_numbers = #tpu.dot_dimension_numbers<[1], [0], [0], [1], [0, 0, 1, 1], [], []>} : vector<16x16xf32>, vector<16x256xf32>, vector<16x256xf32> -> vector<16x256xf32>
    %53 = arith.addf %47, %52 : vector<16x256xf32>
    %c0_32 = arith.constant 0 : index
    %c0_33 = arith.constant 0 : index
    %54 = vector.load %arg6[%c0_32, %c0_33] : memref<16x1xf32, #tpu.memory_space<vmem>>, vector<16x1xf32>
    %55 = vector.broadcast %54 : vector<16x1xf32> to vector<16x256xf32>
    %56 = arith.addf %53, %55 : vector<16x256xf32>
    %cst_34 = arith.constant 0.000000e+00 : f32
    %57 = vector.broadcast %cst_34 : f32 to vector<16x256xf32>
    %58 = arith.cmpf oge, %56, %57 : vector<16x256xf32>
    %cst_35 = arith.constant 0.00999999977 : f32
    %59 = vector.broadcast %cst_35 : f32 to vector<16x256xf32>
    %60 = arith.mulf %59, %56 : vector<16x256xf32>
    %61 = arith.select %58, %56, %60 : vector<16x256xi1>, vector<16x256xf32>
    %c0_36 = arith.constant 0 : index
    %c0_37 = arith.constant 0 : index
    %62 = vector.load %arg11[%c0_36, %c0_37] : memref<16x256xf32, #tpu.memory_space<vmem>>, vector<16x256xf32>
    tpu.vector_store %arg11[%c0_36, %c0_37], %61 {strides = array<i32>} : memref<16x256xf32, #tpu.memory_space<vmem>>, vector<16x256xf32>,
    %c0_i32_38 = arith.constant 0 : i32
    %63 = arith.cmpi eq, %arg0, %c0_i32_38 : i32
    %c1_i32_39 = arith.constant 1 : i32
    %64 = arith.addi %arg0, %c1_i32_39 : i32
    %c128_i32_40 = arith.constant 128 : i32
    %65 = arith.muli %64, %c128_i32_40 : i32
    %c2_i32 = arith.constant 2 : i32
    %66 = arith.addi %65, %c2_i32 : i32
    %c256_i32_41 = arith.constant 256 : i32
    %67 = arith.cmpi sgt, %66, %c256_i32_41 : i32
    %68 = arith.ori %63, %67 : i1
    %69 = arith.extui %68 : i1 to i32
    %c0_i32_42 = arith.constant 0 : i32
    %70 = arith.cmpi ne, %69, %c0_i32_42 : i32
    scf.if %70 {
      %c128_i32_65 = arith.constant 128 : i32
      %97 = arith.muli %arg0, %c128_i32_65 : i32
      %c2_i32_66 = arith.constant 2 : i32
      %98 = arith.subi %97, %c2_i32_66 : i32
      %99 = tpu.iota {dimensions = array<i32: 1>} : vector<1x256xi32>
      %100 = vector.broadcast %98 : i32 to vector<1x256xi32>
      %101 = arith.addi %100, %99 : vector<1x256xi32>
      %c0_i32_67 = arith.constant 0 : i32
      %102 = vector.broadcast %c0_i32_67 : i32 to vector<1x256xi32>
      %103 = arith.cmpi sge, %101, %102 : vector<1x256xi32>
      %c256_i32_68 = arith.constant 256 : i32
      %104 = vector.broadcast %c256_i32_68 : i32 to vector<1x256xi32>
      %105 = arith.cmpi slt, %101, %104 : vector<1x256xi32>
      %106 = arith.andi %103, %105 : vector<1x256xi1>
      %c0_69 = arith.constant 0 : index
      %c0_70 = arith.constant 0 : index
      %107 = vector.load %arg11[%c0_69, %c0_70] : memref<16x256xf32, #tpu.memory_space<vmem>>, vector<16x256xf32>
      %c0_i32_71 = arith.constant 0 : i32
      %108 = arith.sitofp %c0_i32_71 : i32 to f32
      %109 = vector.shape_cast %106 : vector<1x256xi1> to vector<1x256xi1>
      %110 = vector.broadcast %109 : vector<1x256xi1> to vector<16x256xi1>
      %111 = vector.broadcast %108 : f32 to vector<16x256xf32>
      %112 = arith.select %110, %107, %111 : vector<16x256xi1>, vector<16x256xf32>
      %c0_72 = arith.constant 0 : index
      %c0_73 = arith.constant 0 : index
      %113 = vector.load %arg11[%c0_72, %c0_73] : memref<16x256xf32, #tpu.memory_space<vmem>>, vector<16x256xf32>
      tpu.vector_store %arg11[%c0_72, %c0_73], %112 {strides = array<i32>} : memref<16x256xf32, #tpu.memory_space<vmem>>, vector<16x256xf32>,
    } else {
    }
    %c0_43 = arith.constant 0 : index
    %c0_44 = arith.constant 0 : index
    %71 = vector.load %arg11[%c0_43, %c0_44] : memref<16x256xf32, #tpu.memory_space<vmem>>, vector<16x256xf32>
    %72 = vector.extract_strided_slice %71 {offsets = [0, 0], sizes = [16, 128], strides = [1, 1]} : vector<16x256xf32> to vector<16x128xf32>
    %c0_45 = arith.constant 0 : index
    %c0_46 = arith.constant 0 : index
    %c0_47 = arith.constant 0 : index
    %73 = vector.load %arg7[%c0_45, %c0_46, %c0_47] : memref<3x16x16xf32, #tpu.memory_space<vmem>>, vector<1x16x16xf32>
    %74 = vector.shape_cast %73 : vector<1x16x16xf32> to vector<16x16xf32>
    %cst_48 = arith.constant dense<0.000000e+00> : vector<16x128xf32>
    %75 = tpu.matmul %74, %72, %cst_48 {dimension_numbers = #tpu.dot_dimension_numbers<[1], [0], [0], [1], [0, 0, 1, 1], [], []>} : vector<16x16xf32>, vector<16x128xf32>, vector<16x128xf32> -> vector<16x128xf32>
    %c254_i32 = arith.constant 254 : i32
    %76 = tpu.dynamic_rotate %71 by %c254_i32 dim 1 : vector<16x256xf32>, i32 -> vector<16x256xf32>
    %77 = vector.extract_strided_slice %76 {offsets = [0, 0], sizes = [16, 128], strides = [1, 1]} : vector<16x256xf32> to vector<16x128xf32>
    %c1_49 = arith.constant 1 : index
    %c0_50 = arith.constant 0 : index
    %c0_51 = arith.constant 0 : index
    %78 = vector.load %arg7[%c1_49, %c0_50, %c0_51] : memref<3x16x16xf32, #tpu.memory_space<vmem>>, vector<1x16x16xf32>
    %79 = vector.shape_cast %78 : vector<1x16x16xf32> to vector<16x16xf32>
    %cst_52 = arith.constant dense<0.000000e+00> : vector<16x128xf32>
    %80 = tpu.matmul %79, %77, %cst_52 {dimension_numbers = #tpu.dot_dimension_numbers<[1], [0], [0], [1], [0, 0, 1, 1], [], []>} : vector<16x16xf32>, vector<16x128xf32>, vector<16x128xf32> -> vector<16x128xf32>
    %81 = arith.addf %75, %80 : vector<16x128xf32>
    %c252_i32 = arith.constant 252 : i32
    %82 = tpu.dynamic_rotate %71 by %c252_i32 dim 1 : vector<16x256xf32>, i32 -> vector<16x256xf32>
    %83 = vector.extract_strided_slice %82 {offsets = [0, 0], sizes = [16, 128], strides = [1, 1]} : vector<16x256xf32> to vector<16x128xf32>
    %c2_53 = arith.constant 2 : index
    %c0_54 = arith.constant 0 : index
    %c0_55 = arith.constant 0 : index
    %84 = vector.load %arg7[%c2_53, %c0_54, %c0_55] : memref<3x16x16xf32, #tpu.memory_space<vmem>>, vector<1x16x16xf32>
    %85 = vector.shape_cast %84 : vector<1x16x16xf32> to vector<16x16xf32>
    %cst_56 = arith.constant dense<0.000000e+00> : vector<16x128xf32>
    %86 = tpu.matmul %85, %83, %cst_56 {dimension_numbers = #tpu.dot_dimension_numbers<[1], [0], [0], [1], [0, 0, 1, 1], [], []>} : vector<16x16xf32>, vector<16x128xf32>, vector<16x128xf32> -> vector<16x128xf32>
    %87 = arith.addf %81, %86 : vector<16x128xf32>
    %c0_57 = arith.constant 0 : index
    %c0_58 = arith.constant 0 : index
    %c0_59 = arith.constant 0 : index
    %88 = vector.load %arg3[%c0_57, %c0_58, %c0_59] : memref<1x16x128xf32, #tpu.memory_space<vmem>>, vector<1x16x128xf32>
    %89 = vector.shape_cast %88 : vector<1x16x128xf32> to vector<16x128xf32>
    %90 = arith.addf %89, %87 : vector<16x128xf32>
    %c0_60 = arith.constant 0 : index
    %c0_61 = arith.constant 0 : index
    %91 = vector.load %arg8[%c0_60, %c0_61] : memref<16x1xf32, #tpu.memory_space<vmem>>, vector<16x1xf32>
    %92 = vector.broadcast %91 : vector<16x1xf32> to vector<16x128xf32>
    %93 = arith.addf %90, %92 : vector<16x128xf32>
    %c0_62 = arith.constant 0 : index
    %c0_63 = arith.constant 0 : index
    %c0_64 = arith.constant 0 : index
    %94 = vector.load %arg9[%c0_62, %c0_63, %c0_64] : memref<1x16x128xf32, #tpu.memory_space<vmem>>, vector<1x16x128xf32>
    %95 = vector.shape_cast %94 : vector<1x16x128xf32> to vector<16x128xf32>
    %96 = vector.shape_cast %93 : vector<16x128xf32> to vector<1x16x128xf32>
    tpu.vector_store %arg9[%c0_62, %c0_63, %c0_64], %96 {strides = array<i32>} : memref<1x16x128xf32, #tpu.memory_space<vmem>>, vector<1x16x128xf32>,
    return
  }
  func.func @transform_0(%arg0: i32, %arg1: i32) -> (i32, i32, i32) {
    %c1_i32 = arith.constant 1 : i32
    %0 = arith.muli %arg0, %c1_i32 : i32
    %c1_i32_0 = arith.constant 1 : i32
    %1 = arith.subi %0, %c1_i32_0 : i32
    %c0_i32 = arith.constant 0 : i32
    %2 = arith.maxsi %1, %c0_i32 : i32
    %c0_i32_1 = arith.constant 0 : i32
    %c0_i32_2 = arith.constant 0 : i32
    return %arg1, %c0_i32_1, %2 : i32, i32, i32
  }
  func.func @transform_1(%arg0: i32, %arg1: i32) -> (i32, i32, i32) {
    %c0_i32 = arith.constant 0 : i32
    %c0_i32_0 = arith.constant 0 : i32
    return %arg1, %c0_i32, %arg0 : i32, i32, i32
  }
  func.func @transform_2(%arg0: i32, %arg1: i32) -> (i32, i32, i32) {
    %c1_i32 = arith.constant 1 : i32
    %0 = arith.addi %arg0, %c1_i32 : i32
    %c1_i32_0 = arith.constant 1 : i32
    %1 = arith.muli %0, %c1_i32_0 : i32
    %c1_i32_1 = arith.constant 1 : i32
    %2 = arith.minsi %1, %c1_i32_1 : i32
    %c0_i32 = arith.constant 0 : i32
    %c0_i32_2 = arith.constant 0 : i32
    return %arg1, %c0_i32, %2 : i32, i32, i32
  }
  func.func @transform_3(%arg0: i32, %arg1: i32) -> (i32, i32, i32) {
    %c0_i32 = arith.constant 0 : i32
    %c0_i32_0 = arith.constant 0 : i32
    %c0_i32_1 = arith.constant 0 : i32
    %c0_i32_2 = arith.constant 0 : i32
    return %c0_i32, %c0_i32_0, %c0_i32_1 : i32, i32, i32
  }
  func.func @transform_4(%arg0: i32, %arg1: i32) -> (i32, i32) {
    %c0_i32 = arith.constant 0 : i32
    %c0_i32_0 = arith.constant 0 : i32
    %c0_i32_1 = arith.constant 0 : i32
    return %c0_i32, %c0_i32_0 : i32, i32
  }
  func.func @transform_5(%arg0: i32, %arg1: i32) -> (i32, i32, i32) {
    %c0_i32 = arith.constant 0 : i32
    %c0_i32_0 = arith.constant 0 : i32
    %c0_i32_1 = arith.constant 0 : i32
    %c0_i32_2 = arith.constant 0 : i32
    return %c0_i32, %c0_i32_0, %c0_i32_1 : i32, i32, i32
  }
  func.func @transform_6(%arg0: i32, %arg1: i32) -> (i32, i32) {
    %c0_i32 = arith.constant 0 : i32
    %c0_i32_0 = arith.constant 0 : i32
    %c0_i32_1 = arith.constant 0 : i32
    return %c0_i32, %c0_i32_0 : i32, i32
  }
  func.func @transform_7(%arg0: i32, %arg1: i32) -> (i32, i32, i32) {
    %c0_i32 = arith.constant 0 : i32
    %c0_i32_0 = arith.constant 0 : i32
    return %arg1, %c0_i32, %arg0 : i32, i32, i32
  }
}

module attributes {stable_mosaic.version = 11 : i64} {
  func.func @_resblock_kernel(%arg0: i32, %arg1: i32, %arg2: memref<1x16x128xf32, #tpu.memory_space<vmem>>, %arg3: memref<1x16x128xf32, #tpu.memory_space<vmem>>, %arg4: memref<1x16x128xf32, #tpu.memory_space<vmem>>, %arg5: memref<3x16x16xf32, #tpu.memory_space<vmem>>, %arg6: memref<16x1xf32, #tpu.memory_space<vmem>>, %arg7: memref<3x16x16xf32, #tpu.memory_space<vmem>>, %arg8: memref<16x1xf32, #tpu.memory_space<vmem>>, %arg9: memref<1x16x128xf32, #tpu.memory_space<vmem>>, %arg10: memref<16x384xf32, #tpu.memory_space<vmem>>, %arg11: memref<16x256xf32, #tpu.memory_space<vmem>>) attributes {dimension_semantics = [#tpu.dimension_semantics<parallel>, #tpu.dimension_semantics<parallel>], iteration_bounds = array<i64: 2, 2>, scalar_prefetch = 0 : i64, scratch_operands = 2 : i64, tpu.core_type = #tpu.core_type<tc>, window_params = [{transform_indices = @transform_0, window_bounds = array<i64: 1, 16, 128>}, {transform_indices = @transform_1, window_bounds = array<i64: 1, 16, 128>}, {transform_indices = @transform_2, window_bounds = array<i64: 1, 16, 128>}, {pipeline_mode = #tpu.pipeline_mode<synchronous>, transform_indices = @transform_3, window_bounds = array<i64: 3, 16, 16>}, {pipeline_mode = #tpu.pipeline_mode<synchronous>, transform_indices = @transform_4, window_bounds = array<i64: 16, 1>}, {pipeline_mode = #tpu.pipeline_mode<synchronous>, transform_indices = @transform_5, window_bounds = array<i64: 3, 16, 16>}, {pipeline_mode = #tpu.pipeline_mode<synchronous>, transform_indices = @transform_6, window_bounds = array<i64: 16, 1>}, {transform_indices = @transform_7, window_bounds = array<i64: 1, 16, 128>}]} {
    %c128_i32 = arith.constant 128 : i32
    %0 = arith.muli %arg0, %c128_i32 : i32
    %c128_i32_0 = arith.constant 128 : i32
    %1 = arith.subi %0, %c128_i32_0 : i32
    %2 = tpu.iota {dimensions = array<i32: 1>} : vector<1x128xi32>
    %3 = vector.broadcast %1 : i32 to vector<1x128xi32>
    %4 = arith.addi %3, %2 : vector<1x128xi32>
    %c0_i32 = arith.constant 0 : i32
    %5 = vector.broadcast %c0_i32 : i32 to vector<1x128xi32>
    %6 = arith.cmpi sge, %4, %5 : vector<1x128xi32>
    %c0 = arith.constant 0 : index
    %c0_1 = arith.constant 0 : index
    %c0_2 = arith.constant 0 : index
    %7 = vector.load %arg2[%c0, %c0_1, %c0_2] : memref<1x16x128xf32, #tpu.memory_space<vmem>>, vector<1x16x128xf32>
    %8 = vector.shape_cast %7 : vector<1x16x128xf32> to vector<16x128xf32>
    %cst = arith.constant 0.000000e+00 : f32
    %9 = vector.shape_cast %6 : vector<1x128xi1> to vector<1x128xi1>
    %10 = vector.broadcast %9 : vector<1x128xi1> to vector<16x128xi1>
    %11 = vector.broadcast %cst : f32 to vector<16x128xf32>
    %12 = arith.select %10, %8, %11 : vector<16x128xi1>, vector<16x128xf32>
    %c0_3 = arith.constant 0 : index
    %c0_4 = arith.constant 0 : index
    %13 = vector.load %arg10[%c0_3, %c0_4] : memref<16x384xf32, #tpu.memory_space<vmem>>, vector<16x128xf32>
    tpu.vector_store %arg10[%c0_3, %c0_4], %12 {strides = array<i32>} : memref<16x384xf32, #tpu.memory_space<vmem>>, vector<16x128xf32>,
    %c0_5 = arith.constant 0 : index
    %c0_6 = arith.constant 0 : index
    %c0_7 = arith.constant 0 : index
    %14 = vector.load %arg3[%c0_5, %c0_6, %c0_7] : memref<1x16x128xf32, #tpu.memory_space<vmem>>, vector<1x16x128xf32>
    %15 = vector.shape_cast %14 : vector<1x16x128xf32> to vector<16x128xf32>
    %c0_8 = arith.constant 0 : index
    %c128 = arith.constant 128 : index
    %16 = vector.load %arg10[%c0_8, %c128] : memref<16x384xf32, #tpu.memory_space<vmem>>, vector<16x128xf32>
    tpu.vector_store %arg10[%c0_8, %c128], %15 {strides = array<i32>} : memref<16x384xf32, #tpu.memory_space<vmem>>, vector<16x128xf32>,
    %c1_i32 = arith.constant 1 : i32
    %17 = arith.addi %arg0, %c1_i32 : i32
    %c128_i32_9 = arith.constant 128 : i32
    %18 = arith.muli %17, %c128_i32_9 : i32
    %19 = tpu.iota {dimensions = array<i32: 1>} : vector<1x128xi32>
    %20 = vector.broadcast %18 : i32 to vector<1x128xi32>
    %21 = arith.addi %20, %19 : vector<1x128xi32>
    %c256_i32 = arith.constant 256 : i32
    %22 = vector.broadcast %c256_i32 : i32 to vector<1x128xi32>
    %23 = arith.cmpi slt, %21, %22 : vector<1x128xi32>
    %c0_10 = arith.constant 0 : index
    %c0_11 = arith.constant 0 : index
    %c0_12 = arith.constant 0 : index
    %24 = vector.load %arg4[%c0_10, %c0_11, %c0_12] : memref<1x16x128xf32, #tpu.memory_space<vmem>>, vector<1x16x128xf32>
    %25 = vector.shape_cast %24 : vector<1x16x128xf32> to vector<16x128xf32>
    %cst_13 = arith.constant 0.000000e+00 : f32
    %26 = vector.shape_cast %23 : vector<1x128xi1> to vector<1x128xi1>
    %27 = vector.broadcast %26 : vector<1x128xi1> to vector<16x128xi1>
    %28 = vector.broadcast %cst_13 : f32 to vector<16x128xf32>
    %29 = arith.select %27, %25, %28 : vector<16x128xi1>, vector<16x128xf32>
    %c0_14 = arith.constant 0 : index
    %c256 = arith.constant 256 : index
    %30 = vector.load %arg10[%c0_14, %c256] : memref<16x384xf32, #tpu.memory_space<vmem>>, vector<16x128xf32>
    tpu.vector_store %arg10[%c0_14, %c256], %29 {strides = array<i32>} : memref<16x384xf32, #tpu.memory_space<vmem>>, vector<16x128xf32>,
    %c1_i32_15 = arith.constant 1 : i32
    %31 = arith.addi %arg0, %c1_i32_15 : i32
    %c128_i32_16 = arith.constant 128 : i32
    %32 = arith.muli %31, %c128_i32_16 : i32
    %c256_i32_17 = arith.constant 256 : i32
    %33 = arith.cmpi sgt, %32, %c256_i32_17 : i32
    %34 = arith.extui %33 : i1 to i32
    %c0_i32_18 = arith.constant 0 : i32
    %35 = arith.cmpi ne, %34, %c0_i32_18 : i32
    scf.if %35 {
      %c128_i32_65 = arith.constant 128 : i32
      %97 = arith.muli %arg0, %c128_i32_65 : i32
      %98 = tpu.iota {dimensions = array<i32: 1>} : vector<1x128xi32>
      %99 = vector.broadcast %97 : i32 to vector<1x128xi32>
      %100 = arith.addi %99, %98 : vector<1x128xi32>
      %c256_i32_66 = arith.constant 256 : i32
      %101 = vector.broadcast %c256_i32_66 : i32 to vector<1x128xi32>
      %102 = arith.cmpi slt, %100, %101 : vector<1x128xi32>
      %c0_67 = arith.constant 0 : index
      %c128_68 = arith.constant 128 : index
      %103 = vector.load %arg10[%c0_67, %c128_68] : memref<16x384xf32, #tpu.memory_space<vmem>>, vector<16x128xf32>
      %c0_i32_69 = arith.constant 0 : i32
      %104 = arith.sitofp %c0_i32_69 : i32 to f32
      %105 = vector.shape_cast %102 : vector<1x128xi1> to vector<1x128xi1>
      %106 = vector.broadcast %105 : vector<1x128xi1> to vector<16x128xi1>
      %107 = vector.broadcast %104 : f32 to vector<16x128xf32>
      %108 = arith.select %106, %103, %107 : vector<16x128xi1>, vector<16x128xf32>
      %c0_70 = arith.constant 0 : index
      %c128_71 = arith.constant 128 : index
      %109 = vector.load %arg10[%c0_70, %c128_71] : memref<16x384xf32, #tpu.memory_space<vmem>>, vector<16x128xf32>
      tpu.vector_store %arg10[%c0_70, %c128_71], %108 {strides = array<i32>} : memref<16x384xf32, #tpu.memory_space<vmem>>, vector<16x128xf32>,
    } else {
    }
    %c0_19 = arith.constant 0 : index
    %c0_20 = arith.constant 0 : index
    %36 = vector.load %arg10[%c0_19, %c0_20] : memref<16x384xf32, #tpu.memory_space<vmem>>, vector<16x384xf32>
    %c260_i32 = arith.constant 260 : i32
    %37 = tpu.dynamic_rotate %36 by %c260_i32 dim 1 : vector<16x384xf32>, i32 -> vector<16x384xf32>
    %38 = vector.extract_strided_slice %37 {offsets = [0, 0], sizes = [16, 256], strides = [1, 1]} : vector<16x384xf32> to vector<16x256xf32>
    %c0_21 = arith.constant 0 : index
    %c0_22 = arith.constant 0 : index
    %c0_23 = arith.constant 0 : index
    %39 = vector.load %arg5[%c0_21, %c0_22, %c0_23] : memref<3x16x16xf32, #tpu.memory_space<vmem>>, vector<1x16x16xf32>
    %40 = vector.shape_cast %39 : vector<1x16x16xf32> to vector<16x16xf32>
    %cst_24 = arith.constant dense<0.000000e+00> : vector<16x256xf32>
    %41 = tpu.matmul %40, %38, %cst_24 {dimension_numbers = #tpu.dot_dimension_numbers<[1], [0], [0], [1], [0, 0, 1, 1], [], []>} : vector<16x16xf32>, vector<16x256xf32>, vector<16x256xf32> -> vector<16x256xf32>
    %c258_i32 = arith.constant 258 : i32
    %42 = tpu.dynamic_rotate %36 by %c258_i32 dim 1 : vector<16x384xf32>, i32 -> vector<16x384xf32>
    %43 = vector.extract_strided_slice %42 {offsets = [0, 0], sizes = [16, 256], strides = [1, 1]} : vector<16x384xf32> to vector<16x256xf32>
    %c1 = arith.constant 1 : index
    %c0_25 = arith.constant 0 : index
    %c0_26 = arith.constant 0 : index
    %44 = vector.load %arg5[%c1, %c0_25, %c0_26] : memref<3x16x16xf32, #tpu.memory_space<vmem>>, vector<1x16x16xf32>
    %45 = vector.shape_cast %44 : vector<1x16x16xf32> to vector<16x16xf32>
    %cst_27 = arith.constant dense<0.000000e+00> : vector<16x256xf32>
    %46 = tpu.matmul %45, %43, %cst_27 {dimension_numbers = #tpu.dot_dimension_numbers<[1], [0], [0], [1], [0, 0, 1, 1], [], []>} : vector<16x16xf32>, vector<16x256xf32>, vector<16x256xf32> -> vector<16x256xf32>
    %47 = arith.addf %41, %46 : vector<16x256xf32>
    %c256_i32_28 = arith.constant 256 : i32
    %48 = tpu.dynamic_rotate %36 by %c256_i32_28 dim 1 : vector<16x384xf32>, i32 -> vector<16x384xf32>
    %49 = vector.extract_strided_slice %48 {offsets = [0, 0], sizes = [16, 256], strides = [1, 1]} : vector<16x384xf32> to vector<16x256xf32>
    %c2 = arith.constant 2 : index
    %c0_29 = arith.constant 0 : index
    %c0_30 = arith.constant 0 : index
    %50 = vector.load %arg5[%c2, %c0_29, %c0_30] : memref<3x16x16xf32, #tpu.memory_space<vmem>>, vector<1x16x16xf32>
    %51 = vector.shape_cast %50 : vector<1x16x16xf32> to vector<16x16xf32>
    %cst_31 = arith.constant dense<0.000000e+00> : vector<16x256xf32>
    %52 = tpu.matmul %51, %49, %cst_31 {dimension_numbers = #tpu.dot_dimension_numbers<[1], [0], [0], [1], [0, 0, 1, 1], [], []>} : vector<16x16xf32>, vector<16x256xf32>, vector<16x256xf32> -> vector<16x256xf32>
    %53 = arith.addf %47, %52 : vector<16x256xf32>
    %c0_32 = arith.constant 0 : index
    %c0_33 = arith.constant 0 : index
    %54 = vector.load %arg6[%c0_32, %c0_33] : memref<16x1xf32, #tpu.memory_space<vmem>>, vector<16x1xf32>
    %55 = vector.broadcast %54 : vector<16x1xf32> to vector<16x256xf32>
    %56 = arith.addf %53, %55 : vector<16x256xf32>
    %cst_34 = arith.constant 0.000000e+00 : f32
    %57 = vector.broadcast %cst_34 : f32 to vector<16x256xf32>
    %58 = arith.cmpf oge, %56, %57 : vector<16x256xf32>
    %cst_35 = arith.constant 0.00999999977 : f32
    %59 = vector.broadcast %cst_35 : f32 to vector<16x256xf32>
    %60 = arith.mulf %59, %56 : vector<16x256xf32>
    %61 = arith.select %58, %56, %60 : vector<16x256xi1>, vector<16x256xf32>
    %c0_36 = arith.constant 0 : index
    %c0_37 = arith.constant 0 : index
    %62 = vector.load %arg11[%c0_36, %c0_37] : memref<16x256xf32, #tpu.memory_space<vmem>>, vector<16x256xf32>
    tpu.vector_store %arg11[%c0_36, %c0_37], %61 {strides = array<i32>} : memref<16x256xf32, #tpu.memory_space<vmem>>, vector<16x256xf32>,
    %c0_i32_38 = arith.constant 0 : i32
    %63 = arith.cmpi eq, %arg0, %c0_i32_38 : i32
    %c1_i32_39 = arith.constant 1 : i32
    %64 = arith.addi %arg0, %c1_i32_39 : i32
    %c128_i32_40 = arith.constant 128 : i32
    %65 = arith.muli %64, %c128_i32_40 : i32
    %c2_i32 = arith.constant 2 : i32
    %66 = arith.addi %65, %c2_i32 : i32
    %c256_i32_41 = arith.constant 256 : i32
    %67 = arith.cmpi sgt, %66, %c256_i32_41 : i32
    %68 = arith.ori %63, %67 : i1
    %69 = arith.extui %68 : i1 to i32
    %c0_i32_42 = arith.constant 0 : i32
    %70 = arith.cmpi ne, %69, %c0_i32_42 : i32
    scf.if %70 {
      %c128_i32_65 = arith.constant 128 : i32
      %97 = arith.muli %arg0, %c128_i32_65 : i32
      %c2_i32_66 = arith.constant 2 : i32
      %98 = arith.subi %97, %c2_i32_66 : i32
      %99 = tpu.iota {dimensions = array<i32: 1>} : vector<1x256xi32>
      %100 = vector.broadcast %98 : i32 to vector<1x256xi32>
      %101 = arith.addi %100, %99 : vector<1x256xi32>
      %c0_i32_67 = arith.constant 0 : i32
      %102 = vector.broadcast %c0_i32_67 : i32 to vector<1x256xi32>
      %103 = arith.cmpi sge, %101, %102 : vector<1x256xi32>
      %c256_i32_68 = arith.constant 256 : i32
      %104 = vector.broadcast %c256_i32_68 : i32 to vector<1x256xi32>
      %105 = arith.cmpi slt, %101, %104 : vector<1x256xi32>
      %106 = arith.andi %103, %105 : vector<1x256xi1>
      %c0_69 = arith.constant 0 : index
      %c0_70 = arith.constant 0 : index
      %107 = vector.load %arg11[%c0_69, %c0_70] : memref<16x256xf32, #tpu.memory_space<vmem>>, vector<16x256xf32>
      %c0_i32_71 = arith.constant 0 : i32
      %108 = arith.sitofp %c0_i32_71 : i32 to f32
      %109 = vector.shape_cast %106 : vector<1x256xi1> to vector<1x256xi1>
      %110 = vector.broadcast %109 : vector<1x256xi1> to vector<16x256xi1>
      %111 = vector.broadcast %108 : f32 to vector<16x256xf32>
      %112 = arith.select %110, %107, %111 : vector<16x256xi1>, vector<16x256xf32>
      %c0_72 = arith.constant 0 : index
      %c0_73 = arith.constant 0 : index
      %113 = vector.load %arg11[%c0_72, %c0_73] : memref<16x256xf32, #tpu.memory_space<vmem>>, vector<16x256xf32>
      tpu.vector_store %arg11[%c0_72, %c0_73], %112 {strides = array<i32>} : memref<16x256xf32, #tpu.memory_space<vmem>>, vector<16x256xf32>,
    } else {
    }
    %c0_43 = arith.constant 0 : index
    %c0_44 = arith.constant 0 : index
    %71 = vector.load %arg11[%c0_43, %c0_44] : memref<16x256xf32, #tpu.memory_space<vmem>>, vector<16x256xf32>
    %72 = vector.extract_strided_slice %71 {offsets = [0, 0], sizes = [16, 128], strides = [1, 1]} : vector<16x256xf32> to vector<16x128xf32>
    %c0_45 = arith.constant 0 : index
    %c0_46 = arith.constant 0 : index
    %c0_47 = arith.constant 0 : index
    %73 = vector.load %arg7[%c0_45, %c0_46, %c0_47] : memref<3x16x16xf32, #tpu.memory_space<vmem>>, vector<1x16x16xf32>
    %74 = vector.shape_cast %73 : vector<1x16x16xf32> to vector<16x16xf32>
    %cst_48 = arith.constant dense<0.000000e+00> : vector<16x128xf32>
    %75 = tpu.matmul %74, %72, %cst_48 {dimension_numbers = #tpu.dot_dimension_numbers<[1], [0], [0], [1], [0, 0, 1, 1], [], []>} : vector<16x16xf32>, vector<16x128xf32>, vector<16x128xf32> -> vector<16x128xf32>
    %c254_i32 = arith.constant 254 : i32
    %76 = tpu.dynamic_rotate %71 by %c254_i32 dim 1 : vector<16x256xf32>, i32 -> vector<16x256xf32>
    %77 = vector.extract_strided_slice %76 {offsets = [0, 0], sizes = [16, 128], strides = [1, 1]} : vector<16x256xf32> to vector<16x128xf32>
    %c1_49 = arith.constant 1 : index
    %c0_50 = arith.constant 0 : index
    %c0_51 = arith.constant 0 : index
    %78 = vector.load %arg7[%c1_49, %c0_50, %c0_51] : memref<3x16x16xf32, #tpu.memory_space<vmem>>, vector<1x16x16xf32>
    %79 = vector.shape_cast %78 : vector<1x16x16xf32> to vector<16x16xf32>
    %cst_52 = arith.constant dense<0.000000e+00> : vector<16x128xf32>
    %80 = tpu.matmul %79, %77, %cst_52 {dimension_numbers = #tpu.dot_dimension_numbers<[1], [0], [0], [1], [0, 0, 1, 1], [], []>} : vector<16x16xf32>, vector<16x128xf32>, vector<16x128xf32> -> vector<16x128xf32>
    %81 = arith.addf %75, %80 : vector<16x128xf32>
    %c252_i32 = arith.constant 252 : i32
    %82 = tpu.dynamic_rotate %71 by %c252_i32 dim 1 : vector<16x256xf32>, i32 -> vector<16x256xf32>
    %83 = vector.extract_strided_slice %82 {offsets = [0, 0], sizes = [16, 128], strides = [1, 1]} : vector<16x256xf32> to vector<16x128xf32>
    %c2_53 = arith.constant 2 : index
    %c0_54 = arith.constant 0 : index
    %c0_55 = arith.constant 0 : index
    %84 = vector.load %arg7[%c2_53, %c0_54, %c0_55] : memref<3x16x16xf32, #tpu.memory_space<vmem>>, vector<1x16x16xf32>
    %85 = vector.shape_cast %84 : vector<1x16x16xf32> to vector<16x16xf32>
    %cst_56 = arith.constant dense<0.000000e+00> : vector<16x128xf32>
    %86 = tpu.matmul %85, %83, %cst_56 {dimension_numbers = #tpu.dot_dimension_numbers<[1], [0], [0], [1], [0, 0, 1, 1], [], []>} : vector<16x16xf32>, vector<16x128xf32>, vector<16x128xf32> -> vector<16x128xf32>
    %87 = arith.addf %81, %86 : vector<16x128xf32>
    %c0_57 = arith.constant 0 : index
    %c0_58 = arith.constant 0 : index
    %c0_59 = arith.constant 0 : index
    %88 = vector.load %arg3[%c0_57, %c0_58, %c0_59] : memref<1x16x128xf32, #tpu.memory_space<vmem>>, vector<1x16x128xf32>
    %89 = vector.shape_cast %88 : vector<1x16x128xf32> to vector<16x128xf32>
    %90 = arith.addf %89, %87 : vector<16x128xf32>
    %c0_60 = arith.constant 0 : index
    %c0_61 = arith.constant 0 : index
    %91 = vector.load %arg8[%c0_60, %c0_61] : memref<16x1xf32, #tpu.memory_space<vmem>>, vector<16x1xf32>
    %92 = vector.broadcast %91 : vector<16x1xf32> to vector<16x128xf32>
    %93 = arith.addf %90, %92 : vector<16x128xf32>
    %c0_62 = arith.constant 0 : index
    %c0_63 = arith.constant 0 : index
    %c0_64 = arith.constant 0 : index
    %94 = vector.load %arg9[%c0_62, %c0_63, %c0_64] : memref<1x16x128xf32, #tpu.memory_space<vmem>>, vector<1x16x128xf32>
    %95 = vector.shape_cast %94 : vector<1x16x128xf32> to vector<16x128xf32>
    %96 = vector.shape_cast %93 : vector<16x128xf32> to vector<1x16x128xf32>
    tpu.vector_store %arg9[%c0_62, %c0_63, %c0_64], %96 {strides = array<i32>} : memref<1x16x128xf32, #tpu.memory_space<vmem>>, vector<1x16x128xf32>,
    return
  }
  func.func @transform_0(%arg0: i32, %arg1: i32) -> (i32, i32, i32) {
    %c1_i32 = arith.constant 1 : i32
    %0 = arith.muli %arg0, %c1_i32 : i32
    %c1_i32_0 = arith.constant 1 : i32
    %1 = arith.subi %0, %c1_i32_0 : i32
    %c0_i32 = arith.constant 0 : i32
    %2 = arith.maxsi %1, %c0_i32 : i32
    %c0_i32_1 = arith.constant 0 : i32
    %c0_i32_2 = arith.constant 0 : i32
    return %arg1, %c0_i32_1, %2 : i32, i32, i32
  }
  func.func @transform_1(%arg0: i32, %arg1: i32) -> (i32, i32, i32) {
    %c0_i32 = arith.constant 0 : i32
    %c0_i32_0 = arith.constant 0 : i32
    return %arg1, %c0_i32, %arg0 : i32, i32, i32
  }
  func.func @transform_2(%arg0: i32, %arg1: i32) -> (i32, i32, i32) {
    %c1_i32 = arith.constant 1 : i32
    %0 = arith.addi %arg0, %c1_i32 : i32
    %c1_i32_0 = arith.constant 1 : i32
    %1 = arith.muli %0, %c1_i32_0 : i32
    %c1_i32_1 = arith.constant 1 : i32
    %2 = arith.minsi %1, %c1_i32_1 : i32
    %c0_i32 = arith.constant 0 : i32
    %c0_i32_2 = arith.constant 0 : i32
    return %arg1, %c0_i32, %2 : i32, i32, i32
  }
  func.func @transform_3(%arg0: i32, %arg1: i32) -> (i32, i32, i32) {
    %c0_i32 = arith.constant 0 : i32
    %c0_i32_0 = arith.constant 0 : i32
    %c0_i32_1 = arith.constant 0 : i32
    %c0_i32_2 = arith.constant 0 : i32
    return %c0_i32, %c0_i32_0, %c0_i32_1 : i32, i32, i32
  }
  func.func @transform_4(%arg0: i32, %arg1: i32) -> (i32, i32) {
    %c0_i32 = arith.constant 0 : i32
    %c0_i32_0 = arith.constant 0 : i32
    %c0_i32_1 = arith.constant 0 : i32
    return %c0_i32, %c0_i32_0 : i32, i32
  }
  func.func @transform_5(%arg0: i32, %arg1: i32) -> (i32, i32, i32) {
    %c0_i32 = arith.constant 0 : i32
    %c0_i32_0 = arith.constant 0 : i32
    %c0_i32_1 = arith.constant 0 : i32
    %c0_i32_2 = arith.constant 0 : i32
    return %c0_i32, %c0_i32_0, %c0_i32_1 : i32, i32, i32
  }
  func.func @transform_6(%arg0: i32, %arg1: i32) -> (i32, i32) {
    %c0_i32 = arith.constant 0 : i32
    %c0_i32_0 = arith.constant 0 : i32
    %c0_i32_1 = arith.constant 0 : i32
    return %c0_i32, %c0_i32_0 : i32, i32
  }
  func.func @transform_7(%arg0: i32, %arg1: i32) -> (i32, i32, i32) {
    %c0_i32 = arith.constant 0 : i32
    %c0_i32_0 = arith.constant 0 : i32
    return %arg1, %c0_i32, %arg0 : i32, i32, i32
  }
}

</mosaic_0001>

<llo_original>
// kernel: tpu_custom_call.1
$region0: #{tpu_custom_call.1}
  #allocation0 [shape = 'u32[]', space=smem, size = 0x4, offset = 0x4, fixed_abs, tag = 'smem constant byte address 0x4 - core index']
  #allocation1 [shape = 'u32[144,128]{1,0:T(1,128)}', space=vmem, size = 0x12000, scoped, tag = 'internal scratch']
  #allocation2 [shape = 'f32[16,384]{1,0:T(8,128)}', space=vmem, size = 0x6000, scoped, tag = 'scratch operand']
  #allocation3 [shape = 'f32[16,256]{1,0:T(8,128)}', space=vmem, size = 0x4000, scoped, tag = 'scratch operand']
  %s0 = inlined_call_operand.hbm [shape: f32[2,16,256], index: 0, kind: input, shape index: {}]
  %s1 = inlined_call_operand.hbm [shape: f32[2,16,256], index: 1, kind: input, shape index: {}]
  %s2 = inlined_call_operand.hbm [shape: f32[2,16,256], index: 2, kind: input, shape index: {}]
  %s3 = inlined_call_operand.hbm [shape: f32[3,16,16], index: 3, kind: input, shape index: {}]
  %s4 = inlined_call_operand.vmem [shape: f32[16,1], index: 4, kind: input, shape index: {}]
  %s5 = inlined_call_operand.vmem [shape: f32[3,16,16], index: 5, kind: input, shape index: {}]
  %s6 = inlined_call_operand.vmem [shape: f32[16,1], index: 6, kind: input, shape index: {}]
  %s7 = inlined_call_operand.hbm [shape: f32[2,16,256], index: 7, kind: output, shape index: {}]
  %s8 = sld [smem:[#allocation0]]
  $region85: #{tpu_custom_call.1} parent=0
    _
  %s10 = ssub.s32 1, %s8
  %s11 = scalar_select 0, %s10, %s8
  $region1: #{tpu_custom_call.1} parent=0
    #allocation4 [shape = 'u8[16384]{0}', space=vmem, size = 0x4000, scoped, tag = 'input window, operand 0']
    #allocation5 [shape = 's32[2]{0}', space=sflag, size = 0x8, scoped, tag = 'scoped memory for tpu_custom_call.1']
    #allocation6 [shape = 's32[2]{0}', space=sflag, size = 0x8, scoped, tag = 'scoped memory for tpu_custom_call.1']
    #allocation7 [shape = 'u8[16384]{0}', space=vmem, size = 0x4000, scoped, tag = 'input window, operand 1']
    #allocation8 [shape = 's32[2]{0}', space=sflag, size = 0x8, scoped, tag = 'scoped memory for tpu_custom_call.1']
    #allocation9 [shape = 'u8[16384]{0}', space=vmem, size = 0x4000, scoped, tag = 'input window, operand 2']
    #allocation10 [shape = 'u8[24576]{0}', space=vmem, size = 0x6000, scoped, tag = 'input window, operand 3, single buffered']
    #allocation11 [shape = 's32[1]{0}', space=sflag, size = 0x4, scoped, tag = 'scoped memory for tpu_custom_call.1']
    #allocation12 [shape = 'u8[16384]{0}', space=vmem, size = 0x4000, scoped, tag = 'output window, operand 0']
    %12 = vsyncpa [#allocation5], 0
    %s13 = scalar_lea.sflag [#allocation5], 1
    %14 = vsyncpa %s13, 0
    %15 = vsyncpa [#allocation8], 0
    %s16 = scalar_lea.sflag [#allocation8], 1
    %17 = vsyncpa %s16, 0
    %18 = vsyncpa [#allocation11], 0
    %19 = vsyncpa [#allocation6], 0
    %s20 = scalar_lea.sflag [#allocation6], 1
    %21 = vsyncpa %s20, 0
    loop: start=0, step=1, limit=6
    $region2: #{tpu_custom_call.1} parent=1 // loop_pre_header
      _
    $region3: #{tpu_custom_call.1} parent=1 // loop_header
      %s23 = sphi 0, %s27
      %p24 = scmp.ge.s32.totalorder %s23, 6
      %s30 = sphi 0, %s42
      %s31 = sphi 0, %s38
      %s32 = sphi 0, %s30
      %s33 = sphi 0, %s31
      %s34 = sphi 0, %s32
      %s35 = sphi 0, %s33
      %s53 = sphi 0, %s55
      %s56 = sphi 0, %s53
      %s57 = sphi 0, %s56
      %s73 = sphi 0, %s57
      %s81 = sphi 0, %s83
      %s84 = sphi 0, %s81
      %s85 = sphi 0, %s84
      %s101 = sphi 0, %s85
      %s115 = sphi 0, %s117
      %s118 = sphi 0, %s115
      %s119 = sphi 0, %s118
      %s135 = sphi 0, %s119
      %s139 = sphi 0, %s139
      %s141 = sphi 0, %s139
      %s142 = sphi 0, %s141
      %s156 = sphi 0, %s142
      %s160 = sphi 0, %s160
      %s162 = sphi 0, %s160
      %s163 = sphi 0, %s162
      %s177 = sphi 0, %s163
      %s181 = sphi 0, %s181
      %s183 = sphi 0, %s181
      %s184 = sphi 0, %s183
      %s198 = sphi 0, %s184
      %s202 = sphi 0, %s202
      %s204 = sphi 0, %s202
      %s205 = sphi 0, %s204
      %s219 = sphi 0, %s205
      %s227 = sphi 0, %s229
      %s230 = sphi 0, %s227
      %s231 = sphi 0, %s230
      %s247 = sphi 0, %s231
    $region4: #{tpu_custom_call.1} parent=1 // loop_header_branch
      %26 = sbr.rel (%p24) target = $region8
    $region5: #{tpu_custom_call.1} parent=1 // loop_body
      %s28 = ssub.s32 %s23, 1
      %s29 = ssub.s32 %s23, 2
      %s36 = sadd.s32 1, %s31
      %p37 = scmp.ge.s32.totalorder %s36, 2
      %s38 = scalar_select %p37, 0, %s36
      %s39 = sadd.s32 1, %s30
      %s40 = scalar_select %p37, %s39, %s30
      %p41 = scmp.ge.s32.totalorder %s40, 2
      %s42 = scalar_select %p41, 0, %s40
      %s43 = ssub.s32 %s30, 1
      %p44 = scmp.gt.s32.totalorder %s43, 0
      %s45 = scalar_select %p44, %s43, 0
      %s46 = ssub.s32 %s42, 1
      %p47 = scmp.gt.s32.totalorder %s46, 0
      %s48 = scalar_select %p47, %s46, 0
      %s49 = ssub.s32 %s31, %s38
      %s50 = ssub.s32 %s45, %s48
      %s51 = sor.u32 %s49, %s50
      %p52 = scmp.eq.s32.totalorder %s51, 0
      %s54 = sadd.s32 %s53, 1
      %s55 = scalar_select %p52, %s53, %s54
      %p58 = pneg %p52
      %p59 = scmp.eq.s32.totalorder %s23, 3
      %p60 = por %p58, %p59
      %p61 = scmp.ne.s32.totalorder %s53, %s56
      %p62 = scmp.eq.s32.totalorder %s23, 0
      %p63 = por %p61, %p62
      %p64 = scmp.ne.s32.totalorder %s53, %s56
      %p65 = scmp.eq.s32.totalorder %s28, 3
      %p66 = por %p64, %p65
      %p67 = scmp.ne.s32.totalorder %s56, %s57
      %p68 = scmp.eq.s32.totalorder %s28, 0
      %p69 = por %p67, %p68
      %p70 = scmp.ne.s32.totalorder %s56, %s57
      %p71 = scmp.eq.s32.totalorder %s29, 3
      %p72 = por %p70, %p71
      %p74 = scmp.ne.s32.totalorder %s57, %s73
      %p75 = scmp.eq.s32.totalorder %s29, 0
      %p76 = por %p74, %p75
      %s77 = ssub.s32 %s31, %s38
      %s78 = ssub.s32 %s30, %s42
      %s79 = sor.u32 %s77, %s78
      %p80 = scmp.eq.s32.totalorder %s79, 0
      %s82 = sadd.s32 %s81, 1
      %s83 = scalar_select %p80, %s81, %s82
      %p86 = pneg %p80
      %p87 = scmp.eq.s32.totalorder %s23, 3
      %p88 = por %p86, %p87
      %p89 = scmp.ne.s32.totalorder %s81, %s84
      %p90 = scmp.eq.s32.totalorder %s23, 0
      %p91 = por %p89, %p90
      %p92 = scmp.ne.s32.totalorder %s81, %s84
      %p93 = scmp.eq.s32.totalorder %s28, 3
      %p94 = por %p92, %p93
      %p95 = scmp.ne.s32.totalorder %s84, %s85
      %p96 = scmp.eq.s32.totalorder %s28, 0
      %p97 = por %p95, %p96
      %p98 = scmp.ne.s32.totalorder %s84, %s85
      %p99 = scmp.eq.s32.totalorder %s29, 3
      %p100 = por %p98, %p99
      %p102 = scmp.ne.s32.totalorder %s85, %s101
      %p103 = scmp.eq.s32.totalorder %s29, 0
      %p104 = por %p102, %p103
      %s105 = sadd.s32 %s30, 1
      %p106 = scmp.lt.s32.totalorder %s105, 1
      %s107 = scalar_select %p106, %s105, 1
      %s108 = sadd.s32 %s42, 1
      %p109 = scmp.lt.s32.totalorder %s108, 1
      %s110 = scalar_select %p109, %s108, 1
      %s111 = ssub.s32 %s31, %s38
      %s112 = ssub.s32 %s107, %s110
      %s113 = sor.u32 %s111, %s112
      %p114 = scmp.eq.s32.totalorder %s113, 0
      %s116 = sadd.s32 %s115, 1
      %s117 = scalar_select %p114, %s115, %s116
      %p120 = pneg %p114
      %p121 = scmp.eq.s32.totalorder %s23, 3
      %p122 = por %p120, %p121
      %p123 = scmp.ne.s32.totalorder %s115, %s118
      %p124 = scmp.eq.s32.totalorder %s23, 0
      %p125 = por %p123, %p124
      %p126 = scmp.ne.s32.totalorder %s115, %s118
      %p127 = scmp.eq.s32.totalorder %s28, 3
      %p128 = por %p126, %p127
      %p129 = scmp.ne.s32.totalorder %s118, %s119
      %p130 = scmp.eq.s32.totalorder %s28, 0
      %p131 = por %p129, %p130
      %p132 = scmp.ne.s32.totalorder %s118, %s119
      %p133 = scmp.eq.s32.totalorder %s29, 3
      %p134 = por %p132, %p133
      %p136 = scmp.ne.s32.totalorder %s119, %s135
      %p137 = scmp.eq.s32.totalorder %s29, 0
      %p138 = por %p136, %p137
      %s140 = sadd.s32 %s139, 1
      %p143 = scmp.eq.s32.totalorder %s23, 3
      %p144 = scmp.ne.s32.totalorder %s139, %s141
      %p145 = scmp.eq.s32.totalorder %s23, 0
      %p146 = por %p144, %p145
      %p147 = scmp.ne.s32.totalorder %s139, %s141
      %p148 = scmp.eq.s32.totalorder %s28, 3
      %p149 = por %p147, %p148
      %p150 = scmp.ne.s32.totalorder %s141, %s142
      %p151 = scmp.eq.s32.totalorder %s28, 0
      %p152 = por %p150, %p151
      %p153 = scmp.ne.s32.totalorder %s141, %s142
      %p154 = scmp.eq.s32.totalorder %s29, 3
      %p155 = por %p153, %p154
      %p157 = scmp.ne.s32.totalorder %s142, %s156
      %p158 = scmp.eq.s32.totalorder %s29, 0
      %p159 = por %p157, %p158
      %s161 = sadd.s32 %s160, 1
      %p164 = scmp.eq.s32.totalorder %s23, 3
      %p165 = scmp.ne.s32.totalorder %s160, %s162
      %p166 = scmp.eq.s32.totalorder %s23, 0
      %p167 = por %p165, %p166
      %p168 = scmp.ne.s32.totalorder %s160, %s162
      %p169 = scmp.eq.s32.totalorder %s28, 3
      %p170 = por %p168, %p169
      %p171 = scmp.ne.s32.totalorder %s162, %s163
      %p172 = scmp.eq.s32.totalorder %s28, 0
      %p173 = por %p171, %p172
      %p174 = scmp.ne.s32.totalorder %s162, %s163
      %p175 = scmp.eq.s32.totalorder %s29, 3
      %p176 = por %p174, %p175
      %p178 = scmp.ne.s32.totalorder %s163, %s177
      %p179 = scmp.eq.s32.totalorder %s29, 0
      %p180 = por %p178, %p179
      %s182 = sadd.s32 %s181, 1
      %p185 = scmp.eq.s32.totalorder %s23, 3
      %p186 = scmp.ne.s32.totalorder %s181, %s183
      %p187 = scmp.eq.s32.totalorder %s23, 0
      %p188 = por %p186, %p187
      %p189 = scmp.ne.s32.totalorder %s181, %s183
      %p190 = scmp.eq.s32.totalorder %s28, 3
      %p191 = por %p189, %p190
      %p192 = scmp.ne.s32.totalorder %s183, %s184
      %p193 = scmp.eq.s32.totalorder %s28, 0
      %p194 = por %p192, %p193
      %p195 = scmp.ne.s32.totalorder %s183, %s184
      %p196 = scmp.eq.s32.totalorder %s29, 3
      %p197 = por %p195, %p196
      %p199 = scmp.ne.s32.totalorder %s184, %s198
      %p200 = scmp.eq.s32.totalorder %s29, 0
      %p201 = por %p199, %p200
      %s203 = sadd.s32 %s202, 1
      %p206 = scmp.eq.s32.totalorder %s23, 3
      %p207 = scmp.ne.s32.totalorder %s202, %s204
      %p208 = scmp.eq.s32.totalorder %s23, 0
      %p209 = por %p207, %p208
      %p210 = scmp.ne.s32.totalorder %s202, %s204
      %p211 = scmp.eq.s32.totalorder %s28, 3
      %p212 = por %p210, %p211
      %p213 = scmp.ne.s32.totalorder %s204, %s205
      %p214 = scmp.eq.s32.totalorder %s28, 0
      %p215 = por %p213, %p214
      %p216 = scmp.ne.s32.totalorder %s204, %s205
      %p217 = scmp.eq.s32.totalorder %s29, 3
      %p218 = por %p216, %p217
      %p220 = scmp.ne.s32.totalorder %s205, %s219
      %p221 = scmp.eq.s32.totalorder %s29, 0
      %p222 = por %p220, %p221
      %s223 = ssub.s32 %s31, %s38
      %s224 = ssub.s32 %s30, %s42
      %s225 = sor.u32 %s223, %s224
      %p226 = scmp.eq.s32.totalorder %s225, 0
      %s228 = sadd.s32 %s227, 1
      %s229 = scalar_select %p226, %s227, %s228
      %p232 = pneg %p226
      %p233 = scmp.eq.s32.totalorder %s23, 3
      %p234 = por %p232, %p233
      %p235 = scmp.ne.s32.totalorder %s227, %s230
      %p236 = scmp.eq.s32.totalorder %s23, 0
      %p237 = por %p235, %p236
      %p238 = scmp.ne.s32.totalorder %s227, %s230
      %p239 = scmp.eq.s32.totalorder %s28, 3
      %p240 = por %p238, %p239
      %p241 = scmp.ne.s32.totalorder %s230, %s231
      %p242 = scmp.eq.s32.totalorder %s28, 0
      %p243 = por %p241, %p242
      %p244 = scmp.ne.s32.totalorder %s230, %s231
      %p245 = scmp.eq.s32.totalorder %s29, 3
      %p246 = por %p244, %p245
      %p248 = scmp.ne.s32.totalorder %s231, %s247
      %p249 = scmp.eq.s32.totalorder %s29, 0
      %p250 = por %p248, %p249
      %p251 = scmp.le.s32.totalorder 1, %s23
      %p252 = scmp.lt.s32.totalorder %s23, 5
      %p253 = pnand %p251, %p252
      %p254 = pneg %p253
      // Predicated region
      $region9: #{tpu_custom_call.1} parent=5 // pred_check
        _
      $region10: #{tpu_custom_call.1} parent=5 // pred_check_branch
        %256 = sbr.rel (%p253) target = $region12
      $region11: #{tpu_custom_call.1} parent=5 // pred_region
        %s257 = ssub.s32 %s23, 1
        // Predicated region
        $region13: #{tpu_custom_call.1} parent=11 // pred_check
          %p258 = pneg %p152
        $region14: #{tpu_custom_call.1} parent=11 // pred_check_branch
          %260 = sbr.rel (%p258) target = $region16
        $region15: #{tpu_custom_call.1} parent=11 // pred_region
          %s262 = ssub.s32 768, 768
          %263 = vsyncadd [#allocation11], %s262
          %s264 = sshll.u32 [#allocation10], 4
          %s265 = int_to_ptr.vmem [resolvable:$true] %s264
          %270 = dma.hbm_to_vmem [thread:$0]  %s3, 768, %s265, [#allocation11], 128, 128, 8
        $region16: #{tpu_custom_call.1} parent=11 // pred_fallthru
          _
        // Predicated region
        $region17: #{tpu_custom_call.1} parent=11 // pred_check
          %p271 = pneg %p173
        $region18: #{tpu_custom_call.1} parent=11 // pred_check_branch
          %273 = sbr.rel (%p271) target = $region20
        $region19: #{tpu_custom_call.1} parent=11 // pred_region
          _
        $region20: #{tpu_custom_call.1} parent=11 // pred_fallthru
          _
        // Predicated region
        $region21: #{tpu_custom_call.1} parent=11 // pred_check
          %p274 = pneg %p194
        $region22: #{tpu_custom_call.1} parent=11 // pred_check_branch
          %276 = sbr.rel (%p274) target = $region24
        $region23: #{tpu_custom_call.1} parent=11 // pred_region
          _
        $region24: #{tpu_custom_call.1} parent=11 // pred_fallthru
          _
        // Predicated region
        $region25: #{tpu_custom_call.1} parent=11 // pred_check
          %p277 = pneg %p215
        $region26: #{tpu_custom_call.1} parent=11 // pred_check_branch
          %279 = sbr.rel (%p277) target = $region28
        $region27: #{tpu_custom_call.1} parent=11 // pred_region
          _
        $region28: #{tpu_custom_call.1} parent=11 // pred_fallthru
          _
      $region12: #{tpu_custom_call.1} parent=5 // pred_fallthru
        _
      %p280 = scmp.lt.s32.totalorder %s23, 4
      // Predicated region
      $region29: #{tpu_custom_call.1} parent=5 // pred_check
        %p281 = pneg %p280
      $region30: #{tpu_custom_call.1} parent=5 // pred_check_branch
        %283 = sbr.rel (%p281) target = $region32
      $region31: #{tpu_custom_call.1} parent=5 // pred_region
        // Predicated region
        $region33: #{tpu_custom_call.1} parent=31 // pred_check
          %p284 = pneg %p63
        $region34: #{tpu_custom_call.1} parent=31 // pred_check_branch
          %286 = sbr.rel (%p284) target = $region36
        $region35: #{tpu_custom_call.1} parent=31 // pred_region
          %s287 = sand.u32 %s53, 1
          %s288 = scalar_lea.sflag [#allocation5], %s287
          %s289 = sand.u32 %s53, 1
          %s290 = smul.addr %s289, 16
          %s291 = scalar_lea.vmem [#allocation4], %s290
          %s292 = ssub.s32 %s30, 1
          %p293 = scmp.gt.s32.totalorder %s292, 0
          %s294 = scalar_select %p293, %s292, 0
          %s296 = ssub.s32 256, 256
          %297 = vsyncadd %s288, %s296
          %s298 = smul.addr %s31, 4
          %s299 = sadd.s32 %s294, %s298
          %s300 = smul.addr %s299, 128
          %s301 = scalar_lea.hbm %s0, %s300
          %s302 = sshll.u32 %s291, 4
          %s303 = int_to_ptr.vmem [resolvable:$true] %s302
          %308 = dma.hbm_to_vmem [thread:$0]  %s301, 256, %s303, %s288, 256, 128, 8
        $region36: #{tpu_custom_call.1} parent=31 // pred_fallthru
          _
        // Predicated region
        $region37: #{tpu_custom_call.1} parent=31 // pred_check
          %p309 = pneg %p91
        $region38: #{tpu_custom_call.1} parent=31 // pred_check_branch
          %311 = sbr.rel (%p309) target = $region40
        $region39: #{tpu_custom_call.1} parent=31 // pred_region
          %s312 = sand.u32 %s23, 1
          %s313 = scalar_lea.sflag [#allocation8], %s312
          %s314 = sand.u32 %s81, 1
          %s315 = smul.addr %s314, 16
          %s316 = scalar_lea.vmem [#allocation7], %s315
          %s318 = ssub.s32 256, 256
          %319 = vsyncadd %s313, %s318
          %s320 = smul.addr %s31, 4
          %s321 = sadd.s32 %s30, %s320
          %s322 = smul.addr %s321, 128
          %s323 = scalar_lea.hbm %s1, %s322
          %s324 = sshll.u32 %s316, 4
          %s325 = int_to_ptr.vmem [resolvable:$true] %s324
          %330 = dma.hbm_to_vmem [thread:$0]  %s323, 256, %s325, %s313, 256, 128, 8
        $region40: #{tpu_custom_call.1} parent=31 // pred_fallthru
          _
        // Predicated region
        $region41: #{tpu_custom_call.1} parent=31 // pred_check
          %p331 = pneg %p125
        $region42: #{tpu_custom_call.1} parent=31 // pred_check_branch
          %333 = sbr.rel (%p331) target = $region44
        $region43: #{tpu_custom_call.1} parent=31 // pred_region
          %s334 = sand.u32 %s23, 1
          %s335 = scalar_lea.sflag [#allocation8], %s334
          %s336 = sand.u32 %s115, 1
          %s337 = smul.addr %s336, 16
          %s338 = scalar_lea.vmem [#allocation9], %s337
          %s339 = sadd.s32 %s30, 1
          %p340 = scmp.lt.s32.totalorder %s339, 1
          %s341 = scalar_select %p340, %s339, 1
          %s343 = ssub.s32 256, 256
          %344 = vsyncadd %s335, %s343
          %s345 = smul.addr %s31, 4
          %s346 = sadd.s32 %s341, %s345
          %s347 = smul.addr %s346, 128
          %s348 = scalar_lea.hbm %s2, %s347
          %s349 = sshll.u32 %s338, 4
          %s350 = int_to_ptr.vmem [resolvable:$true] %s349
          %355 = dma.hbm_to_vmem [thread:$0]  %s348, 256, %s350, %s335, 256, 128, 8
        $region44: #{tpu_custom_call.1} parent=31 // pred_fallthru
          _
      $region32: #{tpu_custom_call.1} parent=5 // pred_fallthru
        _
      %p356 = scmp.le.s32.totalorder 1, %s23
      %p357 = scmp.lt.s32.totalorder %s23, 5
      %p358 = pnand %p356, %p357
      %p359 = pneg %p358
      // Predicated region
      $region45: #{tpu_custom_call.1} parent=5 // pred_check
        _
      $region46: #{tpu_custom_call.1} parent=5 // pred_check_branch
        %361 = sbr.rel (%p358) target = $region48
      $region47: #{tpu_custom_call.1} parent=5 // pred_region
        %s362 = ssub.s32 %s23, 1
        %s363 = sand.u32 %s56, 1
        %s364 = scalar_lea.sflag [#allocation5], %s363
        %s365 = sand.u32 %s56, 1
        %s366 = smul.addr %s365, 16
        %s367 = scalar_lea.vmem [#allocation4], %s366
        // Predicated region
        $region49: #{tpu_custom_call.1} parent=47 // pred_check
          %p368 = pneg %p69
        $region50: #{tpu_custom_call.1} parent=47 // pred_check_branch
          %370 = sbr.rel (%p368) target = $region52
        $region51: #{tpu_custom_call.1} parent=47 // pred_region
          %371 = dma.done %s364, 256
        $region52: #{tpu_custom_call.1} parent=47 // pred_fallthru
          _
        %s372 = sand.u32 %s28, 1
        %s373 = scalar_lea.sflag [#allocation8], %s372
        %s374 = sand.u32 %s84, 1
        %s375 = smul.addr %s374, 16
        %s376 = scalar_lea.vmem [#allocation7], %s375
        // Predicated region
        $region53: #{tpu_custom_call.1} parent=47 // pred_check
          %p377 = pneg %p97
        $region54: #{tpu_custom_call.1} parent=47 // pred_check_branch
          %379 = sbr.rel (%p377) target = $region56
        $region55: #{tpu_custom_call.1} parent=47 // pred_region
          %380 = dma.done %s373, 256
        $region56: #{tpu_custom_call.1} parent=47 // pred_fallthru
          _
        %s381 = sand.u32 %s28, 1
        %s382 = scalar_lea.sflag [#allocation8], %s381
        %s383 = sand.u32 %s118, 1
        %s384 = smul.addr %s383, 16
        %s385 = scalar_lea.vmem [#allocation9], %s384
        // Predicated region
        $region57: #{tpu_custom_call.1} parent=47 // pred_check
          %p386 = pneg %p131
        $region58: #{tpu_custom_call.1} parent=47 // pred_check_branch
          %388 = sbr.rel (%p386) target = $region60
        $region59: #{tpu_custom_call.1} parent=47 // pred_region
          %389 = dma.done %s382, 256
        $region60: #{tpu_custom_call.1} parent=47 // pred_fallthru
          _
        // Predicated region
        $region61: #{tpu_custom_call.1} parent=47 // pred_check
          %p390 = pneg %p152
        $region62: #{tpu_custom_call.1} parent=47 // pred_check_branch
          %392 = sbr.rel (%p390) target = $region64
        $region63: #{tpu_custom_call.1} parent=47 // pred_region
          %393 = dma.done [#allocation11], 768
        $region64: #{tpu_custom_call.1} parent=47 // pred_fallthru
          _
        %s394 = sand.u32 %s56, 1
        %s395 = scalar_lea.sflag [#allocation5], %s394
        %s396 = sand.u32 %s56, 1
        %s397 = smul.addr %s396, 16
        %s398 = scalar_lea.vmem [#allocation4], %s397
        %p399 = pneg %p69
        %p400 = pneg %p66
        %s401 = sand.u32 %s28, 1
        %s402 = scalar_lea.sflag [#allocation8], %s401
        %s403 = sand.u32 %s84, 1
        %s404 = smul.addr %s403, 16
        %s405 = scalar_lea.vmem [#allocation7], %s404
        %p406 = pneg %p97
        %p407 = pneg %p94
        %s408 = sand.u32 %s28, 1
        %s409 = scalar_lea.sflag [#allocation8], %s408
        %s410 = sand.u32 %s118, 1
        %s411 = smul.addr %s410, 16
        %s412 = scalar_lea.vmem [#allocation9], %s411
        %p413 = pneg %p131
        %p414 = pneg %p128
        %p415 = pneg %p152
        %p416 = pneg %p149
        %p417 = pneg %p173
        %p418 = pneg %p170
        %p419 = pneg %p194
        %p420 = pneg %p191
        %p421 = pneg %p215
        %p422 = pneg %p212
        %p423 = pneg %p243
        %p424 = pneg %p240
        %s425 = sand.u32 %s230, 1
        %s426 = scalar_lea.sflag [#allocation6], %s425
        %s427 = sand.u32 %s230, 1
        %s428 = smul.addr %s427, 16
        %s429 = scalar_lea.vmem [#allocation12], %s428
        %s430 = ssub.s32 %s32, 1
        %p431 = scmp.gt.s32.totalorder %s430, 0
        %s432 = scalar_select %p431, %s430, 0
        %s433 = sadd.s32 %s32, 1
        %p434 = scmp.lt.s32.totalorder %s433, 1
        %s435 = scalar_select %p434, %s433, 1
        %s436 = smul.u32 %s32, 128
        %s437 = ssub.s32 %s436, 128
        %v438 = vlaneseq
        %v439 = vand.u32 %v438, 127
        %v440 = vstv %s437
        %v441 = vadd.s32 %v440, %v439
        %vm442 = vcmp.ge.s32.totalorder %v441, 0
        %v443 = vld [vmem:[%s367] sm:$0xff]
        %v444 = vld [vmem:[%s367 + $0x8] sm:$0xff]
        %v445 = vsel %vm442, 1, 0
        %vm446 = vcmp.eq.s32.totalorder %v445, 1
        %v447 = vsel %vm446, %v443, 0.0
        %v448 = vsel %vm446, %v444, 0.0
        %449 = vst [vmem:[#allocation2] sm:$0xff] %v447
        %450 = vst [vmem:[#allocation2 + $0x18] sm:$0xff] %v448
        %v451 = vld [vmem:[%s376] sm:$0xff]
        %v452 = vld [vmem:[%s376 + $0x8] sm:$0xff]
        %453 = vst [vmem:[#allocation2 + $0x8] sm:$0xff] %v451
        %454 = vst [vmem:[#allocation2 + $0x20] sm:$0xff] %v452
        %s455 = sadd.s32 %s32, 1
        %s456 = smul.u32 %s455, 128
        %v457 = vstv %s456
        %v458 = vadd.s32 %v457, %v439
        %vm459 = vcmp.lt.s32.totalorder %v458, 256
        %v460 = vld [vmem:[%s385] sm:$0xff]
        %v461 = vld [vmem:[%s385 + $0x8] sm:$0xff]
        %v462 = vsel %vm459, 1, 0
        %vm463 = vcmp.eq.s32.totalorder %v462, 1
        %v464 = vsel %vm463, %v460, 0.0
        %v465 = vsel %vm463, %v461, 0.0
        %466 = vst [vmem:[#allocation2 + $0x10] sm:$0xff] %v464
        %467 = vst [vmem:[#allocation2 + $0x28] sm:$0xff] %v465
        %p468 = scmp.gt.s32.totalorder %s456, 256
        // Predicated region
        $region65: #{tpu_custom_call.1} parent=47 // pred_check
          %p469 = pneg %p468
        $region66: #{tpu_custom_call.1} parent=47 // pred_check_branch
          %471 = sbr.rel (%p469) target = $region68
        $region67: #{tpu_custom_call.1} parent=47 // pred_region
          %v472 = vstv %s436
          %v473 = vadd.s32 %v472, %v439
          %vm474 = vcmp.lt.s32.totalorder %v473, 256
          %v475 = vld [vmem:[#allocation2 + $0x8] sm:$0xff]
          %v476 = vld [vmem:[#allocation2 + $0x20] sm:$0xff]
          %v477 = vsel %vm474, 1, 0
          %vm478 = vcmp.eq.s32.totalorder %v477, 1
          %v479 = vsel %vm478, %v475, 0.0
          %v480 = vsel %vm478, %v476, 0.0
          %481 = vst [vmem:[#allocation2 + $0x8] sm:$0xff] %v479
          %482 = vst [vmem:[#allocation2 + $0x20] sm:$0xff] %v480
        $region68: #{tpu_custom_call.1} parent=47 // pred_fallthru
          _
        %v483 = vld [vmem:[#allocation2] sm:$0xff]
        %v484 = vld [vmem:[#allocation2 + $0x8] sm:$0xff]
        %v485 = vld [vmem:[#allocation2 + $0x10] sm:$0xff]
        %v486 = vld [vmem:[#allocation2 + $0x18] sm:$0xff]
        %v487 = vld [vmem:[#allocation2 + $0x20] sm:$0xff]
        %v488 = vld [vmem:[#allocation2 + $0x28] sm:$0xff]
        %489 = vrot.lane.b32.xlu0 %v483, 4
        %v490 = vpop.permute.xlu0 %489
        %491 = vrot.lane.b32.xlu0 %v486, 4
        %v492 = vpop.permute.xlu0 %491
        %493 = vrot.lane.b32.xlu0 %v484, 4
        %v494 = vpop.permute.xlu0 %493
        %495 = vrot.lane.b32.xlu0 %v487, 4
        %v496 = vpop.permute.xlu0 %495
        %497 = vrot.lane.b32.xlu0 %v485, 4
        %v498 = vpop.permute.xlu0 %497
        %499 = vrot.lane.b32.xlu0 %v488, 4
        %v500 = vpop.permute.xlu0 %499
        %vm501 = vcmp.lt.s32.totalorder %v439, 4
        %v502 = vsel %vm501, %v494, %v498
        %v503 = vsel %vm501, %v496, %v500
        %v504 = vsel %vm501, %v490, %v494
        %v505 = vsel %vm501, %v492, %v496
        %v506 = vld [vmem:[#allocation10] sm:$0xff]
        %v507 = vld [vmem:[#allocation10 + $0x8] sm:$0xff]
        %508 = vrot.lane.b32.xlu0 %v483, 2
        %v509 = vpop.permute.xlu0 %508
        %510 = vrot.lane.b32.xlu0 %v486, 2
        %v511 = vpop.permute.xlu0 %510
        %512 = vrot.lane.b32.xlu0 %v484, 2
        %v513 = vpop.permute.xlu0 %512
        %514 = vrot.lane.b32.xlu0 %v487, 2
        %v515 = vpop.permute.xlu0 %514
        %516 = vrot.lane.b32.xlu0 %v485, 2
        %v517 = vpop.permute.xlu0 %516
        %518 = vrot.lane.b32.xlu0 %v488, 2
        %v519 = vpop.permute.xlu0 %518
        %vm520 = vcmp.lt.s32.totalorder %v439, 2
        %v521 = vsel %vm520, %v513, %v517
        %v522 = vsel %vm520, %v515, %v519
        %v523 = vsel %vm520, %v509, %v513
        %v524 = vsel %vm520, %v511, %v515
        %s525 = scalar_lea.vmem [#allocation10], 16
        %v526 = vld [vmem:[%s525] sm:$0xff]
        %v527 = vld [vmem:[%s525 + $0x8] sm:$0xff]
        %vm528 = vcmask 130048
        %v530 = vsel %vm528, %v526, 0
        %v533 = vsel %vm528, %v527, 0
        %535 = vmatprep.subr.mxu0 %v521
        %536 = vmatpush1.msra.mxu0 %v523
        %537 = vmatprep.subr.mxu0 %v522
        %538 = vmatpush1.msra.mxu0 %v524
        %539 = vmatprep.subr.mxu0 0.0
        %540 = vmatpush1.msra.mxu0 0.0
        %541 = vmatprep.subr.mxu0 0.0
        %542 = vmatpush1.msra.mxu0 0.0
        %543 = vmatprep.subr.mxu0 0.0
        %544 = vmatpush1.msra.mxu0 0.0
        %545 = vmatprep.subr.mxu0 0.0
        %546 = vmatpush1.msra.mxu0 0.0
        %547 = vmatprep.subr.mxu0 0.0
        %548 = vmatpush1.msra.mxu0 0.0
        %549 = vmatprep.subr.mxu0 0.0
        %550 = vmatpush1.msra.mxu0 0.0
        %551 = vmatprep.subr.mxu0 0.0
        %552 = vmatpush1.msra.mxu0 0.0
        %553 = vmatprep.subr.mxu0 0.0
        %554 = vmatpush1.msra.mxu0 0.0
        %555 = vmatprep.subr.mxu0 0.0
        %556 = vmatpush1.msra.mxu0 0.0
        %557 = vmatprep.subr.mxu0 0.0
        %558 = vmatpush1.msra.mxu0 0.0
        %559 = vmatprep.subr.mxu0 0.0
        %560 = vmatpush1.msra.mxu0 0.0
        %561 = vmatprep.subr.mxu0 0.0
        %562 = vmatpush1.msra.mxu0 0.0
        %563 = vmatprep.subr.mxu0 0.0
        %564 = vmatpush1.msra.mxu0 0.0
        %565 = vmatprep.subr.mxu0 0.0
        %566 = vmatpush1.msra.mxu0 0.0
        %567 = vmatprep.subr.mxu0 0.0
        %568 = vmatpush1.msra.mxu0 0.0
        %569 = vmatprep.subr.mxu0 0.0
        %570 = vmatpush1.msra.mxu0 0.0
        %571 = vmatprep.subr.mxu0 0.0
        %572 = vmatpush1.msra.mxu0 0.0
        %573 = vmatprep.subr.mxu0 0.0
        %574 = vmatpush1.msra.mxu0 0.0
        %575 = vmatprep.subr.mxu0 0.0
        %576 = vmatpush1.msra.mxu0 0.0
        %577 = vmatprep.subr.mxu0 0.0
        %578 = vmatpush1.msra.mxu0 0.0
        %579 = vmatprep.subr.mxu0 0.0
        %580 = vmatpush1.msra.mxu0 0.0
        %581 = vmatprep.subr.mxu0 0.0
        %582 = vmatpush1.msra.mxu0 0.0
        %583 = vmatprep.subr.mxu0 0.0
        %584 = vmatpush1.msra.mxu0 0.0
        %585 = vmatprep.subr.mxu0 0.0
        %586 = vmatpush1.msra.mxu0 0.0
        %587 = vmatprep.subr.mxu0 0.0
        %588 = vmatpush1.msra.mxu0 0.0
        %589 = vmatprep.subr.mxu0 0.0
        %590 = vmatpush1.msra.mxu0 0.0
        %591 = vmatprep.subr.mxu0 0.0
        %592 = vmatpush1.msra.mxu0 0.0
        %593 = vmatprep.subr.mxu0 0.0
        %594 = vmatpush1.msra.mxu0 0.0
        %595 = vmatprep.subr.mxu0 0.0
        %596 = vmatpush1.msra.mxu0 0.0
        %597 = vmatprep.subr.mxu0 0.0
        %598 = vmatpush1.msra.mxu0 0.0
        %599 = vmatprep.mubr.f32.mxu0 0.0
        %600 = vmatmul.mubr.f32.gmra.mrb[0].mxu0 %v530
        %v601 = vpop.f32.mrb[0].mxu0
        %v602 = vadd.f32 0.0, %v601
        %v603 = vpop.f32.mrb[0].mxu0
        %v604 = vadd.f32 0.0, %v603
        %605 = vmatprep.mubr.f32.mxu0 0.0
        %606 = vmatmul.mubr.f32.gmra.mrb[0].mxu0 %v533
        %v607 = vpop.f32.mrb[0].mxu0
        %v608 = vadd.f32 0.0, %v607
        %v609 = vpop.f32.mrb[0].mxu0
        %v610 = vadd.f32 0.0, %v609
        %611 = vdwg.mxu0
        %v613 = vsel %vm528, %v506, 0
        %v616 = vsel %vm528, %v507, 0
        %618 = vmatprep.subr.mxu0 %v502
        %619 = vmatpush1.msra.mxu0 %v504
        %620 = vmatprep.subr.mxu0 %v503
        %621 = vmatpush1.msra.mxu0 %v505
        %622 = vmatprep.subr.mxu0 0.0
        %623 = vmatpush1.msra.mxu0 0.0
        %624 = vmatprep.subr.mxu0 0.0
        %625 = vmatpush1.msra.mxu0 0.0
        %626 = vmatprep.subr.mxu0 0.0
        %627 = vmatpush1.msra.mxu0 0.0
        %628 = vmatprep.subr.mxu0 0.0
        %629 = vmatpush1.msra.mxu0 0.0
        %630 = vmatprep.subr.mxu0 0.0
        %631 = vmatpush1.msra.mxu0 0.0
        %632 = vmatprep.subr.mxu0 0.0
        %633 = vmatpush1.msra.mxu0 0.0
        %634 = vmatprep.subr.mxu0 0.0
        %635 = vmatpush1.msra.mxu0 0.0
        %636 = vmatprep.subr.mxu0 0.0
        %637 = vmatpush1.msra.mxu0 0.0
        %638 = vmatprep.subr.mxu0 0.0
        %639 = vmatpush1.msra.mxu0 0.0
        %640 = vmatprep.subr.mxu0 0.0
        %641 = vmatpush1.msra.mxu0 0.0
        %642 = vmatprep.subr.mxu0 0.0
        %643 = vmatpush1.msra.mxu0 0.0
        %644 = vmatprep.subr.mxu0 0.0
        %645 = vmatpush1.msra.mxu0 0.0
        %646 = vmatprep.subr.mxu0 0.0
        %647 = vmatpush1.msra.mxu0 0.0
        %648 = vmatprep.subr.mxu0 0.0
        %649 = vmatpush1.msra.mxu0 0.0
        %650 = vmatprep.subr.mxu0 0.0
        %651 = vmatpush1.msra.mxu0 0.0
        %652 = vmatprep.subr.mxu0 0.0
        %653 = vmatpush1.msra.mxu0 0.0
        %654 = vmatprep.subr.mxu0 0.0
        %655 = vmatpush1.msra.mxu0 0.0
        %656 = vmatprep.subr.mxu0 0.0
        %657 = vmatpush1.msra.mxu0 0.0
        %658 = vmatprep.subr.mxu0 0.0
        %659 = vmatpush1.msra.mxu0 0.0
        %660 = vmatprep.subr.mxu0 0.0
        %661 = vmatpush1.msra.mxu0 0.0
        %662 = vmatprep.subr.mxu0 0.0
        %663 = vmatpush1.msra.mxu0 0.0
        %664 = vmatprep.subr.mxu0 0.0
        %665 = vmatpush1.msra.mxu0 0.0
        %666 = vmatprep.subr.mxu0 0.0
        %667 = vmatpush1.msra.mxu0 0.0
        %668 = vmatprep.subr.mxu0 0.0
        %669 = vmatpush1.msra.mxu0 0.0
        %670 = vmatprep.subr.mxu0 0.0
        %671 = vmatpush1.msra.mxu0 0.0
        %672 = vmatprep.subr.mxu0 0.0
        %673 = vmatpush1.msra.mxu0 0.0
        %674 = vmatprep.subr.mxu0 0.0
        %675 = vmatpush1.msra.mxu0 0.0
        %676 = vmatprep.subr.mxu0 0.0
        %677 = vmatpush1.msra.mxu0 0.0
        %678 = vmatprep.subr.mxu0 0.0
        %679 = vmatpush1.msra.mxu0 0.0
        %680 = vmatprep.subr.mxu0 0.0
        %681 = vmatpush1.msra.mxu0 0.0
        %682 = vmatprep.mubr.f32.mxu0 0.0
        %683 = vmatmul.mubr.f32.gmra.mrb[0].mxu0 %v613
        %v684 = vpop.f32.mrb[0].mxu0
        %v685 = vadd.f32 %v602, %v684
        %v686 = vpop.f32.mrb[0].mxu0
        %v687 = vadd.f32 %v604, %v686
        %688 = vmatprep.mubr.f32.mxu0 0.0
        %689 = vmatmul.mubr.f32.gmra.mrb[0].mxu0 %v616
        %v690 = vpop.f32.mrb[0].mxu0
        %v691 = vadd.f32 %v608, %v690
        %v692 = vpop.f32.mrb[0].mxu0
        %v693 = vadd.f32 %v610, %v692
        %694 = vdwg.mxu0
        %s695 = scalar_lea.vmem [#allocation10], 32
        %v696 = vld [vmem:[%s695] sm:$0xff]
        %v697 = vld [vmem:[%s695 + $0x8] sm:$0xff]
        %v699 = vsel %vm528, %v696, 0
        %v702 = vsel %vm528, %v697, 0
        %704 = vmatprep.subr.mxu0 %v485
        %705 = vmatpush1.msra.mxu0 %v484
        %706 = vmatprep.subr.mxu0 %v488
        %707 = vmatpush1.msra.mxu0 %v487
        %708 = vmatprep.subr.mxu0 0.0
        %709 = vmatpush1.msra.mxu0 0.0
        %710 = vmatprep.subr.mxu0 0.0
        %711 = vmatpush1.msra.mxu0 0.0
        %712 = vmatprep.subr.mxu0 0.0
        %713 = vmatpush1.msra.mxu0 0.0
        %714 = vmatprep.subr.mxu0 0.0
        %715 = vmatpush1.msra.mxu0 0.0
        %716 = vmatprep.subr.mxu0 0.0
        %717 = vmatpush1.msra.mxu0 0.0
        %718 = vmatprep.subr.mxu0 0.0
        %719 = vmatpush1.msra.mxu0 0.0
        %720 = vmatprep.subr.mxu0 0.0
        %721 = vmatpush1.msra.mxu0 0.0
        %722 = vmatprep.subr.mxu0 0.0
        %723 = vmatpush1.msra.mxu0 0.0
        %724 = vmatprep.subr.mxu0 0.0
        %725 = vmatpush1.msra.mxu0 0.0
        %726 = vmatprep.subr.mxu0 0.0
        %727 = vmatpush1.msra.mxu0 0.0
        %728 = vmatprep.subr.mxu0 0.0
        %729 = vmatpush1.msra.mxu0 0.0
        %730 = vmatprep.subr.mxu0 0.0
        %731 = vmatpush1.msra.mxu0 0.0
        %732 = vmatprep.subr.mxu0 0.0
        %733 = vmatpush1.msra.mxu0 0.0
        %734 = vmatprep.subr.mxu0 0.0
        %735 = vmatpush1.msra.mxu0 0.0
        %736 = vmatprep.subr.mxu0 0.0
        %737 = vmatpush1.msra.mxu0 0.0
        %738 = vmatprep.subr.mxu0 0.0
        %739 = vmatpush1.msra.mxu0 0.0
        %740 = vmatprep.subr.mxu0 0.0
        %741 = vmatpush1.msra.mxu0 0.0
        %742 = vmatprep.subr.mxu0 0.0
        %743 = vmatpush1.msra.mxu0 0.0
        %744 = vmatprep.subr.mxu0 0.0
        %745 = vmatpush1.msra.mxu0 0.0
        %746 = vmatprep.subr.mxu0 0.0
        %747 = vmatpush1.msra.mxu0 0.0
        %748 = vmatprep.subr.mxu0 0.0
        %749 = vmatpush1.msra.mxu0 0.0
        %750 = vmatprep.subr.mxu0 0.0
        %751 = vmatpush1.msra.mxu0 0.0
        %752 = vmatprep.subr.mxu0 0.0
        %753 = vmatpush1.msra.mxu0 0.0
        %754 = vmatprep.subr.mxu0 0.0
        %755 = vmatpush1.msra.mxu0 0.0
        %756 = vmatprep.subr.mxu0 0.0
        %757 = vmatpush1.msra.mxu0 0.0
        %758 = vmatprep.subr.mxu0 0.0
        %759 = vmatpush1.msra.mxu0 0.0
        %760 = vmatprep.subr.mxu0 0.0
        %761 = vmatpush1.msra.mxu0 0.0
        %762 = vmatprep.subr.mxu0 0.0
        %763 = vmatpush1.msra.mxu0 0.0
        %764 = vmatprep.subr.mxu0 0.0
        %765 = vmatpush1.msra.mxu0 0.0
        %766 = vmatprep.subr.mxu0 0.0
        %767 = vmatpush1.msra.mxu0 0.0
        %768 = vmatprep.mubr.f32.mxu0 0.0
        %769 = vmatmul.mubr.f32.gmra.mrb[0].mxu0 %v699
        %v770 = vpop.f32.mrb[0].mxu0
        %v771 = vadd.f32 0.0, %v770
        %v772 = vpop.f32.mrb[0].mxu0
        %v773 = vadd.f32 0.0, %v772
        %774 = vmatprep.mubr.f32.mxu0 0.0
        %775 = vmatmul.mubr.f32.gmra.mrb[0].mxu0 %v702
        %v776 = vpop.f32.mrb[0].mxu0
        %v777 = vadd.f32 0.0, %v776
        %v778 = vpop.f32.mrb[0].mxu0
        %v779 = vadd.f32 0.0, %v778
        %780 = vdwg.mxu0
        %v781 = vadd.f32 %v685, %v771
        %v782 = vadd.f32 %v687, %v773
        %v783 = vadd.f32 %v691, %v777
        %v784 = vadd.f32 %v693, %v779
        %v785 = vld [vmem:[%s4] sm:$0xff]
        %v786 = vld [vmem:[%s4 + $0x8] sm:$0xff]
        %788 = vset.pattern.permute.xlu0 0
        %789 = vperm.xlu0 %788, %v785
        %v790 = vpop.permute.xlu0 %789
        %793 = vset.pattern.permute.xlu0 0
        %794 = vperm.xlu0 %793, %v786
        %v795 = vpop.permute.xlu0 %794
        %v797 = vadd.f32 %v781, %v790
        %v798 = vadd.f32 %v782, %v790
        %v799 = vadd.f32 %v783, %v795
        %v800 = vadd.f32 %v784, %v795
        %vm801 = vcmp.ge.f32.partialorder %v797, 0.0
        %vm802 = vcmp.ge.f32.partialorder %v798, 0.0
        %vm803 = vcmp.ge.f32.partialorder %v799, 0.0
        %vm804 = vcmp.ge.f32.partialorder %v800, 0.0
        %v805 = vmul.f32 %v797, 0.01
        %v806 = vmul.f32 %v798, 0.01
        %v807 = vmul.f32 %v799, 0.01
        %v808 = vmul.f32 %v800, 0.01
        %v809 = vsel %vm801, %v797, %v805
        %v810 = vsel %vm802, %v798, %v806
        %v811 = vsel %vm803, %v799, %v807
        %v812 = vsel %vm804, %v800, %v808
        %813 = vst [vmem:[#allocation3] sm:$0xff] %v809
        %814 = vst [vmem:[#allocation3 + $0x8] sm:$0xff] %v810
        %815 = vst [vmem:[#allocation3 + $0x10] sm:$0xff] %v811
        %816 = vst [vmem:[#allocation3 + $0x18] sm:$0xff] %v812
        %p817 = scmp.eq.s32.totalorder %s32, 0
        %s818 = sadd.s32 %s456, 2
        %p819 = scmp.gt.s32.totalorder %s818, 256
        %p820 = por %p817, %p819
        // Predicated region
        $region69: #{tpu_custom_call.1} parent=47 // pred_check
          %p821 = pneg %p820
        $region70: #{tpu_custom_call.1} parent=47 // pred_check_branch
          %823 = sbr.rel (%p821) target = $region72
        $region71: #{tpu_custom_call.1} parent=47 // pred_region
          %s824 = ssub.s32 %s436, 2
          %v825 = vadd.s32 %v439, 128
          %v826 = vstv %s824
          %v827 = vadd.s32 %v826, %v439
          %v828 = vadd.s32 %v826, %v825
          %vm829 = vcmp.ge.s32.totalorder %v827, 0
          %vm830 = vcmp.ge.s32.totalorder %v828, 0
          %vm831 = vcmp.lt.s32.totalorder %v827, 256
          %vm832 = vcmp.lt.s32.totalorder %v828, 256
          %vm833 = vmand %vm829, %vm831
          %vm834 = vmand %vm830, %vm832
          %v835 = vld [vmem:[#allocation3] sm:$0xff]
          %v836 = vld [vmem:[#allocation3 + $0x8] sm:$0xff]
          %v837 = vld [vmem:[#allocation3 + $0x10] sm:$0xff]
          %v838 = vld [vmem:[#allocation3 + $0x18] sm:$0xff]
          %v839 = vsel %vm833, 1, 0
          %v840 = vsel %vm834, 1, 0
          %vm841 = vcmp.eq.s32.totalorder %v839, 1
          %vm842 = vcmp.eq.s32.totalorder %v840, 1
          %v843 = vsel %vm841, %v835, 0.0
          %v844 = vsel %vm842, %v836, 0.0
          %v845 = vsel %vm841, %v837, 0.0
          %v846 = vsel %vm842, %v838, 0.0
          %847 = vst [vmem:[#allocation3] sm:$0xff] %v843
          %848 = vst [vmem:[#allocation3 + $0x8] sm:$0xff] %v844
          %849 = vst [vmem:[#allocation3 + $0x10] sm:$0xff] %v845
          %850 = vst [vmem:[#allocation3 + $0x18] sm:$0xff] %v846
        $region72: #{tpu_custom_call.1} parent=47 // pred_fallthru
          _
        %v851 = vld [vmem:[#allocation3] sm:$0xff]
        %v852 = vld [vmem:[#allocation3 + $0x8] sm:$0xff]
        %v853 = vld [vmem:[#allocation3 + $0x10] sm:$0xff]
        %v854 = vld [vmem:[#allocation3 + $0x18] sm:$0xff]
        %v855 = vld [vmem:[%s5] sm:$0xff]
        %v856 = vld [vmem:[%s5 + $0x8] sm:$0xff]
        %857 = vrot.lane.b32.xlu0 %v851, 126
        %v858 = vpop.permute.xlu0 %857
        %859 = vrot.lane.b32.xlu0 %v853, 126
        %v860 = vpop.permute.xlu0 %859
        %861 = vrot.lane.b32.xlu0 %v852, 126
        %v862 = vpop.permute.xlu0 %861
        %863 = vrot.lane.b32.xlu0 %v854, 126
        %v864 = vpop.permute.xlu0 %863
        %vm865 = vcmp.lt.s32.totalorder %v439, 126
        %v866 = vsel %vm865, %v858, %v862
        %v867 = vsel %vm865, %v860, %v864
        %s868 = scalar_lea.vmem %s5, 16
        %v869 = vld [vmem:[%s868] sm:$0xff]
        %v870 = vld [vmem:[%s868 + $0x8] sm:$0xff]
        %v872 = vsel %vm528, %v869, 0
        %v875 = vsel %vm528, %v870, 0
        %877 = vmatprep.subr.mxu0 0.0
        %878 = vmatpush1.msra.mxu0 %v866
        %879 = vmatprep.subr.mxu0 0.0
        %880 = vmatpush1.msra.mxu0 %v867
        %881 = vmatprep.subr.mxu0 0.0
        %882 = vmatpush1.msra.mxu0 0.0
        %883 = vmatprep.subr.mxu0 0.0
        %884 = vmatpush1.msra.mxu0 0.0
        %885 = vmatprep.subr.mxu0 0.0
        %886 = vmatpush1.msra.mxu0 0.0
        %887 = vmatprep.subr.mxu0 0.0
        %888 = vmatpush1.msra.mxu0 0.0
        %889 = vmatprep.subr.mxu0 0.0
        %890 = vmatpush1.msra.mxu0 0.0
        %891 = vmatprep.subr.mxu0 0.0
        %892 = vmatpush1.msra.mxu0 0.0
        %893 = vmatprep.subr.mxu0 0.0
        %894 = vmatpush1.msra.mxu0 0.0
        %895 = vmatprep.subr.mxu0 0.0
        %896 = vmatpush1.msra.mxu0 0.0
        %897 = vmatprep.subr.mxu0 0.0
        %898 = vmatpush1.msra.mxu0 0.0
        %899 = vmatprep.subr.mxu0 0.0
        %900 = vmatpush1.msra.mxu0 0.0
        %901 = vmatprep.subr.mxu0 0.0
        %902 = vmatpush1.msra.mxu0 0.0
        %903 = vmatprep.subr.mxu0 0.0
        %904 = vmatpush1.msra.mxu0 0.0
        %905 = vmatprep.subr.mxu0 0.0
        %906 = vmatpush1.msra.mxu0 0.0
        %907 = vmatprep.subr.mxu0 0.0
        %908 = vmatpush1.msra.mxu0 0.0
        %909 = vmatprep.subr.mxu0 0.0
        %910 = vmatpush1.msra.mxu0 0.0
        %911 = vmatprep.subr.mxu0 0.0
        %912 = vmatpush1.msra.mxu0 0.0
        %913 = vmatprep.subr.mxu0 0.0
        %914 = vmatpush1.msra.mxu0 0.0
        %915 = vmatprep.subr.mxu0 0.0
        %916 = vmatpush1.msra.mxu0 0.0
        %917 = vmatprep.subr.mxu0 0.0
        %918 = vmatpush1.msra.mxu0 0.0
        %919 = vmatprep.subr.mxu0 0.0
        %920 = vmatpush1.msra.mxu0 0.0
        %921 = vmatprep.subr.mxu0 0.0
        %922 = vmatpush1.msra.mxu0 0.0
        %923 = vmatprep.subr.mxu0 0.0
        %924 = vmatpush1.msra.mxu0 0.0
        %925 = vmatprep.subr.mxu0 0.0
        %926 = vmatpush1.msra.mxu0 0.0
        %927 = vmatprep.subr.mxu0 0.0
        %928 = vmatpush1.msra.mxu0 0.0
        %929 = vmatprep.subr.mxu0 0.0
        %930 = vmatpush1.msra.mxu0 0.0
        %931 = vmatprep.subr.mxu0 0.0
        %932 = vmatpush1.msra.mxu0 0.0
        %933 = vmatprep.subr.mxu0 0.0
        %934 = vmatpush1.msra.mxu0 0.0
        %935 = vmatprep.subr.mxu0 0.0
        %936 = vmatpush1.msra.mxu0 0.0
        %937 = vmatprep.subr.mxu0 0.0
        %938 = vmatpush1.msra.mxu0 0.0
        %939 = vmatprep.subr.mxu0 0.0
        %940 = vmatpush1.msra.mxu0 0.0
        %941 = vmatprep.mubr.f32.mxu0 0.0
        %942 = vmatmul.mubr.f32.gmra.mrb[0].mxu0 %v872
        %v943 = vpop.f32.mrb[0].mxu0
        %v944 = vadd.f32 0.0, %v943
        %v945 = vpop.f32.mrb[0].mxu0
        %946 = vmatprep.mubr.f32.mxu0 0.0
        %947 = vmatmul.mubr.f32.gmra.mrb[0].mxu0 %v875
        %v948 = vpop.f32.mrb[0].mxu0
        %v949 = vadd.f32 0.0, %v948
        %v950 = vpop.f32.mrb[0].mxu0
        %951 = vdwg.mxu0
        %v953 = vsel %vm528, %v855, 0
        %v956 = vsel %vm528, %v856, 0
        %958 = vmatprep.subr.mxu0 0.0
        %959 = vmatpush1.msra.mxu0 %v851
        %960 = vmatprep.subr.mxu0 0.0
        %961 = vmatpush1.msra.mxu0 %v853
        %962 = vmatprep.subr.mxu0 0.0
        %963 = vmatpush1.msra.mxu0 0.0
        %964 = vmatprep.subr.mxu0 0.0
        %965 = vmatpush1.msra.mxu0 0.0
        %966 = vmatprep.subr.mxu0 0.0
        %967 = vmatpush1.msra.mxu0 0.0
        %968 = vmatprep.subr.mxu0 0.0
        %969 = vmatpush1.msra.mxu0 0.0
        %970 = vmatprep.subr.mxu0 0.0
        %971 = vmatpush1.msra.mxu0 0.0
        %972 = vmatprep.subr.mxu0 0.0
        %973 = vmatpush1.msra.mxu0 0.0
        %974 = vmatprep.subr.mxu0 0.0
        %975 = vmatpush1.msra.mxu0 0.0
        %976 = vmatprep.subr.mxu0 0.0
        %977 = vmatpush1.msra.mxu0 0.0
        %978 = vmatprep.subr.mxu0 0.0
        %979 = vmatpush1.msra.mxu0 0.0
        %980 = vmatprep.subr.mxu0 0.0
        %981 = vmatpush1.msra.mxu0 0.0
        %982 = vmatprep.subr.mxu0 0.0
        %983 = vmatpush1.msra.mxu0 0.0
        %984 = vmatprep.subr.mxu0 0.0
        %985 = vmatpush1.msra.mxu0 0.0
        %986 = vmatprep.subr.mxu0 0.0
        %987 = vmatpush1.msra.mxu0 0.0
        %988 = vmatprep.subr.mxu0 0.0
        %989 = vmatpush1.msra.mxu0 0.0
        %990 = vmatprep.subr.mxu0 0.0
        %991 = vmatpush1.msra.mxu0 0.0
        %992 = vmatprep.subr.mxu0 0.0
        %993 = vmatpush1.msra.mxu0 0.0
        %994 = vmatprep.subr.mxu0 0.0
        %995 = vmatpush1.msra.mxu0 0.0
        %996 = vmatprep.subr.mxu0 0.0
        %997 = vmatpush1.msra.mxu0 0.0
        %998 = vmatprep.subr.mxu0 0.0
        %999 = vmatpush1.msra.mxu0 0.0
        %1000 = vmatprep.subr.mxu0 0.0
        %1001 = vmatpush1.msra.mxu0 0.0
        %1002 = vmatprep.subr.mxu0 0.0
        %1003 = vmatpush1.msra.mxu0 0.0
        %1004 = vmatprep.subr.mxu0 0.0
        %1005 = vmatpush1.msra.mxu0 0.0
        %1006 = vmatprep.subr.mxu0 0.0
        %1007 = vmatpush1.msra.mxu0 0.0
        %1008 = vmatprep.subr.mxu0 0.0
        %1009 = vmatpush1.msra.mxu0 0.0
        %1010 = vmatprep.subr.mxu0 0.0
        %1011 = vmatpush1.msra.mxu0 0.0
        %1012 = vmatprep.subr.mxu0 0.0
        %1013 = vmatpush1.msra.mxu0 0.0
        %1014 = vmatprep.subr.mxu0 0.0
        %1015 = vmatpush1.msra.mxu0 0.0
        %1016 = vmatprep.subr.mxu0 0.0
        %1017 = vmatpush1.msra.mxu0 0.0
        %1018 = vmatprep.subr.mxu0 0.0
        %1019 = vmatpush1.msra.mxu0 0.0
        %1020 = vmatprep.subr.mxu0 0.0
        %1021 = vmatpush1.msra.mxu0 0.0
        %1022 = vmatprep.mubr.f32.mxu0 0.0
        %1023 = vmatmul.mubr.f32.gmra.mrb[0].mxu0 %v953
        %v1024 = vpop.f32.mrb[0].mxu0
        %v1025 = vadd.f32 %v944, %v1024
        %v1026 = vpop.f32.mrb[0].mxu0
        %1027 = vmatprep.mubr.f32.mxu0 0.0
        %1028 = vmatmul.mubr.f32.gmra.mrb[0].mxu0 %v956
        %v1029 = vpop.f32.mrb[0].mxu0
        %v1030 = vadd.f32 %v949, %v1029
        %v1031 = vpop.f32.mrb[0].mxu0
        %1032 = vdwg.mxu0
        %1033 = vrot.lane.b32.xlu0 %v851, 124
        %v1034 = vpop.permute.xlu0 %1033
        %1035 = vrot.lane.b32.xlu0 %v853, 124
        %v1036 = vpop.permute.xlu0 %1035
        %1037 = vrot.lane.b32.xlu0 %v852, 124
        %v1038 = vpop.permute.xlu0 %1037
        %1039 = vrot.lane.b32.xlu0 %v854, 124
        %v1040 = vpop.permute.xlu0 %1039
        %vm1041 = vcmp.lt.s32.totalorder %v439, 124
        %v1042 = vsel %vm1041, %v1034, %v1038
        %v1043 = vsel %vm1041, %v1036, %v1040
        %s1044 = scalar_lea.vmem %s5, 32
        %v1045 = vld [vmem:[%s1044] sm:$0xff]
        %v1046 = vld [vmem:[%s1044 + $0x8] sm:$0xff]
        %v1048 = vsel %vm528, %v1045, 0
        %v1051 = vsel %vm528, %v1046, 0
        %1053 = vmatprep.subr.mxu0 0.0
        %1054 = vmatpush1.msra.mxu0 %v1042
        %1055 = vmatprep.subr.mxu0 0.0
        %1056 = vmatpush1.msra.mxu0 %v1043
        %1057 = vmatprep.subr.mxu0 0.0
        %1058 = vmatpush1.msra.mxu0 0.0
        %1059 = vmatprep.subr.mxu0 0.0
        %1060 = vmatpush1.msra.mxu0 0.0
        %1061 = vmatprep.subr.mxu0 0.0
        %1062 = vmatpush1.msra.mxu0 0.0
        %1063 = vmatprep.subr.mxu0 0.0
        %1064 = vmatpush1.msra.mxu0 0.0
        %1065 = vmatprep.subr.mxu0 0.0
        %1066 = vmatpush1.msra.mxu0 0.0
        %1067 = vmatprep.subr.mxu0 0.0
        %1068 = vmatpush1.msra.mxu0 0.0
        %1069 = vmatprep.subr.mxu0 0.0
        %1070 = vmatpush1.msra.mxu0 0.0
        %1071 = vmatprep.subr.mxu0 0.0
        %1072 = vmatpush1.msra.mxu0 0.0
        %1073 = vmatprep.subr.mxu0 0.0
        %1074 = vmatpush1.msra.mxu0 0.0
        %1075 = vmatprep.subr.mxu0 0.0
        %1076 = vmatpush1.msra.mxu0 0.0
        %1077 = vmatprep.subr.mxu0 0.0
        %1078 = vmatpush1.msra.mxu0 0.0
        %1079 = vmatprep.subr.mxu0 0.0
        %1080 = vmatpush1.msra.mxu0 0.0
        %1081 = vmatprep.subr.mxu0 0.0
        %1082 = vmatpush1.msra.mxu0 0.0
        %1083 = vmatprep.subr.mxu0 0.0
        %1084 = vmatpush1.msra.mxu0 0.0
        %1085 = vmatprep.subr.mxu0 0.0
        %1086 = vmatpush1.msra.mxu0 0.0
        %1087 = vmatprep.subr.mxu0 0.0
        %1088 = vmatpush1.msra.mxu0 0.0
        %1089 = vmatprep.subr.mxu0 0.0
        %1090 = vmatpush1.msra.mxu0 0.0
        %1091 = vmatprep.subr.mxu0 0.0
        %1092 = vmatpush1.msra.mxu0 0.0
        %1093 = vmatprep.subr.mxu0 0.0
        %1094 = vmatpush1.msra.mxu0 0.0
        %1095 = vmatprep.subr.mxu0 0.0
        %1096 = vmatpush1.msra.mxu0 0.0
        %1097 = vmatprep.subr.mxu0 0.0
        %1098 = vmatpush1.msra.mxu0 0.0
        %1099 = vmatprep.subr.mxu0 0.0
        %1100 = vmatpush1.msra.mxu0 0.0
        %1101 = vmatprep.subr.mxu0 0.0
        %1102 = vmatpush1.msra.mxu0 0.0
        %1103 = vmatprep.subr.mxu0 0.0
        %1104 = vmatpush1.msra.mxu0 0.0
        %1105 = vmatprep.subr.mxu0 0.0
        %1106 = vmatpush1.msra.mxu0 0.0
        %1107 = vmatprep.subr.mxu0 0.0
        %1108 = vmatpush1.msra.mxu0 0.0
        %1109 = vmatprep.subr.mxu0 0.0
        %1110 = vmatpush1.msra.mxu0 0.0
        %1111 = vmatprep.subr.mxu0 0.0
        %1112 = vmatpush1.msra.mxu0 0.0
        %1113 = vmatprep.subr.mxu0 0.0
        %1114 = vmatpush1.msra.mxu0 0.0
        %1115 = vmatprep.subr.mxu0 0.0
        %1116 = vmatpush1.msra.mxu0 0.0
        %1117 = vmatprep.mubr.f32.mxu0 0.0
        %1118 = vmatmul.mubr.f32.gmra.mrb[0].mxu0 %v1048
        %v1119 = vpop.f32.mrb[0].mxu0
        %v1120 = vadd.f32 0.0, %v1119
        %v1121 = vpop.f32.mrb[0].mxu0
        %1122 = vmatprep.mubr.f32.mxu0 0.0
        %1123 = vmatmul.mubr.f32.gmra.mrb[0].mxu0 %v1051
        %v1124 = vpop.f32.mrb[0].mxu0
        %v1125 = vadd.f32 0.0, %v1124
        %v1126 = vpop.f32.mrb[0].mxu0
        %1127 = vdwg.mxu0
        %v1128 = vadd.f32 %v1025, %v1120
        %v1129 = vadd.f32 %v1030, %v1125
        %v1130 = vld [vmem:[%s376] sm:$0xff]
        %v1131 = vld [vmem:[%s376 + $0x8] sm:$0xff]
        %v1132 = vadd.f32 %v1130, %v1128
        %v1133 = vadd.f32 %v1131, %v1129
        %v1134 = vld [vmem:[%s6] sm:$0xff]
        %v1135 = vld [vmem:[%s6 + $0x8] sm:$0xff]
        %1137 = vset.pattern.permute.xlu0 0
        %1138 = vperm.xlu0 %1137, %v1134
        %v1139 = vpop.permute.xlu0 %1138
        %1142 = vset.pattern.permute.xlu0 0
        %1143 = vperm.xlu0 %1142, %v1135
        %v1144 = vpop.permute.xlu0 %1143
        %v1146 = vadd.f32 %v1132, %v1139
        %v1147 = vadd.f32 %v1133, %v1144
        %1148 = vst [vmem:[%s429] sm:$0xff] %v1146
        %1149 = vst [vmem:[%s429 + $0x8] sm:$0xff] %v1147
        %s1150 = sand.u32 %s230, 1
        %s1151 = scalar_lea.sflag [#allocation6], %s1150
        %s1152 = sand.u32 %s230, 1
        %s1153 = smul.addr %s1152, 16
        %s1154 = scalar_lea.vmem [#allocation12], %s1153
        // Predicated region
        $region73: #{tpu_custom_call.1} parent=47 // pred_check
          %p1155 = pneg %p240
        $region74: #{tpu_custom_call.1} parent=47 // pred_check_branch
          %1157 = sbr.rel (%p1155) target = $region76
        $region75: #{tpu_custom_call.1} parent=47 // pred_region
          %s1159 = ssub.s32 256, 256
          %1160 = vsyncadd %s1151, %s1159
          %s1161 = smul.addr %s33, 4
          %s1162 = sadd.s32 %s32, %s1161
          %s1163 = smul.addr %s1162, 128
          %s1164 = scalar_lea.hbm %s7, %s1163
          %s1165 = sshll.u32 %s1154, 4
          %s1166 = int_to_ptr.vmem [resolvable:$true] %s1165
          %1171 = dma.vmem_to_hbm [thread:$0]  %s1166, 256, %s1164, %s1151, 128, 256, 8
        $region76: #{tpu_custom_call.1} parent=47 // pred_fallthru
          _
      $region48: #{tpu_custom_call.1} parent=5 // pred_fallthru
        _
      %p1172 = scmp.le.s32.totalorder 2, %s23
      // Predicated region
      $region77: #{tpu_custom_call.1} parent=5 // pred_check
        %p1173 = pneg %p1172
      $region78: #{tpu_custom_call.1} parent=5 // pred_check_branch
        %1175 = sbr.rel (%p1173) target = $region80
      $region79: #{tpu_custom_call.1} parent=5 // pred_region
        %s1176 = ssub.s32 %s23, 2
        // Predicated region
        $region81: #{tpu_custom_call.1} parent=79 // pred_check
          %p1177 = pneg %p246
        $region82: #{tpu_custom_call.1} parent=79 // pred_check_branch
          %1179 = sbr.rel (%p1177) target = $region84
        $region83: #{tpu_custom_call.1} parent=79 // pred_region
          %s1180 = sand.u32 %s231, 1
          %s1181 = scalar_lea.sflag [#allocation6], %s1180
          %s1182 = sand.u32 %s231, 1
          %s1183 = smul.addr %s1182, 16
          %s1184 = scalar_lea.vmem [#allocation12], %s1183
          %1185 = dma.done %s1181, 256
        $region84: #{tpu_custom_call.1} parent=79 // pred_fallthru
          _
      $region80: #{tpu_custom_call.1} parent=5 // pred_fallthru
        _
    $region6: #{tpu_custom_call.1} parent=1 // loop_footer
      %s27 = sadd.s32 1, %s23
    $region7: #{tpu_custom_call.1} parent=1 // loop_footer_branch
      %22 = sbr.rel target = $region3
    $region8: #{tpu_custom_call.1} parent=1 // loop_exit
      _
    %1186 = vsyncpa [#allocation5], 1
    %s1187 = scalar_lea.sflag [#allocation5], 1
    %1188 = vsyncpa %s1187, 1
    %1189 = vsyncpa [#allocation8], 1
    %s1190 = scalar_lea.sflag [#allocation8], 1
    %1191 = vsyncpa %s1190, 1
    %1192 = vsyncpa [#allocation11], 1
    %1193 = vsyncpa [#allocation6], 1
    %s1194 = scalar_lea.sflag [#allocation6], 1
    %1195 = vsyncpa %s1194, 1

// kernel: tpu_custom_call.1
$region0: #{tpu_custom_call.1}
  #allocation0 [shape = 'u32[]', space=smem, size = 0x4, offset = 0x4, fixed_abs, tag = 'smem constant byte address 0x4 - core index']
  #allocation1 [shape = 'u32[144,128]{1,0:T(1,128)}', space=vmem, size = 0x12000, scoped, tag = 'internal scratch']
  #allocation2 [shape = 'f32[16,384]{1,0:T(8,128)}', space=vmem, size = 0x6000, scoped, tag = 'scratch operand']
  #allocation3 [shape = 'f32[16,256]{1,0:T(8,128)}', space=vmem, size = 0x4000, scoped, tag = 'scratch operand']
  %s0 = inlined_call_operand.hbm [shape: f32[2,16,256], index: 0, kind: input, shape index: {}]
  %s1 = inlined_call_operand.hbm [shape: f32[2,16,256], index: 1, kind: input, shape index: {}]
  %s2 = inlined_call_operand.hbm [shape: f32[2,16,256], index: 2, kind: input, shape index: {}]
  %s3 = inlined_call_operand.hbm [shape: f32[3,16,16], index: 3, kind: input, shape index: {}]
  %s4 = inlined_call_operand.vmem [shape: f32[16,1], index: 4, kind: input, shape index: {}]
  %s5 = inlined_call_operand.vmem [shape: f32[3,16,16], index: 5, kind: input, shape index: {}]
  %s6 = inlined_call_operand.vmem [shape: f32[16,1], index: 6, kind: input, shape index: {}]
  %s7 = inlined_call_operand.hbm [shape: f32[2,16,256], index: 7, kind: output, shape index: {}]
  %s8 = sld [smem:[#allocation0]]
  $region85: #{tpu_custom_call.1} parent=0
    _
  %s10 = ssub.s32 1, %s8
  %s11 = scalar_select 0, %s10, %s8
  $region1: #{tpu_custom_call.1} parent=0
    #allocation4 [shape = 'u8[16384]{0}', space=vmem, size = 0x4000, scoped, tag = 'input window, operand 0']
    #allocation5 [shape = 's32[2]{0}', space=sflag, size = 0x8, scoped, tag = 'scoped memory for tpu_custom_call.1']
    #allocation6 [shape = 's32[2]{0}', space=sflag, size = 0x8, scoped, tag = 'scoped memory for tpu_custom_call.1']
    #allocation7 [shape = 'u8[16384]{0}', space=vmem, size = 0x4000, scoped, tag = 'input window, operand 1']
    #allocation8 [shape = 's32[2]{0}', space=sflag, size = 0x8, scoped, tag = 'scoped memory for tpu_custom_call.1']
    #allocation9 [shape = 'u8[16384]{0}', space=vmem, size = 0x4000, scoped, tag = 'input window, operand 2']
    #allocation10 [shape = 'u8[24576]{0}', space=vmem, size = 0x6000, scoped, tag = 'input window, operand 3, single buffered']
    #allocation11 [shape = 's32[1]{0}', space=sflag, size = 0x4, scoped, tag = 'scoped memory for tpu_custom_call.1']
    #allocation12 [shape = 'u8[16384]{0}', space=vmem, size = 0x4000, scoped, tag = 'output window, operand 0']
    %12 = vsyncpa [#allocation5], 0
    %s13 = scalar_lea.sflag [#allocation5], 1
    %14 = vsyncpa %s13, 0
    %15 = vsyncpa [#allocation8], 0
    %s16 = scalar_lea.sflag [#allocation8], 1
    %17 = vsyncpa %s16, 0
    %18 = vsyncpa [#allocation11], 0
    %19 = vsyncpa [#allocation6], 0
    %s20 = scalar_lea.sflag [#allocation6], 1
    %21 = vsyncpa %s20, 0
    loop: start=0, step=1, limit=6
    $region2: #{tpu_custom_call.1} parent=1 // loop_pre_header
      _
    $region3: #{tpu_custom_call.1} parent=1 // loop_header
      %s23 = sphi 0, %s27
      %p24 = scmp.ge.s32.totalorder %s23, 6
      %s30 = sphi 0, %s42
      %s31 = sphi 0, %s38
      %s32 = sphi 0, %s30
      %s33 = sphi 0, %s31
      %s34 = sphi 0, %s32
      %s35 = sphi 0, %s33
      %s53 = sphi 0, %s55
      %s56 = sphi 0, %s53
      %s57 = sphi 0, %s56
      %s73 = sphi 0, %s57
      %s81 = sphi 0, %s83
      %s84 = sphi 0, %s81
      %s85 = sphi 0, %s84
      %s101 = sphi 0, %s85
      %s115 = sphi 0, %s117
      %s118 = sphi 0, %s115
      %s119 = sphi 0, %s118
      %s135 = sphi 0, %s119
      %s139 = sphi 0, %s139
      %s141 = sphi 0, %s139
      %s142 = sphi 0, %s141
      %s156 = sphi 0, %s142
      %s160 = sphi 0, %s160
      %s162 = sphi 0, %s160
      %s163 = sphi 0, %s162
      %s177 = sphi 0, %s163
      %s181 = sphi 0, %s181
      %s183 = sphi 0, %s181
      %s184 = sphi 0, %s183
      %s198 = sphi 0, %s184
      %s202 = sphi 0, %s202
      %s204 = sphi 0, %s202
      %s205 = sphi 0, %s204
      %s219 = sphi 0, %s205
      %s227 = sphi 0, %s229
      %s230 = sphi 0, %s227
      %s231 = sphi 0, %s230
      %s247 = sphi 0, %s231
    $region4: #{tpu_custom_call.1} parent=1 // loop_header_branch
      %26 = sbr.rel (%p24) target = $region8
    $region5: #{tpu_custom_call.1} parent=1 // loop_body
      %s28 = ssub.s32 %s23, 1
      %s29 = ssub.s32 %s23, 2
      %s36 = sadd.s32 1, %s31
      %p37 = scmp.ge.s32.totalorder %s36, 2
      %s38 = scalar_select %p37, 0, %s36
      %s39 = sadd.s32 1, %s30
      %s40 = scalar_select %p37, %s39, %s30
      %p41 = scmp.ge.s32.totalorder %s40, 2
      %s42 = scalar_select %p41, 0, %s40
      %s43 = ssub.s32 %s30, 1
      %p44 = scmp.gt.s32.totalorder %s43, 0
      %s45 = scalar_select %p44, %s43, 0
      %s46 = ssub.s32 %s42, 1
      %p47 = scmp.gt.s32.totalorder %s46, 0
      %s48 = scalar_select %p47, %s46, 0
      %s49 = ssub.s32 %s31, %s38
      %s50 = ssub.s32 %s45, %s48
      %s51 = sor.u32 %s49, %s50
      %p52 = scmp.eq.s32.totalorder %s51, 0
      %s54 = sadd.s32 %s53, 1
      %s55 = scalar_select %p52, %s53, %s54
      %p58 = pneg %p52
      %p59 = scmp.eq.s32.totalorder %s23, 3
      %p60 = por %p58, %p59
      %p61 = scmp.ne.s32.totalorder %s53, %s56
      %p62 = scmp.eq.s32.totalorder %s23, 0
      %p63 = por %p61, %p62
      %p64 = scmp.ne.s32.totalorder %s53, %s56
      %p65 = scmp.eq.s32.totalorder %s28, 3
      %p66 = por %p64, %p65
      %p67 = scmp.ne.s32.totalorder %s56, %s57
      %p68 = scmp.eq.s32.totalorder %s28, 0
      %p69 = por %p67, %p68
      %p70 = scmp.ne.s32.totalorder %s56, %s57
      %p71 = scmp.eq.s32.totalorder %s29, 3
      %p72 = por %p70, %p71
      %p74 = scmp.ne.s32.totalorder %s57, %s73
      %p75 = scmp.eq.s32.totalorder %s29, 0
      %p76 = por %p74, %p75
      %s77 = ssub.s32 %s31, %s38
      %s78 = ssub.s32 %s30, %s42
      %s79 = sor.u32 %s77, %s78
      %p80 = scmp.eq.s32.totalorder %s79, 0
      %s82 = sadd.s32 %s81, 1
      %s83 = scalar_select %p80, %s81, %s82
      %p86 = pneg %p80
      %p87 = scmp.eq.s32.totalorder %s23, 3
      %p88 = por %p86, %p87
      %p89 = scmp.ne.s32.totalorder %s81, %s84
      %p90 = scmp.eq.s32.totalorder %s23, 0
      %p91 = por %p89, %p90
      %p92 = scmp.ne.s32.totalorder %s81, %s84
      %p93 = scmp.eq.s32.totalorder %s28, 3
      %p94 = por %p92, %p93
      %p95 = scmp.ne.s32.totalorder %s84, %s85
      %p96 = scmp.eq.s32.totalorder %s28, 0
      %p97 = por %p95, %p96
      %p98 = scmp.ne.s32.totalorder %s84, %s85
      %p99 = scmp.eq.s32.totalorder %s29, 3
      %p100 = por %p98, %p99
      %p102 = scmp.ne.s32.totalorder %s85, %s101
      %p103 = scmp.eq.s32.totalorder %s29, 0
      %p104 = por %p102, %p103
      %s105 = sadd.s32 %s30, 1
      %p106 = scmp.lt.s32.totalorder %s105, 1
      %s107 = scalar_select %p106, %s105, 1
      %s108 = sadd.s32 %s42, 1
      %p109 = scmp.lt.s32.totalorder %s108, 1
      %s110 = scalar_select %p109, %s108, 1
      %s111 = ssub.s32 %s31, %s38
      %s112 = ssub.s32 %s107, %s110
      %s113 = sor.u32 %s111, %s112
      %p114 = scmp.eq.s32.totalorder %s113, 0
      %s116 = sadd.s32 %s115, 1
      %s117 = scalar_select %p114, %s115, %s116
      %p120 = pneg %p114
      %p121 = scmp.eq.s32.totalorder %s23, 3
      %p122 = por %p120, %p121
      %p123 = scmp.ne.s32.totalorder %s115, %s118
      %p124 = scmp.eq.s32.totalorder %s23, 0
      %p125 = por %p123, %p124
      %p126 = scmp.ne.s32.totalorder %s115, %s118
      %p127 = scmp.eq.s32.totalorder %s28, 3
      %p128 = por %p126, %p127
      %p129 = scmp.ne.s32.totalorder %s118, %s119
      %p130 = scmp.eq.s32.totalorder %s28, 0
      %p131 = por %p129, %p130
      %p132 = scmp.ne.s32.totalorder %s118, %s119
      %p133 = scmp.eq.s32.totalorder %s29, 3
      %p134 = por %p132, %p133
      %p136 = scmp.ne.s32.totalorder %s119, %s135
      %p137 = scmp.eq.s32.totalorder %s29, 0
      %p138 = por %p136, %p137
      %s140 = sadd.s32 %s139, 1
      %p143 = scmp.eq.s32.totalorder %s23, 3
      %p144 = scmp.ne.s32.totalorder %s139, %s141
      %p145 = scmp.eq.s32.totalorder %s23, 0
      %p146 = por %p144, %p145
      %p147 = scmp.ne.s32.totalorder %s139, %s141
      %p148 = scmp.eq.s32.totalorder %s28, 3
      %p149 = por %p147, %p148
      %p150 = scmp.ne.s32.totalorder %s141, %s142
      %p151 = scmp.eq.s32.totalorder %s28, 0
      %p152 = por %p150, %p151
      %p153 = scmp.ne.s32.totalorder %s141, %s142
      %p154 = scmp.eq.s32.totalorder %s29, 3
      %p155 = por %p153, %p154
      %p157 = scmp.ne.s32.totalorder %s142, %s156
      %p158 = scmp.eq.s32.totalorder %s29, 0
      %p159 = por %p157, %p158
      %s161 = sadd.s32 %s160, 1
      %p164 = scmp.eq.s32.totalorder %s23, 3
      %p165 = scmp.ne.s32.totalorder %s160, %s162
      %p166 = scmp.eq.s32.totalorder %s23, 0
      %p167 = por %p165, %p166
      %p168 = scmp.ne.s32.totalorder %s160, %s162
      %p169 = scmp.eq.s32.totalorder %s28, 3
      %p170 = por %p168, %p169
      %p171 = scmp.ne.s32.totalorder %s162, %s163
      %p172 = scmp.eq.s32.totalorder %s28, 0
      %p173 = por %p171, %p172
      %p174 = scmp.ne.s32.totalorder %s162, %s163
      %p175 = scmp.eq.s32.totalorder %s29, 3
      %p176 = por %p174, %p175
      %p178 = scmp.ne.s32.totalorder %s163, %s177
      %p179 = scmp.eq.s32.totalorder %s29, 0
      %p180 = por %p178, %p179
      %s182 = sadd.s32 %s181, 1
      %p185 = scmp.eq.s32.totalorder %s23, 3
      %p186 = scmp.ne.s32.totalorder %s181, %s183
      %p187 = scmp.eq.s32.totalorder %s23, 0
      %p188 = por %p186, %p187
      %p189 = scmp.ne.s32.totalorder %s181, %s183
      %p190 = scmp.eq.s32.totalorder %s28, 3
      %p191 = por %p189, %p190
      %p192 = scmp.ne.s32.totalorder %s183, %s184
      %p193 = scmp.eq.s32.totalorder %s28, 0
      %p194 = por %p192, %p193
      %p195 = scmp.ne.s32.totalorder %s183, %s184
      %p196 = scmp.eq.s32.totalorder %s29, 3
      %p197 = por %p195, %p196
      %p199 = scmp.ne.s32.totalorder %s184, %s198
      %p200 = scmp.eq.s32.totalorder %s29, 0
      %p201 = por %p199, %p200
      %s203 = sadd.s32 %s202, 1
      %p206 = scmp.eq.s32.totalorder %s23, 3
      %p207 = scmp.ne.s32.totalorder %s202, %s204
      %p208 = scmp.eq.s32.totalorder %s23, 0
      %p209 = por %p207, %p208
      %p210 = scmp.ne.s32.totalorder %s202, %s204
      %p211 = scmp.eq.s32.totalorder %s28, 3
      %p212 = por %p210, %p211
      %p213 = scmp.ne.s32.totalorder %s204, %s205
      %p214 = scmp.eq.s32.totalorder %s28, 0
      %p215 = por %p213, %p214
      %p216 = scmp.ne.s32.totalorder %s204, %s205
      %p217 = scmp.eq.s32.totalorder %s29, 3
      %p218 = por %p216, %p217
      %p220 = scmp.ne.s32.totalorder %s205, %s219
      %p221 = scmp.eq.s32.totalorder %s29, 0
      %p222 = por %p220, %p221
      %s223 = ssub.s32 %s31, %s38
      %s224 = ssub.s32 %s30, %s42
      %s225 = sor.u32 %s223, %s224
      %p226 = scmp.eq.s32.totalorder %s225, 0
      %s228 = sadd.s32 %s227, 1
      %s229 = scalar_select %p226, %s227, %s228
      %p232 = pneg %p226
      %p233 = scmp.eq.s32.totalorder %s23, 3
      %p234 = por %p232, %p233
      %p235 = scmp.ne.s32.totalorder %s227, %s230
      %p236 = scmp.eq.s32.totalorder %s23, 0
      %p237 = por %p235, %p236
      %p238 = scmp.ne.s32.totalorder %s227, %s230
      %p239 = scmp.eq.s32.totalorder %s28, 3
      %p240 = por %p238, %p239
      %p241 = scmp.ne.s32.totalorder %s230, %s231
      %p242 = scmp.eq.s32.totalorder %s28, 0
      %p243 = por %p241, %p242
      %p244 = scmp.ne.s32.totalorder %s230, %s231
      %p245 = scmp.eq.s32.totalorder %s29, 3
      %p246 = por %p244, %p245
      %p248 = scmp.ne.s32.totalorder %s231, %s247
      %p249 = scmp.eq.s32.totalorder %s29, 0
      %p250 = por %p248, %p249
      %p251 = scmp.le.s32.totalorder 1, %s23
      %p252 = scmp.lt.s32.totalorder %s23, 5
      %p253 = pnand %p251, %p252
      %p254 = pneg %p253
      // Predicated region
      $region9: #{tpu_custom_call.1} parent=5 // pred_check
        _
      $region10: #{tpu_custom_call.1} parent=5 // pred_check_branch
        %256 = sbr.rel (%p253) target = $region12
      $region11: #{tpu_custom_call.1} parent=5 // pred_region
        %s257 = ssub.s32 %s23, 1
        // Predicated region
        $region13: #{tpu_custom_call.1} parent=11 // pred_check
          %p258 = pneg %p152
        $region14: #{tpu_custom_call.1} parent=11 // pred_check_branch
          %260 = sbr.rel (%p258) target = $region16
        $region15: #{tpu_custom_call.1} parent=11 // pred_region
          %s262 = ssub.s32 768, 768
          %263 = vsyncadd [#allocation11], %s262
          %s264 = sshll.u32 [#allocation10], 4
          %s265 = int_to_ptr.vmem [resolvable:$true] %s264
          %270 = dma.hbm_to_vmem [thread:$0]  %s3, 768, %s265, [#allocation11], 128, 128, 8
        $region16: #{tpu_custom_call.1} parent=11 // pred_fallthru
          _
        // Predicated region
        $region17: #{tpu_custom_call.1} parent=11 // pred_check
          %p271 = pneg %p173
        $region18: #{tpu_custom_call.1} parent=11 // pred_check_branch
          %273 = sbr.rel (%p271) target = $region20
        $region19: #{tpu_custom_call.1} parent=11 // pred_region
          _
        $region20: #{tpu_custom_call.1} parent=11 // pred_fallthru
          _
        // Predicated region
        $region21: #{tpu_custom_call.1} parent=11 // pred_check
          %p274 = pneg %p194
        $region22: #{tpu_custom_call.1} parent=11 // pred_check_branch
          %276 = sbr.rel (%p274) target = $region24
        $region23: #{tpu_custom_call.1} parent=11 // pred_region
          _
        $region24: #{tpu_custom_call.1} parent=11 // pred_fallthru
          _
        // Predicated region
        $region25: #{tpu_custom_call.1} parent=11 // pred_check
          %p277 = pneg %p215
        $region26: #{tpu_custom_call.1} parent=11 // pred_check_branch
          %279 = sbr.rel (%p277) target = $region28
        $region27: #{tpu_custom_call.1} parent=11 // pred_region
          _
        $region28: #{tpu_custom_call.1} parent=11 // pred_fallthru
          _
      $region12: #{tpu_custom_call.1} parent=5 // pred_fallthru
        _
      %p280 = scmp.lt.s32.totalorder %s23, 4
      // Predicated region
      $region29: #{tpu_custom_call.1} parent=5 // pred_check
        %p281 = pneg %p280
      $region30: #{tpu_custom_call.1} parent=5 // pred_check_branch
        %283 = sbr.rel (%p281) target = $region32
      $region31: #{tpu_custom_call.1} parent=5 // pred_region
        // Predicated region
        $region33: #{tpu_custom_call.1} parent=31 // pred_check
          %p284 = pneg %p63
        $region34: #{tpu_custom_call.1} parent=31 // pred_check_branch
          %286 = sbr.rel (%p284) target = $region36
        $region35: #{tpu_custom_call.1} parent=31 // pred_region
          %s287 = sand.u32 %s53, 1
          %s288 = scalar_lea.sflag [#allocation5], %s287
          %s289 = sand.u32 %s53, 1
          %s290 = smul.addr %s289, 16
          %s291 = scalar_lea.vmem [#allocation4], %s290
          %s292 = ssub.s32 %s30, 1
          %p293 = scmp.gt.s32.totalorder %s292, 0
          %s294 = scalar_select %p293, %s292, 0
          %s296 = ssub.s32 256, 256
          %297 = vsyncadd %s288, %s296
          %s298 = smul.addr %s31, 4
          %s299 = sadd.s32 %s294, %s298
          %s300 = smul.addr %s299, 128
          %s301 = scalar_lea.hbm %s0, %s300
          %s302 = sshll.u32 %s291, 4
          %s303 = int_to_ptr.vmem [resolvable:$true] %s302
          %308 = dma.hbm_to_vmem [thread:$0]  %s301, 256, %s303, %s288, 256, 128, 8
        $region36: #{tpu_custom_call.1} parent=31 // pred_fallthru
          _
        // Predicated region
        $region37: #{tpu_custom_call.1} parent=31 // pred_check
          %p309 = pneg %p91
        $region38: #{tpu_custom_call.1} parent=31 // pred_check_branch
          %311 = sbr.rel (%p309) target = $region40
        $region39: #{tpu_custom_call.1} parent=31 // pred_region
          %s312 = sand.u32 %s23, 1
          %s313 = scalar_lea.sflag [#allocation8], %s312
          %s314 = sand.u32 %s81, 1
          %s315 = smul.addr %s314, 16
          %s316 = scalar_lea.vmem [#allocation7], %s315
          %s318 = ssub.s32 256, 256
          %319 = vsyncadd %s313, %s318
          %s320 = smul.addr %s31, 4
          %s321 = sadd.s32 %s30, %s320
          %s322 = smul.addr %s321, 128
          %s323 = scalar_lea.hbm %s1, %s322
          %s324 = sshll.u32 %s316, 4
          %s325 = int_to_ptr.vmem [resolvable:$true] %s324
          %330 = dma.hbm_to_vmem [thread:$0]  %s323, 256, %s325, %s313, 256, 128, 8
        $region40: #{tpu_custom_call.1} parent=31 // pred_fallthru
          _
        // Predicated region
        $region41: #{tpu_custom_call.1} parent=31 // pred_check
          %p331 = pneg %p125
        $region42: #{tpu_custom_call.1} parent=31 // pred_check_branch
          %333 = sbr.rel (%p331) target = $region44
        $region43: #{tpu_custom_call.1} parent=31 // pred_region
          %s334 = sand.u32 %s23, 1
          %s335 = scalar_lea.sflag [#allocation8], %s334
          %s336 = sand.u32 %s115, 1
          %s337 = smul.addr %s336, 16
          %s338 = scalar_lea.vmem [#allocation9], %s337
          %s339 = sadd.s32 %s30, 1
          %p340 = scmp.lt.s32.totalorder %s339, 1
          %s341 = scalar_select %p340, %s339, 1
          %s343 = ssub.s32 256, 256
          %344 = vsyncadd %s335, %s343
          %s345 = smul.addr %s31, 4
          %s346 = sadd.s32 %s341, %s345
          %s347 = smul.addr %s346, 128
          %s348 = scalar_lea.hbm %s2, %s347
          %s349 = sshll.u32 %s338, 4
          %s350 = int_to_ptr.vmem [resolvable:$true] %s349
          %355 = dma.hbm_to_vmem [thread:$0]  %s348, 256, %s350, %s335, 256, 128, 8
        $region44: #{tpu_custom_call.1} parent=31 // pred_fallthru
          _
      $region32: #{tpu_custom_call.1} parent=5 // pred_fallthru
        _
      %p356 = scmp.le.s32.totalorder 1, %s23
      %p357 = scmp.lt.s32.totalorder %s23, 5
      %p358 = pnand %p356, %p357
      %p359 = pneg %p358
      // Predicated region
      $region45: #{tpu_custom_call.1} parent=5 // pred_check
        _
      $region46: #{tpu_custom_call.1} parent=5 // pred_check_branch
        %361 = sbr.rel (%p358) target = $region48
      $region47: #{tpu_custom_call.1} parent=5 // pred_region
        %s362 = ssub.s32 %s23, 1
        %s363 = sand.u32 %s56, 1
        %s364 = scalar_lea.sflag [#allocation5], %s363
        %s365 = sand.u32 %s56, 1
        %s366 = smul.addr %s365, 16
        %s367 = scalar_lea.vmem [#allocation4], %s366
        // Predicated region
        $region49: #{tpu_custom_call.1} parent=47 // pred_check
          %p368 = pneg %p69
        $region50: #{tpu_custom_call.1} parent=47 // pred_check_branch
          %370 = sbr.rel (%p368) target = $region52
        $region51: #{tpu_custom_call.1} parent=47 // pred_region
          %371 = dma.done %s364, 256
        $region52: #{tpu_custom_call.1} parent=47 // pred_fallthru
          _
        %s372 = sand.u32 %s28, 1
        %s373 = scalar_lea.sflag [#allocation8], %s372
        %s374 = sand.u32 %s84, 1
        %s375 = smul.addr %s374, 16
        %s376 = scalar_lea.vmem [#allocation7], %s375
        // Predicated region
        $region53: #{tpu_custom_call.1} parent=47 // pred_check
          %p377 = pneg %p97
        $region54: #{tpu_custom_call.1} parent=47 // pred_check_branch
          %379 = sbr.rel (%p377) target = $region56
        $region55: #{tpu_custom_call.1} parent=47 // pred_region
          %380 = dma.done %s373, 256
        $region56: #{tpu_custom_call.1} parent=47 // pred_fallthru
          _
        %s381 = sand.u32 %s28, 1
        %s382 = scalar_lea.sflag [#allocation8], %s381
        %s383 = sand.u32 %s118, 1
        %s384 = smul.addr %s383, 16
        %s385 = scalar_lea.vmem [#allocation9], %s384
        // Predicated region
        $region57: #{tpu_custom_call.1} parent=47 // pred_check
          %p386 = pneg %p131
        $region58: #{tpu_custom_call.1} parent=47 // pred_check_branch
          %388 = sbr.rel (%p386) target = $region60
        $region59: #{tpu_custom_call.1} parent=47 // pred_region
          %389 = dma.done %s382, 256
        $region60: #{tpu_custom_call.1} parent=47 // pred_fallthru
          _
        // Predicated region
        $region61: #{tpu_custom_call.1} parent=47 // pred_check
          %p390 = pneg %p152
        $region62: #{tpu_custom_call.1} parent=47 // pred_check_branch
          %392 = sbr.rel (%p390) target = $region64
        $region63: #{tpu_custom_call.1} parent=47 // pred_region
          %393 = dma.done [#allocation11], 768
        $region64: #{tpu_custom_call.1} parent=47 // pred_fallthru
          _
        %s394 = sand.u32 %s56, 1
        %s395 = scalar_lea.sflag [#allocation5], %s394
        %s396 = sand.u32 %s56, 1
        %s397 = smul.addr %s396, 16
        %s398 = scalar_lea.vmem [#allocation4], %s397
        %p399 = pneg %p69
        %p400 = pneg %p66
        %s401 = sand.u32 %s28, 1
        %s402 = scalar_lea.sflag [#allocation8], %s401
        %s403 = sand.u32 %s84, 1
        %s404 = smul.addr %s403, 16
        %s405 = scalar_lea.vmem [#allocation7], %s404
        %p406 = pneg %p97
        %p407 = pneg %p94
        %s408 = sand.u32 %s28, 1
        %s409 = scalar_lea.sflag [#allocation8], %s408
        %s410 = sand.u32 %s118, 1
        %s411 = smul.addr %s410, 16
        %s412 = scalar_lea.vmem [#allocation9], %s411
        %p413 = pneg %p131
        %p414 = pneg %p128
        %p415 = pneg %p152
        %p416 = pneg %p149
        %p417 = pneg %p173
        %p418 = pneg %p170
        %p419 = pneg %p194
        %p420 = pneg %p191
        %p421 = pneg %p215
        %p422 = pneg %p212
        %p423 = pneg %p243
        %p424 = pneg %p240
        %s425 = sand.u32 %s230, 1
        %s426 = scalar_lea.sflag [#allocation6], %s425
        %s427 = sand.u32 %s230, 1
        %s428 = smul.addr %s427, 16
        %s429 = scalar_lea.vmem [#allocation12], %s428
        %s430 = ssub.s32 %s32, 1
        %p431 = scmp.gt.s32.totalorder %s430, 0
        %s432 = scalar_select %p431, %s430, 0
        %s433 = sadd.s32 %s32, 1
        %p434 = scmp.lt.s32.totalorder %s433, 1
        %s435 = scalar_select %p434, %s433, 1
        %s436 = smul.u32 %s32, 128
        %s437 = ssub.s32 %s436, 128
        %v438 = vlaneseq
        %v439 = vand.u32 %v438, 127
        %v440 = vstv %s437
        %v441 = vadd.s32 %v440, %v439
        %vm442 = vcmp.ge.s32.totalorder %v441, 0
        %v443 = vld [vmem:[%s367] sm:$0xff]
        %v444 = vld [vmem:[%s367 + $0x8] sm:$0xff]
        %v445 = vsel %vm442, 1, 0
        %vm446 = vcmp.eq.s32.totalorder %v445, 1
        %v447 = vsel %vm446, %v443, 0.0
        %v448 = vsel %vm446, %v444, 0.0
        %449 = vst [vmem:[#allocation2] sm:$0xff] %v447
        %450 = vst [vmem:[#allocation2 + $0x18] sm:$0xff] %v448
        %v451 = vld [vmem:[%s376] sm:$0xff]
        %v452 = vld [vmem:[%s376 + $0x8] sm:$0xff]
        %453 = vst [vmem:[#allocation2 + $0x8] sm:$0xff] %v451
        %454 = vst [vmem:[#allocation2 + $0x20] sm:$0xff] %v452
        %s455 = sadd.s32 %s32, 1
        %s456 = smul.u32 %s455, 128
        %v457 = vstv %s456
        %v458 = vadd.s32 %v457, %v439
        %vm459 = vcmp.lt.s32.totalorder %v458, 256
        %v460 = vld [vmem:[%s385] sm:$0xff]
        %v461 = vld [vmem:[%s385 + $0x8] sm:$0xff]
        %v462 = vsel %vm459, 1, 0
        %vm463 = vcmp.eq.s32.totalorder %v462, 1
        %v464 = vsel %vm463, %v460, 0.0
        %v465 = vsel %vm463, %v461, 0.0
        %466 = vst [vmem:[#allocation2 + $0x10] sm:$0xff] %v464
        %467 = vst [vmem:[#allocation2 + $0x28] sm:$0xff] %v465
        %p468 = scmp.gt.s32.totalorder %s456, 256
        // Predicated region
        $region65: #{tpu_custom_call.1} parent=47 // pred_check
          %p469 = pneg %p468
        $region66: #{tpu_custom_call.1} parent=47 // pred_check_branch
          %471 = sbr.rel (%p469) target = $region68
        $region67: #{tpu_custom_call.1} parent=47 // pred_region
          %v472 = vstv %s436
          %v473 = vadd.s32 %v472, %v439
          %vm474 = vcmp.lt.s32.totalorder %v473, 256
          %v475 = vld [vmem:[#allocation2 + $0x8] sm:$0xff]
          %v476 = vld [vmem:[#allocation2 + $0x20] sm:$0xff]
          %v477 = vsel %vm474, 1, 0
          %vm478 = vcmp.eq.s32.totalorder %v477, 1
          %v479 = vsel %vm478, %v475, 0.0
          %v480 = vsel %vm478, %v476, 0.0
          %481 = vst [vmem:[#allocation2 + $0x8] sm:$0xff] %v479
          %482 = vst [vmem:[#allocation2 + $0x20] sm:$0xff] %v480
        $region68: #{tpu_custom_call.1} parent=47 // pred_fallthru
          _
        %v483 = vld [vmem:[#allocation2] sm:$0xff]
        %v484 = vld [vmem:[#allocation2 + $0x8] sm:$0xff]
        %v485 = vld [vmem:[#allocation2 + $0x10] sm:$0xff]
        %v486 = vld [vmem:[#allocation2 + $0x18] sm:$0xff]
        %v487 = vld [vmem:[#allocation2 + $0x20] sm:$0xff]
        %v488 = vld [vmem:[#allocation2 + $0x28] sm:$0xff]
        %489 = vrot.lane.b32.xlu0 %v483, 4
        %v490 = vpop.permute.xlu0 %489
        %491 = vrot.lane.b32.xlu0 %v486, 4
        %v492 = vpop.permute.xlu0 %491
        %493 = vrot.lane.b32.xlu0 %v484, 4
        %v494 = vpop.permute.xlu0 %493
        %495 = vrot.lane.b32.xlu0 %v487, 4
        %v496 = vpop.permute.xlu0 %495
        %497 = vrot.lane.b32.xlu0 %v485, 4
        %v498 = vpop.permute.xlu0 %497
        %499 = vrot.lane.b32.xlu0 %v488, 4
        %v500 = vpop.permute.xlu0 %499
        %vm501 = vcmp.lt.s32.totalorder %v439, 4
        %v502 = vsel %vm501, %v494, %v498
        %v503 = vsel %vm501, %v496, %v500
        %v504 = vsel %vm501, %v490, %v494
        %v505 = vsel %vm501, %v492, %v496
        %v506 = vld [vmem:[#allocation10] sm:$0xff]
        %v507 = vld [vmem:[#allocation10 + $0x8] sm:$0xff]
        %508 = vrot.lane.b32.xlu0 %v483, 2
        %v509 = vpop.permute.xlu0 %508
        %510 = vrot.lane.b32.xlu0 %v486, 2
        %v511 = vpop.permute.xlu0 %510
        %512 = vrot.lane.b32.xlu0 %v484, 2
        %v513 = vpop.permute.xlu0 %512
        %514 = vrot.lane.b32.xlu0 %v487, 2
        %v515 = vpop.permute.xlu0 %514
        %516 = vrot.lane.b32.xlu0 %v485, 2
        %v517 = vpop.permute.xlu0 %516
        %518 = vrot.lane.b32.xlu0 %v488, 2
        %v519 = vpop.permute.xlu0 %518
        %vm520 = vcmp.lt.s32.totalorder %v439, 2
        %v521 = vsel %vm520, %v513, %v517
        %v522 = vsel %vm520, %v515, %v519
        %v523 = vsel %vm520, %v509, %v513
        %v524 = vsel %vm520, %v511, %v515
        %s525 = scalar_lea.vmem [#allocation10], 16
        %v526 = vld [vmem:[%s525] sm:$0xff]
        %v527 = vld [vmem:[%s525 + $0x8] sm:$0xff]
        %vm528 = vcmask 130048
        %v530 = vsel %vm528, %v526, 0
        %v533 = vsel %vm528, %v527, 0
        %535 = vmatprep.subr.mxu0 %v521
        %536 = vmatpush1.msra.mxu0 %v523
        %537 = vmatprep.subr.mxu0 %v522
        %538 = vmatpush1.msra.mxu0 %v524
        %539 = vmatprep.subr.mxu0 0.0
        %540 = vmatpush1.msra.mxu0 0.0
        %541 = vmatprep.subr.mxu0 0.0
        %542 = vmatpush1.msra.mxu0 0.0
        %543 = vmatprep.subr.mxu0 0.0
        %544 = vmatpush1.msra.mxu0 0.0
        %545 = vmatprep.subr.mxu0 0.0
        %546 = vmatpush1.msra.mxu0 0.0
        %547 = vmatprep.subr.mxu0 0.0
        %548 = vmatpush1.msra.mxu0 0.0
        %549 = vmatprep.subr.mxu0 0.0
        %550 = vmatpush1.msra.mxu0 0.0
        %551 = vmatprep.subr.mxu0 0.0
        %552 = vmatpush1.msra.mxu0 0.0
        %553 = vmatprep.subr.mxu0 0.0
        %554 = vmatpush1.msra.mxu0 0.0
        %555 = vmatprep.subr.mxu0 0.0
        %556 = vmatpush1.msra.mxu0 0.0
        %557 = vmatprep.subr.mxu0 0.0
        %558 = vmatpush1.msra.mxu0 0.0
        %559 = vmatprep.subr.mxu0 0.0
        %560 = vmatpush1.msra.mxu0 0.0
        %561 = vmatprep.subr.mxu0 0.0
        %562 = vmatpush1.msra.mxu0 0.0
        %563 = vmatprep.subr.mxu0 0.0
        %564 = vmatpush1.msra.mxu0 0.0
        %565 = vmatprep.subr.mxu0 0.0
        %566 = vmatpush1.msra.mxu0 0.0
        %567 = vmatprep.subr.mxu0 0.0
        %568 = vmatpush1.msra.mxu0 0.0
        %569 = vmatprep.subr.mxu0 0.0
        %570 = vmatpush1.msra.mxu0 0.0
        %571 = vmatprep.subr.mxu0 0.0
        %572 = vmatpush1.msra.mxu0 0.0
        %573 = vmatprep.subr.mxu0 0.0
        %574 = vmatpush1.msra.mxu0 0.0
        %575 = vmatprep.subr.mxu0 0.0
        %576 = vmatpush1.msra.mxu0 0.0
        %577 = vmatprep.subr.mxu0 0.0
        %578 = vmatpush1.msra.mxu0 0.0
        %579 = vmatprep.subr.mxu0 0.0
        %580 = vmatpush1.msra.mxu0 0.0
        %581 = vmatprep.subr.mxu0 0.0
        %582 = vmatpush1.msra.mxu0 0.0
        %583 = vmatprep.subr.mxu0 0.0
        %584 = vmatpush1.msra.mxu0 0.0
        %585 = vmatprep.subr.mxu0 0.0
        %586 = vmatpush1.msra.mxu0 0.0
        %587 = vmatprep.subr.mxu0 0.0
        %588 = vmatpush1.msra.mxu0 0.0
        %589 = vmatprep.subr.mxu0 0.0
        %590 = vmatpush1.msra.mxu0 0.0
        %591 = vmatprep.subr.mxu0 0.0
        %592 = vmatpush1.msra.mxu0 0.0
        %593 = vmatprep.subr.mxu0 0.0
        %594 = vmatpush1.msra.mxu0 0.0
        %595 = vmatprep.subr.mxu0 0.0
        %596 = vmatpush1.msra.mxu0 0.0
        %597 = vmatprep.subr.mxu0 0.0
        %598 = vmatpush1.msra.mxu0 0.0
        %599 = vmatprep.mubr.f32.mxu0 0.0
        %600 = vmatmul.mubr.f32.gmra.mrb[0].mxu0 %v530
        %v601 = vpop.f32.mrb[0].mxu0
        %v602 = vadd.f32 0.0, %v601
        %v603 = vpop.f32.mrb[0].mxu0
        %v604 = vadd.f32 0.0, %v603
        %605 = vmatprep.mubr.f32.mxu0 0.0
        %606 = vmatmul.mubr.f32.gmra.mrb[0].mxu0 %v533
        %v607 = vpop.f32.mrb[0].mxu0
        %v608 = vadd.f32 0.0, %v607
        %v609 = vpop.f32.mrb[0].mxu0
        %v610 = vadd.f32 0.0, %v609
        %611 = vdwg.mxu0
        %v613 = vsel %vm528, %v506, 0
        %v616 = vsel %vm528, %v507, 0
        %618 = vmatprep.subr.mxu0 %v502
        %619 = vmatpush1.msra.mxu0 %v504
        %620 = vmatprep.subr.mxu0 %v503
        %621 = vmatpush1.msra.mxu0 %v505
        %622 = vmatprep.subr.mxu0 0.0
        %623 = vmatpush1.msra.mxu0 0.0
        %624 = vmatprep.subr.mxu0 0.0
        %625 = vmatpush1.msra.mxu0 0.0
        %626 = vmatprep.subr.mxu0 0.0
        %627 = vmatpush1.msra.mxu0 0.0
        %628 = vmatprep.subr.mxu0 0.0
        %629 = vmatpush1.msra.mxu0 0.0
        %630 = vmatprep.subr.mxu0 0.0
        %631 = vmatpush1.msra.mxu0 0.0
        %632 = vmatprep.subr.mxu0 0.0
        %633 = vmatpush1.msra.mxu0 0.0
        %634 = vmatprep.subr.mxu0 0.0
        %635 = vmatpush1.msra.mxu0 0.0
        %636 = vmatprep.subr.mxu0 0.0
        %637 = vmatpush1.msra.mxu0 0.0
        %638 = vmatprep.subr.mxu0 0.0
        %639 = vmatpush1.msra.mxu0 0.0
        %640 = vmatprep.subr.mxu0 0.0
        %641 = vmatpush1.msra.mxu0 0.0
        %642 = vmatprep.subr.mxu0 0.0
        %643 = vmatpush1.msra.mxu0 0.0
        %644 = vmatprep.subr.mxu0 0.0
        %645 = vmatpush1.msra.mxu0 0.0
        %646 = vmatprep.subr.mxu0 0.0
        %647 = vmatpush1.msra.mxu0 0.0
        %648 = vmatprep.subr.mxu0 0.0
        %649 = vmatpush1.msra.mxu0 0.0
        %650 = vmatprep.subr.mxu0 0.0
        %651 = vmatpush1.msra.mxu0 0.0
        %652 = vmatprep.subr.mxu0 0.0
        %653 = vmatpush1.msra.mxu0 0.0
        %654 = vmatprep.subr.mxu0 0.0
        %655 = vmatpush1.msra.mxu0 0.0
        %656 = vmatprep.subr.mxu0 0.0
        %657 = vmatpush1.msra.mxu0 0.0
        %658 = vmatprep.subr.mxu0 0.0
        %659 = vmatpush1.msra.mxu0 0.0
        %660 = vmatprep.subr.mxu0 0.0
        %661 = vmatpush1.msra.mxu0 0.0
        %662 = vmatprep.subr.mxu0 0.0
        %663 = vmatpush1.msra.mxu0 0.0
        %664 = vmatprep.subr.mxu0 0.0
        %665 = vmatpush1.msra.mxu0 0.0
        %666 = vmatprep.subr.mxu0 0.0
        %667 = vmatpush1.msra.mxu0 0.0
        %668 = vmatprep.subr.mxu0 0.0
        %669 = vmatpush1.msra.mxu0 0.0
        %670 = vmatprep.subr.mxu0 0.0
        %671 = vmatpush1.msra.mxu0 0.0
        %672 = vmatprep.subr.mxu0 0.0
        %673 = vmatpush1.msra.mxu0 0.0
        %674 = vmatprep.subr.mxu0 0.0
        %675 = vmatpush1.msra.mxu0 0.0
        %676 = vmatprep.subr.mxu0 0.0
        %677 = vmatpush1.msra.mxu0 0.0
        %678 = vmatprep.subr.mxu0 0.0
        %679 = vmatpush1.msra.mxu0 0.0
        %680 = vmatprep.subr.mxu0 0.0
        %681 = vmatpush1.msra.mxu0 0.0
        %682 = vmatprep.mubr.f32.mxu0 0.0
        %683 = vmatmul.mubr.f32.gmra.mrb[0].mxu0 %v613
        %v684 = vpop.f32.mrb[0].mxu0
        %v685 = vadd.f32 %v602, %v684
        %v686 = vpop.f32.mrb[0].mxu0
        %v687 = vadd.f32 %v604, %v686
        %688 = vmatprep.mubr.f32.mxu0 0.0
        %689 = vmatmul.mubr.f32.gmra.mrb[0].mxu0 %v616
        %v690 = vpop.f32.mrb[0].mxu0
        %v691 = vadd.f32 %v608, %v690
        %v692 = vpop.f32.mrb[0].mxu0
        %v693 = vadd.f32 %v610, %v692
        %694 = vdwg.mxu0
        %s695 = scalar_lea.vmem [#allocation10], 32
        %v696 = vld [vmem:[%s695] sm:$0xff]
        %v697 = vld [vmem:[%s695 + $0x8] sm:$0xff]
        %v699 = vsel %vm528, %v696, 0
        %v702 = vsel %vm528, %v697, 0
        %704 = vmatprep.subr.mxu0 %v485
        %705 = vmatpush1.msra.mxu0 %v484
        %706 = vmatprep.subr.mxu0 %v488
        %707 = vmatpush1.msra.mxu0 %v487
        %708 = vmatprep.subr.mxu0 0.0
        %709 = vmatpush1.msra.mxu0 0.0
        %710 = vmatprep.subr.mxu0 0.0
        %711 = vmatpush1.msra.mxu0 0.0
        %712 = vmatprep.subr.mxu0 0.0
        %713 = vmatpush1.msra.mxu0 0.0
        %714 = vmatprep.subr.mxu0 0.0
        %715 = vmatpush1.msra.mxu0 0.0
        %716 = vmatprep.subr.mxu0 0.0
        %717 = vmatpush1.msra.mxu0 0.0
        %718 = vmatprep.subr.mxu0 0.0
        %719 = vmatpush1.msra.mxu0 0.0
        %720 = vmatprep.subr.mxu0 0.0
        %721 = vmatpush1.msra.mxu0 0.0
        %722 = vmatprep.subr.mxu0 0.0
        %723 = vmatpush1.msra.mxu0 0.0
        %724 = vmatprep.subr.mxu0 0.0
        %725 = vmatpush1.msra.mxu0 0.0
        %726 = vmatprep.subr.mxu0 0.0
        %727 = vmatpush1.msra.mxu0 0.0
        %728 = vmatprep.subr.mxu0 0.0
        %729 = vmatpush1.msra.mxu0 0.0
        %730 = vmatprep.subr.mxu0 0.0
        %731 = vmatpush1.msra.mxu0 0.0
        %732 = vmatprep.subr.mxu0 0.0
        %733 = vmatpush1.msra.mxu0 0.0
        %734 = vmatprep.subr.mxu0 0.0
        %735 = vmatpush1.msra.mxu0 0.0
        %736 = vmatprep.subr.mxu0 0.0
        %737 = vmatpush1.msra.mxu0 0.0
        %738 = vmatprep.subr.mxu0 0.0
        %739 = vmatpush1.msra.mxu0 0.0
        %740 = vmatprep.subr.mxu0 0.0
        %741 = vmatpush1.msra.mxu0 0.0
        %742 = vmatprep.subr.mxu0 0.0
        %743 = vmatpush1.msra.mxu0 0.0
        %744 = vmatprep.subr.mxu0 0.0
        %745 = vmatpush1.msra.mxu0 0.0
        %746 = vmatprep.subr.mxu0 0.0
        %747 = vmatpush1.msra.mxu0 0.0
        %748 = vmatprep.subr.mxu0 0.0
        %749 = vmatpush1.msra.mxu0 0.0
        %750 = vmatprep.subr.mxu0 0.0
        %751 = vmatpush1.msra.mxu0 0.0
        %752 = vmatprep.subr.mxu0 0.0
        %753 = vmatpush1.msra.mxu0 0.0
        %754 = vmatprep.subr.mxu0 0.0
        %755 = vmatpush1.msra.mxu0 0.0
        %756 = vmatprep.subr.mxu0 0.0
        %757 = vmatpush1.msra.mxu0 0.0
        %758 = vmatprep.subr.mxu0 0.0
        %759 = vmatpush1.msra.mxu0 0.0
        %760 = vmatprep.subr.mxu0 0.0
        %761 = vmatpush1.msra.mxu0 0.0
        %762 = vmatprep.subr.mxu0 0.0
        %763 = vmatpush1.msra.mxu0 0.0
        %764 = vmatprep.subr.mxu0 0.0
        %765 = vmatpush1.msra.mxu0 0.0
        %766 = vmatprep.subr.mxu0 0.0
        %767 = vmatpush1.msra.mxu0 0.0
        %768 = vmatprep.mubr.f32.mxu0 0.0
        %769 = vmatmul.mubr.f32.gmra.mrb[0].mxu0 %v699
        %v770 = vpop.f32.mrb[0].mxu0
        %v771 = vadd.f32 0.0, %v770
        %v772 = vpop.f32.mrb[0].mxu0
        %v773 = vadd.f32 0.0, %v772
        %774 = vmatprep.mubr.f32.mxu0 0.0
        %775 = vmatmul.mubr.f32.gmra.mrb[0].mxu0 %v702
        %v776 = vpop.f32.mrb[0].mxu0
        %v777 = vadd.f32 0.0, %v776
        %v778 = vpop.f32.mrb[0].mxu0
        %v779 = vadd.f32 0.0, %v778
        %780 = vdwg.mxu0
        %v781 = vadd.f32 %v685, %v771
        %v782 = vadd.f32 %v687, %v773
        %v783 = vadd.f32 %v691, %v777
        %v784 = vadd.f32 %v693, %v779
        %v785 = vld [vmem:[%s4] sm:$0xff]
        %v786 = vld [vmem:[%s4 + $0x8] sm:$0xff]
        %788 = vset.pattern.permute.xlu0 0
        %789 = vperm.xlu0 %788, %v785
        %v790 = vpop.permute.xlu0 %789
        %793 = vset.pattern.permute.xlu0 0
        %794 = vperm.xlu0 %793, %v786
        %v795 = vpop.permute.xlu0 %794
        %v797 = vadd.f32 %v781, %v790
        %v798 = vadd.f32 %v782, %v790
        %v799 = vadd.f32 %v783, %v795
        %v800 = vadd.f32 %v784, %v795
        %vm801 = vcmp.ge.f32.partialorder %v797, 0.0
        %vm802 = vcmp.ge.f32.partialorder %v798, 0.0
        %vm803 = vcmp.ge.f32.partialorder %v799, 0.0
        %vm804 = vcmp.ge.f32.partialorder %v800, 0.0
        %v805 = vmul.f32 %v797, 0.01
        %v806 = vmul.f32 %v798, 0.01
        %v807 = vmul.f32 %v799, 0.01
        %v808 = vmul.f32 %v800, 0.01
        %v809 = vsel %vm801, %v797, %v805
        %v810 = vsel %vm802, %v798, %v806
        %v811 = vsel %vm803, %v799, %v807
        %v812 = vsel %vm804, %v800, %v808
        %813 = vst [vmem:[#allocation3] sm:$0xff] %v809
        %814 = vst [vmem:[#allocation3 + $0x8] sm:$0xff] %v810
        %815 = vst [vmem:[#allocation3 + $0x10] sm:$0xff] %v811
        %816 = vst [vmem:[#allocation3 + $0x18] sm:$0xff] %v812
        %p817 = scmp.eq.s32.totalorder %s32, 0
        %s818 = sadd.s32 %s456, 2
        %p819 = scmp.gt.s32.totalorder %s818, 256
        %p820 = por %p817, %p819
        // Predicated region
        $region69: #{tpu_custom_call.1} parent=47 // pred_check
          %p821 = pneg %p820
        $region70: #{tpu_custom_call.1} parent=47 // pred_check_branch
          %823 = sbr.rel (%p821) target = $region72
        $region71: #{tpu_custom_call.1} parent=47 // pred_region
          %s824 = ssub.s32 %s436, 2
          %v825 = vadd.s32 %v439, 128
          %v826 = vstv %s824
          %v827 = vadd.s32 %v826, %v439
          %v828 = vadd.s32 %v826, %v825
          %vm829 = vcmp.ge.s32.totalorder %v827, 0
          %vm830 = vcmp.ge.s32.totalorder %v828, 0
          %vm831 = vcmp.lt.s32.totalorder %v827, 256
          %vm832 = vcmp.lt.s32.totalorder %v828, 256
          %vm833 = vmand %vm829, %vm831
          %vm834 = vmand %vm830, %vm832
          %v835 = vld [vmem:[#allocation3] sm:$0xff]
          %v836 = vld [vmem:[#allocation3 + $0x8] sm:$0xff]
          %v837 = vld [vmem:[#allocation3 + $0x10] sm:$0xff]
          %v838 = vld [vmem:[#allocation3 + $0x18] sm:$0xff]
          %v839 = vsel %vm833, 1, 0
          %v840 = vsel %vm834, 1, 0
          %vm841 = vcmp.eq.s32.totalorder %v839, 1
          %vm842 = vcmp.eq.s32.totalorder %v840, 1
          %v843 = vsel %vm841, %v835, 0.0
          %v844 = vsel %vm842, %v836, 0.0
          %v845 = vsel %vm841, %v837, 0.0
          %v846 = vsel %vm842, %v838, 0.0
          %847 = vst [vmem:[#allocation3] sm:$0xff] %v843
          %848 = vst [vmem:[#allocation3 + $0x8] sm:$0xff] %v844
          %849 = vst [vmem:[#allocation3 + $0x10] sm:$0xff] %v845
          %850 = vst [vmem:[#allocation3 + $0x18] sm:$0xff] %v846
        $region72: #{tpu_custom_call.1} parent=47 // pred_fallthru
          _
        %v851 = vld [vmem:[#allocation3] sm:$0xff]
        %v852 = vld [vmem:[#allocation3 + $0x8] sm:$0xff]
        %v853 = vld [vmem:[#allocation3 + $0x10] sm:$0xff]
        %v854 = vld [vmem:[#allocation3 + $0x18] sm:$0xff]
        %v855 = vld [vmem:[%s5] sm:$0xff]
        %v856 = vld [vmem:[%s5 + $0x8] sm:$0xff]
        %857 = vrot.lane.b32.xlu0 %v851, 126
        %v858 = vpop.permute.xlu0 %857
        %859 = vrot.lane.b32.xlu0 %v853, 126
        %v860 = vpop.permute.xlu0 %859
        %861 = vrot.lane.b32.xlu0 %v852, 126
        %v862 = vpop.permute.xlu0 %861
        %863 = vrot.lane.b32.xlu0 %v854, 126
        %v864 = vpop.permute.xlu0 %863
        %vm865 = vcmp.lt.s32.totalorder %v439, 126
        %v866 = vsel %vm865, %v858, %v862
        %v867 = vsel %vm865, %v860, %v864
        %s868 = scalar_lea.vmem %s5, 16
        %v869 = vld [vmem:[%s868] sm:$0xff]
        %v870 = vld [vmem:[%s868 + $0x8] sm:$0xff]
        %v872 = vsel %vm528, %v869, 0
        %v875 = vsel %vm528, %v870, 0
        %877 = vmatprep.subr.mxu0 0.0
        %878 = vmatpush1.msra.mxu0 %v866
        %879 = vmatprep.subr.mxu0 0.0
        %880 = vmatpush1.msra.mxu0 %v867
        %881 = vmatprep.subr.mxu0 0.0
        %882 = vmatpush1.msra.mxu0 0.0
        %883 = vmatprep.subr.mxu0 0.0
        %884 = vmatpush1.msra.mxu0 0.0
        %885 = vmatprep.subr.mxu0 0.0
        %886 = vmatpush1.msra.mxu0 0.0
        %887 = vmatprep.subr.mxu0 0.0
        %888 = vmatpush1.msra.mxu0 0.0
        %889 = vmatprep.subr.mxu0 0.0
        %890 = vmatpush1.msra.mxu0 0.0
        %891 = vmatprep.subr.mxu0 0.0
        %892 = vmatpush1.msra.mxu0 0.0
        %893 = vmatprep.subr.mxu0 0.0
        %894 = vmatpush1.msra.mxu0 0.0
        %895 = vmatprep.subr.mxu0 0.0
        %896 = vmatpush1.msra.mxu0 0.0
        %897 = vmatprep.subr.mxu0 0.0
        %898 = vmatpush1.msra.mxu0 0.0
        %899 = vmatprep.subr.mxu0 0.0
        %900 = vmatpush1.msra.mxu0 0.0
        %901 = vmatprep.subr.mxu0 0.0
        %902 = vmatpush1.msra.mxu0 0.0
        %903 = vmatprep.subr.mxu0 0.0
        %904 = vmatpush1.msra.mxu0 0.0
        %905 = vmatprep.subr.mxu0 0.0
        %906 = vmatpush1.msra.mxu0 0.0
        %907 = vmatprep.subr.mxu0 0.0
        %908 = vmatpush1.msra.mxu0 0.0
        %909 = vmatprep.subr.mxu0 0.0
        %910 = vmatpush1.msra.mxu0 0.0
        %911 = vmatprep.subr.mxu0 0.0
        %912 = vmatpush1.msra.mxu0 0.0
        %913 = vmatprep.subr.mxu0 0.0
        %914 = vmatpush1.msra.mxu0 0.0
        %915 = vmatprep.subr.mxu0 0.0
        %916 = vmatpush1.msra.mxu0 0.0
        %917 = vmatprep.subr.mxu0 0.0
        %918 = vmatpush1.msra.mxu0 0.0
        %919 = vmatprep.subr.mxu0 0.0
        %920 = vmatpush1.msra.mxu0 0.0
        %921 = vmatprep.subr.mxu0 0.0
        %922 = vmatpush1.msra.mxu0 0.0
        %923 = vmatprep.subr.mxu0 0.0
        %924 = vmatpush1.msra.mxu0 0.0
        %925 = vmatprep.subr.mxu0 0.0
        %926 = vmatpush1.msra.mxu0 0.0
        %927 = vmatprep.subr.mxu0 0.0
        %928 = vmatpush1.msra.mxu0 0.0
        %929 = vmatprep.subr.mxu0 0.0
        %930 = vmatpush1.msra.mxu0 0.0
        %931 = vmatprep.subr.mxu0 0.0
        %932 = vmatpush1.msra.mxu0 0.0
        %933 = vmatprep.subr.mxu0 0.0
        %934 = vmatpush1.msra.mxu0 0.0
        %935 = vmatprep.subr.mxu0 0.0
        %936 = vmatpush1.msra.mxu0 0.0
        %937 = vmatprep.subr.mxu0 0.0
        %938 = vmatpush1.msra.mxu0 0.0
        %939 = vmatprep.subr.mxu0 0.0
        %940 = vmatpush1.msra.mxu0 0.0
        %941 = vmatprep.mubr.f32.mxu0 0.0
        %942 = vmatmul.mubr.f32.gmra.mrb[0].mxu0 %v872
        %v943 = vpop.f32.mrb[0].mxu0
        %v944 = vadd.f32 0.0, %v943
        %v945 = vpop.f32.mrb[0].mxu0
        %946 = vmatprep.mubr.f32.mxu0 0.0
        %947 = vmatmul.mubr.f32.gmra.mrb[0].mxu0 %v875
        %v948 = vpop.f32.mrb[0].mxu0
        %v949 = vadd.f32 0.0, %v948
        %v950 = vpop.f32.mrb[0].mxu0
        %951 = vdwg.mxu0
        %v953 = vsel %vm528, %v855, 0
        %v956 = vsel %vm528, %v856, 0
        %958 = vmatprep.subr.mxu0 0.0
        %959 = vmatpush1.msra.mxu0 %v851
        %960 = vmatprep.subr.mxu0 0.0
        %961 = vmatpush1.msra.mxu0 %v853
        %962 = vmatprep.subr.mxu0 0.0
        %963 = vmatpush1.msra.mxu0 0.0
        %964 = vmatprep.subr.mxu0 0.0
        %965 = vmatpush1.msra.mxu0 0.0
        %966 = vmatprep.subr.mxu0 0.0
        %967 = vmatpush1.msra.mxu0 0.0
        %968 = vmatprep.subr.mxu0 0.0
        %969 = vmatpush1.msra.mxu0 0.0
        %970 = vmatprep.subr.mxu0 0.0
        %971 = vmatpush1.msra.mxu0 0.0
        %972 = vmatprep.subr.mxu0 0.0
        %973 = vmatpush1.msra.mxu0 0.0
        %974 = vmatprep.subr.mxu0 0.0
        %975 = vmatpush1.msra.mxu0 0.0
        %976 = vmatprep.subr.mxu0 0.0
        %977 = vmatpush1.msra.mxu0 0.0
        %978 = vmatprep.subr.mxu0 0.0
        %979 = vmatpush1.msra.mxu0 0.0
        %980 = vmatprep.subr.mxu0 0.0
        %981 = vmatpush1.msra.mxu0 0.0
        %982 = vmatprep.subr.mxu0 0.0
        %983 = vmatpush1.msra.mxu0 0.0
        %984 = vmatprep.subr.mxu0 0.0
        %985 = vmatpush1.msra.mxu0 0.0
        %986 = vmatprep.subr.mxu0 0.0
        %987 = vmatpush1.msra.mxu0 0.0
        %988 = vmatprep.subr.mxu0 0.0
        %989 = vmatpush1.msra.mxu0 0.0
        %990 = vmatprep.subr.mxu0 0.0
        %991 = vmatpush1.msra.mxu0 0.0
        %992 = vmatprep.subr.mxu0 0.0
        %993 = vmatpush1.msra.mxu0 0.0
        %994 = vmatprep.subr.mxu0 0.0
        %995 = vmatpush1.msra.mxu0 0.0
        %996 = vmatprep.subr.mxu0 0.0
        %997 = vmatpush1.msra.mxu0 0.0
        %998 = vmatprep.subr.mxu0 0.0
        %999 = vmatpush1.msra.mxu0 0.0
        %1000 = vmatprep.subr.mxu0 0.0
        %1001 = vmatpush1.msra.mxu0 0.0
        %1002 = vmatprep.subr.mxu0 0.0
        %1003 = vmatpush1.msra.mxu0 0.0
        %1004 = vmatprep.subr.mxu0 0.0
        %1005 = vmatpush1.msra.mxu0 0.0
        %1006 = vmatprep.subr.mxu0 0.0
        %1007 = vmatpush1.msra.mxu0 0.0
        %1008 = vmatprep.subr.mxu0 0.0
        %1009 = vmatpush1.msra.mxu0 0.0
        %1010 = vmatprep.subr.mxu0 0.0
        %1011 = vmatpush1.msra.mxu0 0.0
        %1012 = vmatprep.subr.mxu0 0.0
        %1013 = vmatpush1.msra.mxu0 0.0
        %1014 = vmatprep.subr.mxu0 0.0
        %1015 = vmatpush1.msra.mxu0 0.0
        %1016 = vmatprep.subr.mxu0 0.0
        %1017 = vmatpush1.msra.mxu0 0.0
        %1018 = vmatprep.subr.mxu0 0.0
        %1019 = vmatpush1.msra.mxu0 0.0
        %1020 = vmatprep.subr.mxu0 0.0
        %1021 = vmatpush1.msra.mxu0 0.0
        %1022 = vmatprep.mubr.f32.mxu0 0.0
        %1023 = vmatmul.mubr.f32.gmra.mrb[0].mxu0 %v953
        %v1024 = vpop.f32.mrb[0].mxu0
        %v1025 = vadd.f32 %v944, %v1024
        %v1026 = vpop.f32.mrb[0].mxu0
        %1027 = vmatprep.mubr.f32.mxu0 0.0
        %1028 = vmatmul.mubr.f32.gmra.mrb[0].mxu0 %v956
        %v1029 = vpop.f32.mrb[0].mxu0
        %v1030 = vadd.f32 %v949, %v1029
        %v1031 = vpop.f32.mrb[0].mxu0
        %1032 = vdwg.mxu0
        %1033 = vrot.lane.b32.xlu0 %v851, 124
        %v1034 = vpop.permute.xlu0 %1033
        %1035 = vrot.lane.b32.xlu0 %v853, 124
        %v1036 = vpop.permute.xlu0 %1035
        %1037 = vrot.lane.b32.xlu0 %v852, 124
        %v1038 = vpop.permute.xlu0 %1037
        %1039 = vrot.lane.b32.xlu0 %v854, 124
        %v1040 = vpop.permute.xlu0 %1039
        %vm1041 = vcmp.lt.s32.totalorder %v439, 124
        %v1042 = vsel %vm1041, %v1034, %v1038
        %v1043 = vsel %vm1041, %v1036, %v1040
        %s1044 = scalar_lea.vmem %s5, 32
        %v1045 = vld [vmem:[%s1044] sm:$0xff]
        %v1046 = vld [vmem:[%s1044 + $0x8] sm:$0xff]
        %v1048 = vsel %vm528, %v1045, 0
        %v1051 = vsel %vm528, %v1046, 0
        %1053 = vmatprep.subr.mxu0 0.0
        %1054 = vmatpush1.msra.mxu0 %v1042
        %1055 = vmatprep.subr.mxu0 0.0
        %1056 = vmatpush1.msra.mxu0 %v1043
        %1057 = vmatprep.subr.mxu0 0.0
        %1058 = vmatpush1.msra.mxu0 0.0
        %1059 = vmatprep.subr.mxu0 0.0
        %1060 = vmatpush1.msra.mxu0 0.0
        %1061 = vmatprep.subr.mxu0 0.0
        %1062 = vmatpush1.msra.mxu0 0.0
        %1063 = vmatprep.subr.mxu0 0.0
        %1064 = vmatpush1.msra.mxu0 0.0
        %1065 = vmatprep.subr.mxu0 0.0
        %1066 = vmatpush1.msra.mxu0 0.0
        %1067 = vmatprep.subr.mxu0 0.0
        %1068 = vmatpush1.msra.mxu0 0.0
        %1069 = vmatprep.subr.mxu0 0.0
        %1070 = vmatpush1.msra.mxu0 0.0
        %1071 = vmatprep.subr.mxu0 0.0
        %1072 = vmatpush1.msra.mxu0 0.0
        %1073 = vmatprep.subr.mxu0 0.0
        %1074 = vmatpush1.msra.mxu0 0.0
        %1075 = vmatprep.subr.mxu0 0.0
        %1076 = vmatpush1.msra.mxu0 0.0
        %1077 = vmatprep.subr.mxu0 0.0
        %1078 = vmatpush1.msra.mxu0 0.0
        %1079 = vmatprep.subr.mxu0 0.0
        %1080 = vmatpush1.msra.mxu0 0.0
        %1081 = vmatprep.subr.mxu0 0.0
        %1082 = vmatpush1.msra.mxu0 0.0
        %1083 = vmatprep.subr.mxu0 0.0
        %1084 = vmatpush1.msra.mxu0 0.0
        %1085 = vmatprep.subr.mxu0 0.0
        %1086 = vmatpush1.msra.mxu0 0.0
        %1087 = vmatprep.subr.mxu0 0.0
        %1088 = vmatpush1.msra.mxu0 0.0
        %1089 = vmatprep.subr.mxu0 0.0
        %1090 = vmatpush1.msra.mxu0 0.0
        %1091 = vmatprep.subr.mxu0 0.0
        %1092 = vmatpush1.msra.mxu0 0.0
        %1093 = vmatprep.subr.mxu0 0.0
        %1094 = vmatpush1.msra.mxu0 0.0
        %1095 = vmatprep.subr.mxu0 0.0
        %1096 = vmatpush1.msra.mxu0 0.0
        %1097 = vmatprep.subr.mxu0 0.0
        %1098 = vmatpush1.msra.mxu0 0.0
        %1099 = vmatprep.subr.mxu0 0.0
        %1100 = vmatpush1.msra.mxu0 0.0
        %1101 = vmatprep.subr.mxu0 0.0
        %1102 = vmatpush1.msra.mxu0 0.0
        %1103 = vmatprep.subr.mxu0 0.0
        %1104 = vmatpush1.msra.mxu0 0.0
        %1105 = vmatprep.subr.mxu0 0.0
        %1106 = vmatpush1.msra.mxu0 0.0
        %1107 = vmatprep.subr.mxu0 0.0
        %1108 = vmatpush1.msra.mxu0 0.0
        %1109 = vmatprep.subr.mxu0 0.0
        %1110 = vmatpush1.msra.mxu0 0.0
        %1111 = vmatprep.subr.mxu0 0.0
        %1112 = vmatpush1.msra.mxu0 0.0
        %1113 = vmatprep.subr.mxu0 0.0
        %1114 = vmatpush1.msra.mxu0 0.0
        %1115 = vmatprep.subr.mxu0 0.0
        %1116 = vmatpush1.msra.mxu0 0.0
        %1117 = vmatprep.mubr.f32.mxu0 0.0
        %1118 = vmatmul.mubr.f32.gmra.mrb[0].mxu0 %v1048
        %v1119 = vpop.f32.mrb[0].mxu0
        %v1120 = vadd.f32 0.0, %v1119
        %v1121 = vpop.f32.mrb[0].mxu0
        %1122 = vmatprep.mubr.f32.mxu0 0.0
        %1123 = vmatmul.mubr.f32.gmra.mrb[0].mxu0 %v1051
        %v1124 = vpop.f32.mrb[0].mxu0
        %v1125 = vadd.f32 0.0, %v1124
        %v1126 = vpop.f32.mrb[0].mxu0
        %1127 = vdwg.mxu0
        %v1128 = vadd.f32 %v1025, %v1120
        %v1129 = vadd.f32 %v1030, %v1125
        %v1130 = vld [vmem:[%s376] sm:$0xff]
        %v1131 = vld [vmem:[%s376 + $0x8] sm:$0xff]
        %v1132 = vadd.f32 %v1130, %v1128
        %v1133 = vadd.f32 %v1131, %v1129
        %v1134 = vld [vmem:[%s6] sm:$0xff]
        %v1135 = vld [vmem:[%s6 + $0x8] sm:$0xff]
        %1137 = vset.pattern.permute.xlu0 0
        %1138 = vperm.xlu0 %1137, %v1134
        %v1139 = vpop.permute.xlu0 %1138
        %1142 = vset.pattern.permute.xlu0 0
        %1143 = vperm.xlu0 %1142, %v1135
        %v1144 = vpop.permute.xlu0 %1143
        %v1146 = vadd.f32 %v1132, %v1139
        %v1147 = vadd.f32 %v1133, %v1144
        %1148 = vst [vmem:[%s429] sm:$0xff] %v1146
        %1149 = vst [vmem:[%s429 + $0x8] sm:$0xff] %v1147
        %s1150 = sand.u32 %s230, 1
        %s1151 = scalar_lea.sflag [#allocation6], %s1150
        %s1152 = sand.u32 %s230, 1
        %s1153 = smul.addr %s1152, 16
        %s1154 = scalar_lea.vmem [#allocation12], %s1153
        // Predicated region
        $region73: #{tpu_custom_call.1} parent=47 // pred_check
          %p1155 = pneg %p240
        $region74: #{tpu_custom_call.1} parent=47 // pred_check_branch
          %1157 = sbr.rel (%p1155) target = $region76
        $region75: #{tpu_custom_call.1} parent=47 // pred_region
          %s1159 = ssub.s32 256, 256
          %1160 = vsyncadd %s1151, %s1159
          %s1161 = smul.addr %s33, 4
          %s1162 = sadd.s32 %s32, %s1161
          %s1163 = smul.addr %s1162, 128
          %s1164 = scalar_lea.hbm %s7, %s1163
          %s1165 = sshll.u32 %s1154, 4
          %s1166 = int_to_ptr.vmem [resolvable:$true] %s1165
          %1171 = dma.vmem_to_hbm [thread:$0]  %s1166, 256, %s1164, %s1151, 128, 256, 8
        $region76: #{tpu_custom_call.1} parent=47 // pred_fallthru
          _
      $region48: #{tpu_custom_call.1} parent=5 // pred_fallthru
        _
      %p1172 = scmp.le.s32.totalorder 2, %s23
      // Predicated region
      $region77: #{tpu_custom_call.1} parent=5 // pred_check
        %p1173 = pneg %p1172
      $region78: #{tpu_custom_call.1} parent=5 // pred_check_branch
        %1175 = sbr.rel (%p1173) target = $region80
      $region79: #{tpu_custom_call.1} parent=5 // pred_region
        %s1176 = ssub.s32 %s23, 2
        // Predicated region
        $region81: #{tpu_custom_call.1} parent=79 // pred_check
          %p1177 = pneg %p246
        $region82: #{tpu_custom_call.1} parent=79 // pred_check_branch
          %1179 = sbr.rel (%p1177) target = $region84
        $region83: #{tpu_custom_call.1} parent=79 // pred_region
          %s1180 = sand.u32 %s231, 1
          %s1181 = scalar_lea.sflag [#allocation6], %s1180
          %s1182 = sand.u32 %s231, 1
          %s1183 = smul.addr %s1182, 16
          %s1184 = scalar_lea.vmem [#allocation12], %s1183
          %1185 = dma.done %s1181, 256
        $region84: #{tpu_custom_call.1} parent=79 // pred_fallthru
          _
      $region80: #{tpu_custom_call.1} parent=5 // pred_fallthru
        _
    $region6: #{tpu_custom_call.1} parent=1 // loop_footer
      %s27 = sadd.s32 1, %s23
    $region7: #{tpu_custom_call.1} parent=1 // loop_footer_branch
      %22 = sbr.rel target = $region3
    $region8: #{tpu_custom_call.1} parent=1 // loop_exit
      _
    %1186 = vsyncpa [#allocation5], 1
    %s1187 = scalar_lea.sflag [#allocation5], 1
    %1188 = vsyncpa %s1187, 1
    %1189 = vsyncpa [#allocation8], 1
    %s1190 = scalar_lea.sflag [#allocation8], 1
    %1191 = vsyncpa %s1190, 1
    %1192 = vsyncpa [#allocation11], 1
    %1193 = vsyncpa [#allocation6], 1
    %s1194 = scalar_lea.sflag [#allocation6], 1
    %1195 = vsyncpa %s1194, 1

</llo_original>
